<compile_context>
chip_gen: v7x
topology: tpu7x:2x2x1
jax: 0.10.0
libtpu: 0.0.40
codegen_flags: <defaults>
</compile_context>

<pallas_src>
import functools

import jax
import jax.numpy as jnp
from jax.experimental import pallas as pl
from jax.experimental.pallas import tpu as pltpu


# --------------------------------------------------------------------------
# Kernel 1: h -> per-tile online-softmax partials of the attention pooling
#   m_i  = max_j A_j            (over rows of this tile)
#   l_i  = sum_j exp(A_j - m_i)
#   acc_i= sum_j exp(A_j - m_i) * h1_j
# --------------------------------------------------------------------------
def _attn_pool_kernel(n_valid_ref, h_ref, w1_ref, b1_ref, wab_ref, bab_ref,
                      wc_ref, bc_ref, m_out_ref, l_out_ref, acc_out_ref,
                      *, block_n, d_attn):
    # n_valid_ref: (1,) int32 in SMEM (scalar prefetch)
    # h_ref:   (block_n, L)  input dtype (f32 or bf16)
    # w1_ref:  (L, H)        matmul dtype
    # b1_ref:  (1, H)        f32
    # wab_ref: (H, 2D)       matmul dtype (Wa || Wb fused)
    # bab_ref: (1, 2D)       f32          (ba || bb)
    # wc_ref:  (1, D)        f32
    # bc_ref:  (1, 1)        f32
    # outputs: m_out (1,1,1), l_out (1,1,1), acc_out (1,1,H)   -- all f32
    h = h_ref[...].astype(w1_ref.dtype)

    # Linear(L->H) + ReLU. f32 accumulation and f32 activations (h1 stays f32
    # so the pooled feature M is accurate even on the bf16-matmul path).
    h1 = jnp.dot(h, w1_ref[...], preferred_element_type=jnp.float32) + b1_ref[...]
    h1 = jnp.maximum(h1, 0.0)                                    # (block_n, H) f32

    # Fused gated-attention branches: one MXU pass covers both Wa and Wb.
    ab = (jnp.dot(h1.astype(wab_ref.dtype), wab_ref[...],
                  preferred_element_type=jnp.float32) + bab_ref[...])
    gated = jnp.tanh(ab[:, :d_attn]) * jax.nn.sigmoid(ab[:, d_attn:])  # (block_n, D)

    # n_tasks == 1: VPU broadcast-multiply + lane reduction (skip a 1-lane MXU matmul).
    a_logit = (jnp.sum(gated * wc_ref[...], axis=1, keepdims=True)
               + bc_ref[...])                                    # (block_n, 1)

    # Mask padded rows so they get zero softmax weight downstream.
    row = (pl.program_id(0) * block_n
           + jax.lax.broadcasted_iota(jnp.int32, (block_n, 1), 0))
    a_logit = jnp.where(row < n_valid_ref[0], a_logit, -1e30)

    # Per-tile online-softmax partials (pooling work hides under the MXU-bound loop).
    m_i = jnp.max(a_logit, axis=0, keepdims=True)                # (1, 1)
    w = jnp.exp(a_logit - m_i)                                   # (block_n, 1); pads -> 0
    l_i = jnp.sum(w, axis=0, keepdims=True)                      # (1, 1)
    acc_i = jnp.sum(w * h1, axis=0, keepdims=True)               # (1, H)

    m_out_ref[0] = m_i
    l_out_ref[0] = l_i
    acc_out_ref[0] = acc_i


# --------------------------------------------------------------------------
# Kernel 2 (tiny, single program): merge partials + classifier
#   logits = (softmax(A)^T @ h1) @ Wcls + bcls
# --------------------------------------------------------------------------
def _combine_classify_kernel(m_ref, l_ref, acc_ref, wcls_ref, bcls_ref, out_ref):
    m_i = m_ref[...]                                             # (n_blocks, 1)
    l_i = l_ref[...]                                             # (n_blocks, 1)
    acc_i = acc_ref[...]                                         # (n_blocks, H)

    m = jnp.max(m_i, axis=0, keepdims=True)                      # (1, 1) global max
    scale = jnp.exp(m_i - m)                                     # (n_blocks, 1)
    l = jnp.sum(scale * l_i, axis=0, keepdims=True)              # (1, 1)
    acc = jnp.sum(scale * acc_i, axis=0, keepdims=True)          # (1, H)
    m_pool = acc / l                                             # (1, H)

    out_ref[...] = (jnp.dot(m_pool, wcls_ref[...],
                            preferred_element_type=jnp.float32)
                    + bcls_ref[...]).astype(out_ref.dtype)


# --------------------------------------------------------------------------
# Parameter prep (hoisted out of the per-bag forward; do this once)
# --------------------------------------------------------------------------
def prepare_params(w1, b1, wa, ba, wb, bb, wc, bc, wcls, bcls,
                   matmul_dtype=jnp.bfloat16):
    """Fuse Wa||Wb, cast matmul weights, reshape biases. Call once, reuse per bag."""
    H = w1.shape[1]
    D = wa.shape[1]
    C = wcls.shape[1]
    w1_m = w1.astype(matmul_dtype)
    wab_m = jnp.concatenate([wa, wb], axis=1).astype(matmul_dtype)       # (H, 2D)
    b1_2 = b1.reshape(1, H).astype(jnp.float32)
    bab_2 = jnp.concatenate([ba, bb]).reshape(1, 2 * D).astype(jnp.float32)
    wc_2 = wc.reshape(1, D).astype(jnp.float32)
    bc_2 = bc.reshape(1, 1).astype(jnp.float32)
    wcls_2 = wcls.astype(jnp.float32)
    bcls_2 = bcls.reshape(1, C).astype(jnp.float32)
    return (w1_m, b1_2, wab_m, bab_2, wc_2, bc_2, wcls_2, bcls_2)


# --------------------------------------------------------------------------
# Jitted forward on a pre-padded bag (n_valid is dynamic -> no recompile per N
# within a bucket)
# --------------------------------------------------------------------------
@functools.partial(jax.jit, static_argnames=("block_n",))
def _toad_forward_padded(n_valid, h_pad, w1_m, b1_2, wab_m, bab_2, wc_2, bc_2,
                         wcls_2, bcls_2, *, block_n):
    n_pad, L = h_pad.shape
    H = w1_m.shape[1]
    D2 = wab_m.shape[1]
    D = D2 // 2
    C = wcls_2.shape[1]
    assert block_n % 8 == 0 and n_pad % block_n == 0
    n_blocks = n_pad // block_n

    nv = jnp.asarray(n_valid, jnp.int32).reshape(1)

    cparams = pltpu.CompilerParams(
        dimension_semantics=("parallel",),       # v7x: both TCs shard row tiles
        vmem_limit_bytes=48 * 1024 * 1024)

    kernel1 = functools.partial(_attn_pool_kernel, block_n=block_n, d_attn=D)
    m_p, l_p, acc_p = pl.pallas_call(
        kernel1,
        out_shape=(jax.ShapeDtypeStruct((n_blocks, 1, 1), jnp.float32),
                   jax.ShapeDtypeStruct((n_blocks, 1, 1), jnp.float32),
                   jax.ShapeDtypeStruct((n_blocks, 1, H), jnp.float32)),
        grid_spec=pltpu.PrefetchScalarGridSpec(
            num_scalar_prefetch=1,
            grid=(n_blocks,),
            in_specs=[
                pl.BlockSpec((block_n, L), lambda i, nv: (i, 0)),   # h tile
                pl.BlockSpec((L, H), lambda i, nv: (0, 0)),         # W1 (resident)
                pl.BlockSpec((1, H), lambda i, nv: (0, 0)),         # b1
                pl.BlockSpec((H, D2), lambda i, nv: (0, 0)),        # Wa||Wb (resident)
                pl.BlockSpec((1, D2), lambda i, nv: (0, 0)),        # ba||bb
                pl.BlockSpec((1, D), lambda i, nv: (0, 0)),         # wc row
                pl.BlockSpec((1, 1), lambda i, nv: (0, 0)),         # bc
            ],
            out_specs=(
                pl.BlockSpec((1, 1, 1), lambda i, nv: (i, 0, 0)),   # m_i
                pl.BlockSpec((1, 1, 1), lambda i, nv: (i, 0, 0)),   # l_i
                pl.BlockSpec((1, 1, H), lambda i, nv: (i, 0, 0)),   # acc_i
            ),
        ),
        compiler_params=cparams,
    )(nv, h_pad, w1_m, b1_2, wab_m, bab_2, wc_2, bc_2)

    # Tiny combine + classifier pass over n_blocks * (H + 2) floats.
    m_p = m_p.reshape(n_blocks, 1)
    l_p = l_p.reshape(n_blocks, 1)
    acc_p = acc_p.reshape(n_blocks, H)

    logits = pl.pallas_call(
        _combine_classify_kernel,
        out_shape=jax.ShapeDtypeStruct((1, C), jnp.float32),
        grid=(1,),
        in_specs=[
            pl.BlockSpec((n_blocks, 1), lambda i: (0, 0)),
            pl.BlockSpec((n_blocks, 1), lambda i: (0, 0)),
            pl.BlockSpec((n_blocks, H), lambda i: (0, 0)),
            pl.BlockSpec((H, C), lambda i: (0, 0)),
            pl.BlockSpec((1, C), lambda i: (0, 0)),
        ],
        out_specs=pl.BlockSpec((1, C), lambda i: (0, 0)),
        compiler_params=pltpu.CompilerParams(
            dimension_semantics=("arbitrary",),
            vmem_limit_bytes=48 * 1024 * 1024),
    )(m_p, l_p, acc_p, wcls_2, bcls_2)

    return logits


# --------------------------------------------------------------------------
# Public wrapper: bucketed padding (done eagerly, outside jit) + forward.
# --------------------------------------------------------------------------
def _bucket_size(n, block_n):
    """Pad row count to power-of-two row-tile buckets to minimize recompiles."""
    return pl.next_power_of_2(max(1, pl.cdiv(n, block_n))) * block_n


def toad_forward(h, prepared_params, *, block_n=512):
    """TOAD_fc_mtl_concat forward (eval mode, default flags).

    h: (N, L) bag of instances (f32 or bf16; bf16 halves the input DMA).
    prepared_params: output of prepare_params(...).
    Returns logits of shape (1, n_classes), f32.
    """
    N = h.shape[0]
    n_pad = _bucket_size(N, block_n)
    if n_pad != N:
        h = jnp.pad(h, ((0, n_pad - N), (0, 0)))
    return _toad_forward_padded(N, h, *prepared_params, block_n=block_n)


# --------------------------------------------------------------------------
# Reference + init helpers
# --------------------------------------------------------------------------
def _reference_forward(h, w1, b1, wa, ba, wb, bb, wc, bc, wcls, bcls):
    hp = jax.lax.Precision.HIGHEST
    h1 = jnp.maximum(jnp.dot(h, w1, precision=hp) + b1, 0.0)
    a = jnp.tanh(jnp.dot(h1, wa, precision=hp) + ba)
    b = jax.nn.sigmoid(jnp.dot(h1, wb, precision=hp) + bb)
    A = jnp.dot(a * b, wc.reshape(-1, 1), precision=hp) + bc        # (N, 1)
    w = jax.nn.softmax(A[:, 0])                                      # (N,)
    M = jnp.dot(w[None, :], h1, precision=hp)                        # (1, H)
    return jnp.dot(M, wcls, precision=hp) + bcls                     # (1, C)


def _init_params(key, L, H, D, n_classes, dtype=jnp.float32):
    """Xavier-normal weights (zero biases), stored pre-transposed (in, out)."""
    ks = jax.random.split(key, 5)

    def xavier(k, fan_in, fan_out):
        std = (2.0 / (fan_in + fan_out)) ** 0.5
        return jax.random.normal(k, (fan_in, fan_out), dtype) * std

    w1 = xavier(ks[0], L, H)
    b1 = jnp.zeros((H,), dtype)
    wa = xavier(ks[1], H, D)
    ba = jnp.zeros((D,), dtype)
    wb = xavier(ks[2], H, D)
    bb = jnp.zeros((D,), dtype)
    wc = xavier(ks[3], D, 1).reshape(D)
    bc = jnp.zeros((1,), dtype)
    wcls = xavier(ks[4], H, n_classes)
    bcls = jnp.zeros((n_classes,), dtype)
    return w1, b1, wa, ba, wb, bb, wc, bc, wcls, bcls


if __name__ == "__main__":
    # Module-default dims ('big'): L=1024, H=512, D=384, n_classes=2.
    # Small bag of N=300 instances; block_n=128 keeps the demo grid small and
    # exercises padding + a fully-padded trailing tile (300 -> bucket 512 rows).
    N, L, H, D, n_classes = 300, 1024, 512, 384, 2

    key = jax.random.PRNGKey(0)
    kh, kp = jax.random.split(key)
    h = jax.random.normal(kh, (N, L), jnp.float32)
    params = _init_params(kp, L, H, D, n_classes)
    logits_ref = _reference_forward(h, *params)

    # f32 matmul path: tight tolerance against the f32 reference.
    prep_f32 = prepare_params(*params, matmul_dtype=jnp.float32)
    logits_f32 = jax.block_until_ready(toad_forward(h, prep_f32, block_n=128))
    assert logits_f32.shape == (1, n_classes)
    assert jnp.all(jnp.isfinite(logits_f32))
    assert jnp.allclose(logits_f32, logits_ref, atol=5e-3, rtol=5e-3), (
        logits_f32, logits_ref)

    # Default bf16 matmul-input path (caller feeds bf16 h -> half the input DMA);
    # h1 / pooling accumulators stay f32 inside the kernel. Looser tolerance.
    prep_bf16 = prepare_params(*params)                    # matmul_dtype=bf16 default
    logits_bf16 = jax.block_until_ready(
        toad_forward(h.astype(jnp.bfloat16), prep_bf16, block_n=128))
    assert jnp.all(jnp.isfinite(logits_bf16))
    assert jnp.allclose(logits_bf16, logits_ref, atol=1e-1, rtol=1e-1), (
        logits_bf16, logits_ref)

    print("KERNEL_OK")
</pallas_src>

<mosaic_0001>
module attributes {stable_mosaic.version = 11 : i64} {
  func.func @_combine_classify_kernel(%arg0: i32, %arg1: memref<4x1xf32, #tpu.memory_space<vmem>>, %arg2: memref<4x1xf32, #tpu.memory_space<vmem>>, %arg3: memref<4x512xf32, #tpu.memory_space<vmem>>, %arg4: memref<512x2xf32, #tpu.memory_space<vmem>>, %arg5: memref<1x2xf32, #tpu.memory_space<vmem>>, %arg6: memref<1x2xf32, #tpu.memory_space<vmem>>) attributes {dimension_semantics = [#tpu.dimension_semantics<arbitrary>], iteration_bounds = array<i64: 1>, scalar_prefetch = 0 : i64, scratch_operands = 0 : i64, tpu.core_type = #tpu.core_type<tc>, window_params = [{pipeline_mode = #tpu.pipeline_mode<synchronous>, transform_indices = @transform_0, window_bounds = array<i64: 4, 1>}, {pipeline_mode = #tpu.pipeline_mode<synchronous>, transform_indices = @transform_1, window_bounds = array<i64: 4, 1>}, {pipeline_mode = #tpu.pipeline_mode<synchronous>, transform_indices = @transform_2, window_bounds = array<i64: 4, 512>}, {pipeline_mode = #tpu.pipeline_mode<synchronous>, transform_indices = @transform_3, window_bounds = array<i64: 512, 2>}, {pipeline_mode = #tpu.pipeline_mode<synchronous>, transform_indices = @transform_4, window_bounds = array<i64: 1, 2>}, {pipeline_mode = #tpu.pipeline_mode<synchronous>, transform_indices = @transform_5, window_bounds = array<i64: 1, 2>}]} {
    %c0 = arith.constant 0 : index
    %c0_0 = arith.constant 0 : index
    %0 = vector.load %arg1[%c0, %c0_0] : memref<4x1xf32, #tpu.memory_space<vmem>>, vector<4x1xf32>
    %c0_1 = arith.constant 0 : index
    %c0_2 = arith.constant 0 : index
    %1 = vector.load %arg2[%c0_1, %c0_2] : memref<4x1xf32, #tpu.memory_space<vmem>>, vector<4x1xf32>
    %c0_3 = arith.constant 0 : index
    %c0_4 = arith.constant 0 : index
    %2 = vector.load %arg3[%c0_3, %c0_4] : memref<4x512xf32, #tpu.memory_space<vmem>>, vector<4x512xf32>
    %cst = arith.constant dense<0xFF800000> : vector<1xf32>
    %3 = vector.multi_reduction <maximumf>, %0, %cst [0] : vector<4x1xf32> to vector<1xf32>
    %4 = vector.shape_cast %3 : vector<1xf32> to vector<1x1xf32>
    %5 = vector.broadcast %4 : vector<1x1xf32> to vector<4x1xf32>
    %6 = arith.subf %0, %5 : vector<4x1xf32>
    %7 = math.exp %6 : vector<4x1xf32>
    %8 = arith.mulf %7, %1 : vector<4x1xf32>
    %cst_5 = arith.constant dense<0.000000e+00> : vector<1xf32>
    %9 = vector.multi_reduction <add>, %8, %cst_5 [0] : vector<4x1xf32> to vector<1xf32>
    %10 = vector.shape_cast %9 : vector<1xf32> to vector<1x1xf32>
    %11 = vector.broadcast %7 : vector<4x1xf32> to vector<4x512xf32>
    %12 = arith.mulf %11, %2 : vector<4x512xf32>
    %cst_6 = arith.constant dense<0.000000e+00> : vector<512xf32>
    %13 = vector.multi_reduction <add>, %12, %cst_6 [0] : vector<4x512xf32> to vector<512xf32>
    %14 = vector.shape_cast %13 : vector<512xf32> to vector<1x512xf32>
    %15 = vector.broadcast %10 : vector<1x1xf32> to vector<1x512xf32>
    %16 = arith.divf %14, %15 : vector<1x512xf32>
    %c0_7 = arith.constant 0 : index
    %c0_8 = arith.constant 0 : index
    %17 = vector.load %arg4[%c0_7, %c0_8] : memref<512x2xf32, #tpu.memory_space<vmem>>, vector<512x2xf32>
    %cst_9 = arith.constant dense<0.000000e+00> : vector<1x2xf32>
    %18 = tpu.matmul %16, %17, %cst_9 {dimension_numbers = #tpu.dot_dimension_numbers<[1], [0], [0], [1], [0, 0, 1, 1], [], []>} : vector<1x512xf32>, vector<512x2xf32>, vector<1x2xf32> -> vector<1x2xf32>
    %c0_10 = arith.constant 0 : index
    %c0_11 = arith.constant 0 : index
    %19 = vector.load %arg5[%c0_10, %c0_11] : memref<1x2xf32, #tpu.memory_space<vmem>>, vector<1x2xf32>
    %20 = arith.addf %18, %19 : vector<1x2xf32>
    %c0_12 = arith.constant 0 : index
    %c0_13 = arith.constant 0 : index
    %21 = vector.load %arg6[%c0_12, %c0_13] : memref<1x2xf32, #tpu.memory_space<vmem>>, vector<1x2xf32>
    tpu.vector_store %arg6[%c0_12, %c0_13], %20 {strides = array<i32>} : memref<1x2xf32, #tpu.memory_space<vmem>>, vector<1x2xf32>,
    return
  }
  func.func @transform_0(%arg0: i32) -> (i32, i32) {
    %c0_i32 = arith.constant 0 : i32
    %c0_i32_0 = arith.constant 0 : i32
    %c0_i32_1 = arith.constant 0 : i32
    return %c0_i32, %c0_i32_0 : i32, i32
  }
  func.func @transform_1(%arg0: i32) -> (i32, i32) {
    %c0_i32 = arith.constant 0 : i32
    %c0_i32_0 = arith.constant 0 : i32
    %c0_i32_1 = arith.constant 0 : i32
    return %c0_i32, %c0_i32_0 : i32, i32
  }
  func.func @transform_2(%arg0: i32) -> (i32, i32) {
    %c0_i32 = arith.constant 0 : i32
    %c0_i32_0 = arith.constant 0 : i32
    %c0_i32_1 = arith.constant 0 : i32
    return %c0_i32, %c0_i32_0 : i32, i32
  }
  func.func @transform_3(%arg0: i32) -> (i32, i32) {
    %c0_i32 = arith.constant 0 : i32
    %c0_i32_0 = arith.constant 0 : i32
    %c0_i32_1 = arith.constant 0 : i32
    return %c0_i32, %c0_i32_0 : i32, i32
  }
  func.func @transform_4(%arg0: i32) -> (i32, i32) {
    %c0_i32 = arith.constant 0 : i32
    %c0_i32_0 = arith.constant 0 : i32
    %c0_i32_1 = arith.constant 0 : i32
    return %c0_i32, %c0_i32_0 : i32, i32
  }
  func.func @transform_5(%arg0: i32) -> (i32, i32) {
    %c0_i32 = arith.constant 0 : i32
    %c0_i32_0 = arith.constant 0 : i32
    %c0_i32_1 = arith.constant 0 : i32
    return %c0_i32, %c0_i32_0 : i32, i32
  }
}

module attributes {stable_mosaic.version = 11 : i64} {
  func.func @_attn_pool_kernel(%arg0: i32, %arg1: memref<1xi32, #tpu.memory_space<smem>>, %arg2: memref<128x1024xf32, #tpu.memory_space<vmem>>, %arg3: memref<1024x512xf32, #tpu.memory_space<vmem>>, %arg4: memref<1x512xf32, #tpu.memory_space<vmem>>, %arg5: memref<512x768xf32, #tpu.memory_space<vmem>>, %arg6: memref<1x768xf32, #tpu.memory_space<vmem>>, %arg7: memref<1x384xf32, #tpu.memory_space<vmem>>, %arg8: memref<1x1xf32, #tpu.memory_space<vmem>>, %arg9: memref<1x1x1xf32, #tpu.memory_space<vmem>>, %arg10: memref<1x1x1xf32, #tpu.memory_space<vmem>>, %arg11: memref<1x1x512xf32, #tpu.memory_space<vmem>>) attributes {dimension_semantics = [#tpu.dimension_semantics<parallel>], iteration_bounds = array<i64: 4>, scalar_prefetch = 1 : i64, scratch_operands = 0 : i64, tpu.core_type = #tpu.core_type<tc>, window_params = [{transform_indices = @transform_0, window_bounds = array<i64: 128, 1024>}, {pipeline_mode = #tpu.pipeline_mode<synchronous>, transform_indices = @transform_1, window_bounds = array<i64: 1024, 512>}, {pipeline_mode = #tpu.pipeline_mode<synchronous>, transform_indices = @transform_2, window_bounds = array<i64: 1, 512>}, {pipeline_mode = #tpu.pipeline_mode<synchronous>, transform_indices = @transform_3, window_bounds = array<i64: 512, 768>}, {pipeline_mode = #tpu.pipeline_mode<synchronous>, transform_indices = @transform_4, window_bounds = array<i64: 1, 768>}, {pipeline_mode = #tpu.pipeline_mode<synchronous>, transform_indices = @transform_5, window_bounds = array<i64: 1, 384>}, {pipeline_mode = #tpu.pipeline_mode<synchronous>, transform_indices = @transform_6, window_bounds = array<i64: 1, 1>}, {transform_indices = @transform_7, window_bounds = array<i64: 1, 1, 1>}, {transform_indices = @transform_8, window_bounds = array<i64: 1, 1, 1>}, {transform_indices = @transform_9, window_bounds = array<i64: 1, 1, 512>}]} {
    %c0 = arith.constant 0 : index
    %c0_0 = arith.constant 0 : index
    %0 = vector.load %arg2[%c0, %c0_0] : memref<128x1024xf32, #tpu.memory_space<vmem>>, vector<128x1024xf32>
    %c0_1 = arith.constant 0 : index
    %c0_2 = arith.constant 0 : index
    %1 = vector.load %arg3[%c0_1, %c0_2] : memref<1024x512xf32, #tpu.memory_space<vmem>>, vector<1024x512xf32>
    %cst = arith.constant dense<0.000000e+00> : vector<128x512xf32>
    %2 = tpu.matmul %0, %1, %cst {dimension_numbers = #tpu.dot_dimension_numbers<[1], [0], [0], [1], [0, 0, 1, 1], [], []>} : vector<128x1024xf32>, vector<1024x512xf32>, vector<128x512xf32> -> vector<128x512xf32>
    %c0_3 = arith.constant 0 : index
    %c0_4 = arith.constant 0 : index
    %3 = vector.load %arg4[%c0_3, %c0_4] : memref<1x512xf32, #tpu.memory_space<vmem>>, vector<1x512xf32>
    %4 = vector.broadcast %3 : vector<1x512xf32> to vector<128x512xf32>
    %5 = arith.addf %2, %4 : vector<128x512xf32>
    %cst_5 = arith.constant 0.000000e+00 : f32
    %6 = vector.broadcast %cst_5 : f32 to vector<128x512xf32>
    %7 = arith.maximumf %5, %6 : vector<128x512xf32>
    %c0_6 = arith.constant 0 : index
    %c0_7 = arith.constant 0 : index
    %8 = vector.load %arg5[%c0_6, %c0_7] : memref<512x768xf32, #tpu.memory_space<vmem>>, vector<512x768xf32>
    %cst_8 = arith.constant dense<0.000000e+00> : vector<128x768xf32>
    %9 = tpu.matmul %7, %8, %cst_8 {dimension_numbers = #tpu.dot_dimension_numbers<[1], [0], [0], [1], [0, 0, 1, 1], [], []>} : vector<128x512xf32>, vector<512x768xf32>, vector<128x768xf32> -> vector<128x768xf32>
    %c0_9 = arith.constant 0 : index
    %c0_10 = arith.constant 0 : index
    %10 = vector.load %arg6[%c0_9, %c0_10] : memref<1x768xf32, #tpu.memory_space<vmem>>, vector<1x768xf32>
    %11 = vector.broadcast %10 : vector<1x768xf32> to vector<128x768xf32>
    %12 = arith.addf %9, %11 : vector<128x768xf32>
    %13 = vector.extract_strided_slice %12 {offsets = [0, 0], sizes = [128, 384], strides = [1, 1]} : vector<128x768xf32> to vector<128x384xf32>
    %14 = math.tanh %13 : vector<128x384xf32>
    %15 = vector.extract_strided_slice %12 {offsets = [0, 384], sizes = [128, 384], strides = [1, 1]} : vector<128x768xf32> to vector<128x384xf32>
    %16 = arith.negf %15 : vector<128x384xf32>
    %17 = math.exp %16 : vector<128x384xf32>
    %cst_11 = arith.constant 1.000000e+00 : f32
    %18 = vector.broadcast %cst_11 : f32 to vector<128x384xf32>
    %19 = arith.addf %18, %17 : vector<128x384xf32>
    %20 = arith.divf %18, %19 : vector<128x384xf32>
    %21 = arith.mulf %14, %20 : vector<128x384xf32>
    %c0_12 = arith.constant 0 : index
    %c0_13 = arith.constant 0 : index
    %22 = vector.load %arg7[%c0_12, %c0_13] : memref<1x384xf32, #tpu.memory_space<vmem>>, vector<1x384xf32>
    %23 = vector.broadcast %22 : vector<1x384xf32> to vector<128x384xf32>
    %24 = arith.mulf %21, %23 : vector<128x384xf32>
    %cst_14 = arith.constant dense<0.000000e+00> : vector<128xf32>
    %25 = vector.multi_reduction <add>, %24, %cst_14 [1] : vector<128x384xf32> to vector<128xf32>
    %26 = vector.shape_cast %25 : vector<128xf32> to vector<128x1xf32>
    %c0_15 = arith.constant 0 : index
    %c0_16 = arith.constant 0 : index
    %27 = vector.load %arg8[%c0_15, %c0_16] : memref<1x1xf32, #tpu.memory_space<vmem>>, vector<1x1xf32>
    %28 = vector.broadcast %27 : vector<1x1xf32> to vector<128x1xf32>
    %29 = arith.addf %26, %28 : vector<128x1xf32>
    %c128_i32 = arith.constant 128 : i32
    %30 = arith.muli %arg0, %c128_i32 : i32
    %31 = tpu.iota {dimensions = array<i32: 0>} : vector<128x1xi32>
    %32 = vector.broadcast %30 : i32 to vector<128x1xi32>
    %33 = arith.addi %32, %31 : vector<128x1xi32>
    %c0_17 = arith.constant 0 : index
    %34 = memref.load %arg1[%c0_17] : memref<1xi32, #tpu.memory_space<smem>>
    %35 = vector.broadcast %34 : i32 to vector<128x1xi32>
    %36 = arith.cmpi slt, %33, %35 : vector<128x1xi32>
    %cst_18 = arith.constant -1.000000e+30 : f32
    %37 = vector.broadcast %cst_18 : f32 to vector<128x1xf32>
    %38 = arith.select %36, %29, %37 : vector<128x1xi1>, vector<128x1xf32>
    %cst_19 = arith.constant dense<0xFF800000> : vector<1xf32>
    %39 = vector.multi_reduction <maximumf>, %38, %cst_19 [0] : vector<128x1xf32> to vector<1xf32>
    %40 = vector.shape_cast %39 : vector<1xf32> to vector<1x1xf32>
    %41 = vector.broadcast %40 : vector<1x1xf32> to vector<128x1xf32>
    %42 = arith.subf %38, %41 : vector<128x1xf32>
    %43 = math.exp %42 : vector<128x1xf32>
    %cst_20 = arith.constant dense<0.000000e+00> : vector<1xf32>
    %44 = vector.multi_reduction <add>, %43, %cst_20 [0] : vector<128x1xf32> to vector<1xf32>
    %45 = vector.shape_cast %44 : vector<1xf32> to vector<1x1xf32>
    %46 = vector.broadcast %43 : vector<128x1xf32> to vector<128x512xf32>
    %47 = arith.mulf %46, %7 : vector<128x512xf32>
    %cst_21 = arith.constant dense<0.000000e+00> : vector<512xf32>
    %48 = vector.multi_reduction <add>, %47, %cst_21 [0] : vector<128x512xf32> to vector<512xf32>
    %49 = vector.shape_cast %48 : vector<512xf32> to vector<1x512xf32>
    %c0_22 = arith.constant 0 : index
    %c0_23 = arith.constant 0 : index
    %c0_24 = arith.constant 0 : index
    %50 = vector.load %arg9[%c0_22, %c0_23, %c0_24] : memref<1x1x1xf32, #tpu.memory_space<vmem>>, vector<1x1x1xf32>
    %51 = vector.shape_cast %50 : vector<1x1x1xf32> to vector<1x1xf32>
    %52 = vector.shape_cast %40 : vector<1x1xf32> to vector<1x1x1xf32>
    tpu.vector_store %arg9[%c0_22, %c0_23, %c0_24], %52 {strides = array<i32>} : memref<1x1x1xf32, #tpu.memory_space<vmem>>, vector<1x1x1xf32>,
    %c0_25 = arith.constant 0 : index
    %c0_26 = arith.constant 0 : index
    %c0_27 = arith.constant 0 : index
    %53 = vector.load %arg10[%c0_25, %c0_26, %c0_27] : memref<1x1x1xf32, #tpu.memory_space<vmem>>, vector<1x1x1xf32>
    %54 = vector.shape_cast %53 : vector<1x1x1xf32> to vector<1x1xf32>
    %55 = vector.shape_cast %45 : vector<1x1xf32> to vector<1x1x1xf32>
    tpu.vector_store %arg10[%c0_25, %c0_26, %c0_27], %55 {strides = array<i32>} : memref<1x1x1xf32, #tpu.memory_space<vmem>>, vector<1x1x1xf32>,
    %c0_28 = arith.constant 0 : index
    %c0_29 = arith.constant 0 : index
    %c0_30 = arith.constant 0 : index
    %56 = vector.load %arg11[%c0_28, %c0_29, %c0_30] : memref<1x1x512xf32, #tpu.memory_space<vmem>>, vector<1x1x512xf32>
    %57 = vector.shape_cast %56 : vector<1x1x512xf32> to vector<1x512xf32>
    %58 = vector.shape_cast %49 : vector<1x512xf32> to vector<1x1x512xf32>
    tpu.vector_store %arg11[%c0_28, %c0_29, %c0_30], %58 {strides = array<i32>} : memref<1x1x512xf32, #tpu.memory_space<vmem>>, vector<1x1x512xf32>,
    return
  }
  func.func @transform_0(%arg0: i32, %arg1: memref<1xi32, #tpu.memory_space<smem>>) -> (i32, i32) {
    %c0_i32 = arith.constant 0 : i32
    %c0_i32_0 = arith.constant 0 : i32
    return %arg0, %c0_i32 : i32, i32
  }
  func.func @transform_1(%arg0: i32, %arg1: memref<1xi32, #tpu.memory_space<smem>>) -> (i32, i32) {
    %c0_i32 = arith.constant 0 : i32
    %c0_i32_0 = arith.constant 0 : i32
    %c0_i32_1 = arith.constant 0 : i32
    return %c0_i32, %c0_i32_0 : i32, i32
  }
  func.func @transform_2(%arg0: i32, %arg1: memref<1xi32, #tpu.memory_space<smem>>) -> (i32, i32) {
    %c0_i32 = arith.constant 0 : i32
    %c0_i32_0 = arith.constant 0 : i32
    %c0_i32_1 = arith.constant 0 : i32
    return %c0_i32, %c0_i32_0 : i32, i32
  }
  func.func @transform_3(%arg0: i32, %arg1: memref<1xi32, #tpu.memory_space<smem>>) -> (i32, i32) {
    %c0_i32 = arith.constant 0 : i32
    %c0_i32_0 = arith.constant 0 : i32
    %c0_i32_1 = arith.constant 0 : i32
    return %c0_i32, %c0_i32_0 : i32, i32
  }
  func.func @transform_4(%arg0: i32, %arg1: memref<1xi32, #tpu.memory_space<smem>>) -> (i32, i32) {
    %c0_i32 = arith.constant 0 : i32
    %c0_i32_0 = arith.constant 0 : i32
    %c0_i32_1 = arith.constant 0 : i32
    return %c0_i32, %c0_i32_0 : i32, i32
  }
  func.func @transform_5(%arg0: i32, %arg1: memref<1xi32, #tpu.memory_space<smem>>) -> (i32, i32) {
    %c0_i32 = arith.constant 0 : i32
    %c0_i32_0 = arith.constant 0 : i32
    %c0_i32_1 = arith.constant 0 : i32
    return %c0_i32, %c0_i32_0 : i32, i32
  }
  func.func @transform_6(%arg0: i32, %arg1: memref<1xi32, #tpu.memory_space<smem>>) -> (i32, i32) {
    %c0_i32 = arith.constant 0 : i32
    %c0_i32_0 = arith.constant 0 : i32
    %c0_i32_1 = arith.constant 0 : i32
    return %c0_i32, %c0_i32_0 : i32, i32
  }
  func.func @transform_7(%arg0: i32, %arg1: memref<1xi32, #tpu.memory_space<smem>>) -> (i32, i32, i32) {
    %c0_i32 = arith.constant 0 : i32
    %c0_i32_0 = arith.constant 0 : i32
    %c0_i32_1 = arith.constant 0 : i32
    return %arg0, %c0_i32, %c0_i32_0 : i32, i32, i32
  }
  func.func @transform_8(%arg0: i32, %arg1: memref<1xi32, #tpu.memory_space<smem>>) -> (i32, i32, i32) {
    %c0_i32 = arith.constant 0 : i32
    %c0_i32_0 = arith.constant 0 : i32
    %c0_i32_1 = arith.constant 0 : i32
    return %arg0, %c0_i32, %c0_i32_0 : i32, i32, i32
  }
  func.func @transform_9(%arg0: i32, %arg1: memref<1xi32, #tpu.memory_space<smem>>) -> (i32, i32, i32) {
    %c0_i32 = arith.constant 0 : i32
    %c0_i32_0 = arith.constant 0 : i32
    %c0_i32_1 = arith.constant 0 : i32
    return %arg0, %c0_i32, %c0_i32_0 : i32, i32, i32
  }
}

</mosaic_0001>

<llo_original>
// kernel: _toad_forward_padded.3
$region0: #{_toad_forward_padded.3}
  #allocation0 [shape = 'u32[]', space=smem, size = 0x4, offset = 0x4, fixed_abs, tag = 'smem constant byte address 0x4 - core index']
  #allocation1 [shape = 'u32[144,128]{1,0:T(1,128)}', space=vmem, size = 0x12000, scoped, tag = 'internal scratch']
  %s0 = inlined_call_operand.vmem [shape: f32[4,1], index: 0, kind: input, shape index: {}]
  %s1 = inlined_call_operand.vmem [shape: f32[4,1], index: 1, kind: input, shape index: {}]
  %s2 = inlined_call_operand.vmem [shape: f32[4,512], index: 2, kind: input, shape index: {}]
  %s3 = inlined_call_operand.vmem [shape: f32[512,2], index: 3, kind: input, shape index: {}]
  %s4 = inlined_call_operand.vmem [shape: f32[1,2], index: 4, kind: input, shape index: {}]
  %s5 = inlined_call_operand.hbm [shape: f32[1,2], index: 5, kind: output, shape index: {}]
  %s6 = sld [smem:[#allocation0]]
  $region30: #{_toad_forward_padded.3} parent=0
    _
  %s8 = ssub.s32 1, %s6
  %s9 = scalar_select 0, %s8, %s6
  $region1: #{_toad_forward_padded.3} parent=0
    #allocation2 [shape = 'u8[512]{0}', space=vmem, size = 0x400, scoped, tag = 'output window, operand 0, single buffered']
    #allocation3 [shape = 's32[1]{0}', space=sflag, size = 0x4, scoped, tag = 'scoped memory for _toad_forward_padded.3']
    %10 = vsyncpa [#allocation3], 0
    // Predicated region
    $region2: #{_toad_forward_padded.3} parent=1 // pred_check
      _
    $region3: #{_toad_forward_padded.3} parent=1 // pred_check_branch
      %12 = sbr.rel (0) target = $region5
    $region4: #{_toad_forward_padded.3} parent=1 // pred_region
      _
    $region5: #{_toad_forward_padded.3} parent=1 // pred_fallthru
      _
    // Predicated region
    $region6: #{_toad_forward_padded.3} parent=1 // pred_check
      _
    $region7: #{_toad_forward_padded.3} parent=1 // pred_check_branch
      %14 = sbr.rel (0) target = $region9
    $region8: #{_toad_forward_padded.3} parent=1 // pred_region
      _
    $region9: #{_toad_forward_padded.3} parent=1 // pred_fallthru
      _
    // Predicated region
    $region10: #{_toad_forward_padded.3} parent=1 // pred_check
      _
    $region11: #{_toad_forward_padded.3} parent=1 // pred_check_branch
      %16 = sbr.rel (0) target = $region13
    $region12: #{_toad_forward_padded.3} parent=1 // pred_region
      _
    $region13: #{_toad_forward_padded.3} parent=1 // pred_fallthru
      _
    // Predicated region
    $region14: #{_toad_forward_padded.3} parent=1 // pred_check
      _
    $region15: #{_toad_forward_padded.3} parent=1 // pred_check_branch
      %18 = sbr.rel (0) target = $region17
    $region16: #{_toad_forward_padded.3} parent=1 // pred_region
      _
    $region17: #{_toad_forward_padded.3} parent=1 // pred_fallthru
      _
    // Predicated region
    $region18: #{_toad_forward_padded.3} parent=1 // pred_check
      _
    $region19: #{_toad_forward_padded.3} parent=1 // pred_check_branch
      %20 = sbr.rel (0) target = $region21
    $region20: #{_toad_forward_padded.3} parent=1 // pred_region
      _
    $region21: #{_toad_forward_padded.3} parent=1 // pred_fallthru
      _
    %v21 = vld [vmem:[%s0] sm:$0xf]
    %v22 = vld [vmem:[%s1] sm:$0xf]
    %v23 = vld [vmem:[%s2] sm:$0xff]
    %v24 = vld [vmem:[%s2 + $0x8] sm:$0xff]
    %vm25 = vcmask 3072
    %v26 = vsel %vm25, %v21, -inf
    %v27 = vrot.slane %v26, 4
    %v28 = vmax.f32 %v26, %v27
    %v29 = vrot.slane %v28, 2
    %v30 = vmax.f32 %v28, %v29
    %v31 = vrot.slane %v30, 1
    %v32 = vmax.f32 %v30, %v31
    %v33 = vsub.f32 %v21, %v32
    %v34 = vmul.f32 %v33, 1.442695
    %v35 = vpow.pop %v34
    %v36 = vmul.f32 %v35, %v22
    %v37 = vsel %vm25, %v36, 0.0
    %v38 = vrot.slane %v37, 4
    %v39 = vadd.f32 %v37, %v38
    %v40 = vrot.slane %v39, 2
    %v41 = vadd.f32 %v39, %v40
    %v42 = vrot.slane %v41, 1
    %v43 = vadd.f32 %v41, %v42
    %45 = vset.pattern.permute.xlu0 0
    %46 = vperm.xlu0 %45, %v35
    %v47 = vpop.permute.xlu0 %46
    %v51 = vcombine.high %v23, %v23
    %v52 = vcombine.high %v24, %v24
    %v55 = vmul.f32 %v47, %v23
    %v56 = vmul.f32 %v47, %v51
    %v57 = vmul.f32 %v47, %v24
    %v58 = vmul.f32 %v47, %v52
    %vm59 = vcmask 1043456
    %v60 = vsel %vm59, %v55, 0.0
    %v61 = vrot.slane %v60, 4
    %v62 = vadd.f32 %v60, %v61
    %v63 = vrot.slane %v62, 2
    %v64 = vadd.f32 %v62, %v63
    %v65 = vrot.slane %v64, 1
    %v66 = vadd.f32 %v64, %v65
    %v67 = vsel %vm59, %v56, 0.0
    %v68 = vrot.slane %v67, 4
    %v69 = vadd.f32 %v67, %v68
    %v70 = vrot.slane %v69, 2
    %v71 = vadd.f32 %v69, %v70
    %v72 = vrot.slane %v71, 1
    %v73 = vadd.f32 %v71, %v72
    %v74 = vsel %vm59, %v57, 0.0
    %v75 = vrot.slane %v74, 4
    %v76 = vadd.f32 %v74, %v75
    %v77 = vrot.slane %v76, 2
    %v78 = vadd.f32 %v76, %v77
    %v79 = vrot.slane %v78, 1
    %v80 = vadd.f32 %v78, %v79
    %v81 = vsel %vm59, %v58, 0.0
    %v82 = vrot.slane %v81, 4
    %v83 = vadd.f32 %v81, %v82
    %v84 = vrot.slane %v83, 2
    %v85 = vadd.f32 %v83, %v84
    %v86 = vrot.slane %v85, 1
    %v87 = vadd.f32 %v85, %v86
    %89 = vset.pattern.permute.xlu0 0
    %90 = vperm.xlu0 %89, %v43
    %v91 = vpop.permute.xlu0 %90
    %v93 = vrcp.pop %v91
    %v94 = vmul.f32 %v66, %v93
    %v95 = vmul.f32 %v73, %v93
    %v96 = vmul.f32 %v80, %v93
    %v97 = vmul.f32 %v87, %v93
    %v98 = vld [vmem:[%s3] sm:$0xff]
    %v99 = vld [vmem:[%s3 + $0x8] sm:$0xff]
    %v100 = vld [vmem:[%s3 + $0x10] sm:$0xff]
    %v101 = vld [vmem:[%s3 + $0x18] sm:$0xff]
    %v102 = vld [vmem:[%s3 + $0x20] sm:$0xff]
    %v103 = vld [vmem:[%s3 + $0x28] sm:$0xff]
    %v104 = vld [vmem:[%s3 + $0x30] sm:$0xff]
    %v105 = vld [vmem:[%s3 + $0x38] sm:$0xff]
    %v106 = vld [vmem:[%s3 + $0x40] sm:$0xff]
    %v107 = vld [vmem:[%s3 + $0x48] sm:$0xff]
    %v108 = vld [vmem:[%s3 + $0x50] sm:$0xff]
    %v109 = vld [vmem:[%s3 + $0x58] sm:$0xff]
    %v110 = vld [vmem:[%s3 + $0x60] sm:$0xff]
    %v111 = vld [vmem:[%s3 + $0x68] sm:$0xff]
    %v112 = vld [vmem:[%s3 + $0x70] sm:$0xff]
    %v113 = vld [vmem:[%s3 + $0x78] sm:$0xff]
    %v114 = vld [vmem:[%s3 + $0x80] sm:$0xff]
    %v115 = vld [vmem:[%s3 + $0x88] sm:$0xff]
    %v116 = vld [vmem:[%s3 + $0x90] sm:$0xff]
    %v117 = vld [vmem:[%s3 + $0x98] sm:$0xff]
    %v118 = vld [vmem:[%s3 + $0xa0] sm:$0xff]
    %v119 = vld [vmem:[%s3 + $0xa8] sm:$0xff]
    %v120 = vld [vmem:[%s3 + $0xb0] sm:$0xff]
    %v121 = vld [vmem:[%s3 + $0xb8] sm:$0xff]
    %v122 = vld [vmem:[%s3 + $0xc0] sm:$0xff]
    %v123 = vld [vmem:[%s3 + $0xc8] sm:$0xff]
    %v124 = vld [vmem:[%s3 + $0xd0] sm:$0xff]
    %v125 = vld [vmem:[%s3 + $0xd8] sm:$0xff]
    %v126 = vld [vmem:[%s3 + $0xe0] sm:$0xff]
    %v127 = vld [vmem:[%s3 + $0xe8] sm:$0xff]
    %v128 = vld [vmem:[%s3 + $0xf0] sm:$0xff]
    %v129 = vld [vmem:[%s3 + $0xf8] sm:$0xff]
    %v130 = vld [vmem:[%s3 + $0x100] sm:$0xff]
    %v131 = vld [vmem:[%s3 + $0x108] sm:$0xff]
    %v132 = vld [vmem:[%s3 + $0x110] sm:$0xff]
    %v133 = vld [vmem:[%s3 + $0x118] sm:$0xff]
    %v134 = vld [vmem:[%s3 + $0x120] sm:$0xff]
    %v135 = vld [vmem:[%s3 + $0x128] sm:$0xff]
    %v136 = vld [vmem:[%s3 + $0x130] sm:$0xff]
    %v137 = vld [vmem:[%s3 + $0x138] sm:$0xff]
    %v138 = vld [vmem:[%s3 + $0x140] sm:$0xff]
    %v139 = vld [vmem:[%s3 + $0x148] sm:$0xff]
    %v140 = vld [vmem:[%s3 + $0x150] sm:$0xff]
    %v141 = vld [vmem:[%s3 + $0x158] sm:$0xff]
    %v142 = vld [vmem:[%s3 + $0x160] sm:$0xff]
    %v143 = vld [vmem:[%s3 + $0x168] sm:$0xff]
    %v144 = vld [vmem:[%s3 + $0x170] sm:$0xff]
    %v145 = vld [vmem:[%s3 + $0x178] sm:$0xff]
    %v146 = vld [vmem:[%s3 + $0x180] sm:$0xff]
    %v147 = vld [vmem:[%s3 + $0x188] sm:$0xff]
    %v148 = vld [vmem:[%s3 + $0x190] sm:$0xff]
    %v149 = vld [vmem:[%s3 + $0x198] sm:$0xff]
    %v150 = vld [vmem:[%s3 + $0x1a0] sm:$0xff]
    %v151 = vld [vmem:[%s3 + $0x1a8] sm:$0xff]
    %v152 = vld [vmem:[%s3 + $0x1b0] sm:$0xff]
    %v153 = vld [vmem:[%s3 + $0x1b8] sm:$0xff]
    %v154 = vld [vmem:[%s3 + $0x1c0] sm:$0xff]
    %v155 = vld [vmem:[%s3 + $0x1c8] sm:$0xff]
    %v156 = vld [vmem:[%s3 + $0x1d0] sm:$0xff]
    %v157 = vld [vmem:[%s3 + $0x1d8] sm:$0xff]
    %v158 = vld [vmem:[%s3 + $0x1e0] sm:$0xff]
    %v159 = vld [vmem:[%s3 + $0x1e8] sm:$0xff]
    %v160 = vld [vmem:[%s3 + $0x1f0] sm:$0xff]
    %v161 = vld [vmem:[%s3 + $0x1f8] sm:$0xff]
    %v162 = vld [vmem:[%s4] sm:$0x1]
    %163 = vmatprep.subr.mxu0 0.0
    %164 = vmatpush1.msra.mxu0 %v98
    %165 = vmatprep.subr.mxu0 0.0
    %166 = vmatpush1.msra.mxu0 %v99
    %167 = vmatprep.subr.mxu0 0.0
    %168 = vmatpush1.msra.mxu0 %v100
    %169 = vmatprep.subr.mxu0 0.0
    %170 = vmatpush1.msra.mxu0 %v101
    %171 = vmatprep.subr.mxu0 0.0
    %172 = vmatpush1.msra.mxu0 %v102
    %173 = vmatprep.subr.mxu0 0.0
    %174 = vmatpush1.msra.mxu0 %v103
    %175 = vmatprep.subr.mxu0 0.0
    %176 = vmatpush1.msra.mxu0 %v104
    %177 = vmatprep.subr.mxu0 0.0
    %178 = vmatpush1.msra.mxu0 %v105
    %179 = vmatprep.subr.mxu0 0.0
    %180 = vmatpush1.msra.mxu0 %v106
    %181 = vmatprep.subr.mxu0 0.0
    %182 = vmatpush1.msra.mxu0 %v107
    %183 = vmatprep.subr.mxu0 0.0
    %184 = vmatpush1.msra.mxu0 %v108
    %185 = vmatprep.subr.mxu0 0.0
    %186 = vmatpush1.msra.mxu0 %v109
    %187 = vmatprep.subr.mxu0 0.0
    %188 = vmatpush1.msra.mxu0 %v110
    %189 = vmatprep.subr.mxu0 0.0
    %190 = vmatpush1.msra.mxu0 %v111
    %191 = vmatprep.subr.mxu0 0.0
    %192 = vmatpush1.msra.mxu0 %v112
    %193 = vmatprep.subr.mxu0 0.0
    %194 = vmatpush1.msra.mxu0 %v113
    %195 = vmatprep.subr.mxu0 0.0
    %196 = vmatpush1.msra.mxu0 %v114
    %197 = vmatprep.subr.mxu0 0.0
    %198 = vmatpush1.msra.mxu0 %v115
    %199 = vmatprep.subr.mxu0 0.0
    %200 = vmatpush1.msra.mxu0 %v116
    %201 = vmatprep.subr.mxu0 0.0
    %202 = vmatpush1.msra.mxu0 %v117
    %203 = vmatprep.subr.mxu0 0.0
    %204 = vmatpush1.msra.mxu0 %v118
    %205 = vmatprep.subr.mxu0 0.0
    %206 = vmatpush1.msra.mxu0 %v119
    %207 = vmatprep.subr.mxu0 0.0
    %208 = vmatpush1.msra.mxu0 %v120
    %209 = vmatprep.subr.mxu0 0.0
    %210 = vmatpush1.msra.mxu0 %v121
    %211 = vmatprep.subr.mxu0 0.0
    %212 = vmatpush1.msra.mxu0 %v122
    %213 = vmatprep.subr.mxu0 0.0
    %214 = vmatpush1.msra.mxu0 %v123
    %215 = vmatprep.subr.mxu0 0.0
    %216 = vmatpush1.msra.mxu0 %v124
    %217 = vmatprep.subr.mxu0 0.0
    %218 = vmatpush1.msra.mxu0 %v125
    %219 = vmatprep.subr.mxu0 0.0
    %220 = vmatpush1.msra.mxu0 %v126
    %221 = vmatprep.subr.mxu0 0.0
    %222 = vmatpush1.msra.mxu0 %v127
    %223 = vmatprep.subr.mxu0 0.0
    %224 = vmatpush1.msra.mxu0 %v128
    %225 = vmatprep.subr.mxu0 0.0
    %226 = vmatpush1.msra.mxu0 %v129
    %227 = vmatprep.mubr.f32.mxu0 %v95
    %228 = vmatmul.mubr.f32.gmra.mrb[0].mxu0 %v94
    %v229 = vpop.f32.mrb[0].mxu0
    %v230 = vadd.f32 %v162, %v229
    %v231 = vpop.f32.mrb[0].mxu0
    %232 = vdwg.mxu0
    %233 = vmatprep.subr.mxu0 0.0
    %234 = vmatpush1.msra.mxu0 %v130
    %235 = vmatprep.subr.mxu0 0.0
    %236 = vmatpush1.msra.mxu0 %v131
    %237 = vmatprep.subr.mxu0 0.0
    %238 = vmatpush1.msra.mxu0 %v132
    %239 = vmatprep.subr.mxu0 0.0
    %240 = vmatpush1.msra.mxu0 %v133
    %241 = vmatprep.subr.mxu0 0.0
    %242 = vmatpush1.msra.mxu0 %v134
    %243 = vmatprep.subr.mxu0 0.0
    %244 = vmatpush1.msra.mxu0 %v135
    %245 = vmatprep.subr.mxu0 0.0
    %246 = vmatpush1.msra.mxu0 %v136
    %247 = vmatprep.subr.mxu0 0.0
    %248 = vmatpush1.msra.mxu0 %v137
    %249 = vmatprep.subr.mxu0 0.0
    %250 = vmatpush1.msra.mxu0 %v138
    %251 = vmatprep.subr.mxu0 0.0
    %252 = vmatpush1.msra.mxu0 %v139
    %253 = vmatprep.subr.mxu0 0.0
    %254 = vmatpush1.msra.mxu0 %v140
    %255 = vmatprep.subr.mxu0 0.0
    %256 = vmatpush1.msra.mxu0 %v141
    %257 = vmatprep.subr.mxu0 0.0
    %258 = vmatpush1.msra.mxu0 %v142
    %259 = vmatprep.subr.mxu0 0.0
    %260 = vmatpush1.msra.mxu0 %v143
    %261 = vmatprep.subr.mxu0 0.0
    %262 = vmatpush1.msra.mxu0 %v144
    %263 = vmatprep.subr.mxu0 0.0
    %264 = vmatpush1.msra.mxu0 %v145
    %265 = vmatprep.subr.mxu0 0.0
    %266 = vmatpush1.msra.mxu0 %v146
    %267 = vmatprep.subr.mxu0 0.0
    %268 = vmatpush1.msra.mxu0 %v147
    %269 = vmatprep.subr.mxu0 0.0
    %270 = vmatpush1.msra.mxu0 %v148
    %271 = vmatprep.subr.mxu0 0.0
    %272 = vmatpush1.msra.mxu0 %v149
    %273 = vmatprep.subr.mxu0 0.0
    %274 = vmatpush1.msra.mxu0 %v150
    %275 = vmatprep.subr.mxu0 0.0
    %276 = vmatpush1.msra.mxu0 %v151
    %277 = vmatprep.subr.mxu0 0.0
    %278 = vmatpush1.msra.mxu0 %v152
    %279 = vmatprep.subr.mxu0 0.0
    %280 = vmatpush1.msra.mxu0 %v153
    %281 = vmatprep.subr.mxu0 0.0
    %282 = vmatpush1.msra.mxu0 %v154
    %283 = vmatprep.subr.mxu0 0.0
    %284 = vmatpush1.msra.mxu0 %v155
    %285 = vmatprep.subr.mxu0 0.0
    %286 = vmatpush1.msra.mxu0 %v156
    %287 = vmatprep.subr.mxu0 0.0
    %288 = vmatpush1.msra.mxu0 %v157
    %289 = vmatprep.subr.mxu0 0.0
    %290 = vmatpush1.msra.mxu0 %v158
    %291 = vmatprep.subr.mxu0 0.0
    %292 = vmatpush1.msra.mxu0 %v159
    %293 = vmatprep.subr.mxu0 0.0
    %294 = vmatpush1.msra.mxu0 %v160
    %295 = vmatprep.subr.mxu0 0.0
    %296 = vmatpush1.msra.mxu0 %v161
    %297 = vmatprep.mubr.f32.mxu0 %v97
    %298 = vmatmul.mubr.f32.gmra.mrb[0].mxu0 %v96
    %v299 = vpop.f32.mrb[0].mxu0
    %v300 = vadd.f32 %v230, %v299
    %v301 = vpop.f32.mrb[0].mxu0
    %302 = vdwg.mxu0
    %vm303 = vcmask 8192
    %304 = vst.msk [vmem:[#allocation2] sm:$0x1] %vm303, %v300
    // Predicated region
    $region22: #{_toad_forward_padded.3} parent=1 // pred_check
      _
    $region23: #{_toad_forward_padded.3} parent=1 // pred_check_branch
      %306 = sbr.rel (0) target = $region25
    $region24: #{_toad_forward_padded.3} parent=1 // pred_region
      %s308 = ssub.s32 16, 16
      %309 = vsyncadd [#allocation3], %s308
      %s311 = sshll.u32 [#allocation2], 4
      %s312 = int_to_ptr.vmem [resolvable:$true] %s311
      %314 = dma.vmem_to_hbm [thread:$0]  %s312, 16, %s5, [#allocation3]
    $region25: #{_toad_forward_padded.3} parent=1 // pred_fallthru
      _
    // Predicated region
    $region26: #{_toad_forward_padded.3} parent=1 // pred_check
      _
    $region27: #{_toad_forward_padded.3} parent=1 // pred_check_branch
      %316 = sbr.rel (0) target = $region29
    $region28: #{_toad_forward_padded.3} parent=1 // pred_region
      %317 = dma.done [#allocation3], 16
    $region29: #{_toad_forward_padded.3} parent=1 // pred_fallthru
      _
    %318 = vsyncpa [#allocation3], 1

// kernel: _toad_forward_padded.2
$region0: #{_toad_forward_padded.2}
  #allocation0 [shape = 'u32[]', space=smem, size = 0x4, offset = 0x4, fixed_abs, tag = 'smem constant byte address 0x4 - core index']
  #allocation1 [shape = 'u32[144,128]{1,0:T(1,128)}', space=vmem, size = 0x12000, scoped, tag = 'internal scratch']
  #allocation2 [shape = 's32[1]{0}', space=sflag, size = 0x4, scoped, tag = 'scoped memory for _toad_forward_padded.2']
  #allocation3 [shape = 's32[1]{0:T(128)S(6)}', space=smem, size = 0x200, scoped, tag = 'prefetched SMEM operand 0']
  #allocation4 [shape = 'f32[1,1]{1,0:T(1,128)S(1)}', space=vmem, size = 0x200, scoped, tag = 'scoped memory for _toad_forward_padded.2']
  %s0 = inlined_call_operand.<no memory space> [shape: s32[1], index: 0, kind: input, shape index: {}]
  %s1 = inlined_call_operand.hbm [shape: f32[512,1024], index: 1, kind: input, shape index: {}]
  %s2 = inlined_call_operand.hbm [shape: f32[1024,512], index: 2, kind: input, shape index: {}]
  %s3 = inlined_call_operand.hbm [shape: f32[1,512], index: 3, kind: input, shape index: {}]
  %s4 = inlined_call_operand.hbm [shape: f32[512,768], index: 4, kind: input, shape index: {}]
  %s5 = inlined_call_operand.hbm [shape: f32[1,768], index: 5, kind: input, shape index: {}]
  %s6 = inlined_call_operand.hbm [shape: f32[1,384], index: 6, kind: input, shape index: {}]
  %s7 = inlined_call_operand.<no memory space> [shape: f32[1,1], index: 7, kind: input, shape index: {}]
  %s8 = inlined_call_operand.vmem [shape: f32[4,1,1], index: 8, kind: output, shape index: {0}]
  %s9 = inlined_call_operand.vmem [shape: f32[4,1,1], index: 9, kind: output, shape index: {1}]
  %s10 = inlined_call_operand.vmem [shape: f32[4,1,512], index: 10, kind: output, shape index: {2}]
  %11 = xla_tuple %s8, %s9, %s10
  %s12 = sld [smem:[#allocation0]]
  $region101: #{_toad_forward_padded.2} parent=0
    _
  %s14 = ssub.s32 1, %s12
  %s15 = scalar_select 0, %s14, %s12
  %16 = sst [smem:[#allocation3]] %s0
  %v17 = vstv %s7
  %18 = vst [vmem:[#allocation4] sm:$0x1] %v17
  $region1: #{_toad_forward_padded.2} parent=0
    #allocation5 [shape = 'u8[1048576]{0}', space=vmem, size = 0x100000, scoped, tag = 'input window, operand 1']
    #allocation6 [shape = 's32[2]{0}', space=sflag, size = 0x8, scoped, tag = 'scoped memory for _toad_forward_padded.2']
    #allocation7 [shape = 'u8[2097152]{0}', space=vmem, size = 0x200000, scoped, tag = 'input window, operand 2, single buffered']
    #allocation8 [shape = 's32[1]{0}', space=sflag, size = 0x4, scoped, tag = 'scoped memory for _toad_forward_padded.2']
    #allocation9 [shape = 'u8[2048]{0}', space=vmem, size = 0x800, scoped, tag = 'input window, operand 3, single buffered']
    #allocation10 [shape = 'u8[1572864]{0}', space=vmem, size = 0x180000, scoped, tag = 'input window, operand 4, single buffered']
    #allocation11 [shape = 's32[1]{0}', space=sflag, size = 0x4, scoped, tag = 'scoped memory for _toad_forward_padded.2']
    #allocation12 [shape = 'u8[3072]{0}', space=vmem, size = 0xc00, scoped, tag = 'input window, operand 5, single buffered']
    #allocation13 [shape = 'u8[1536]{0}', space=vmem, size = 0x800, scoped, tag = 'input window, operand 6, single buffered']
    #allocation14 [shape = 's32[1]{0}', space=sflag, size = 0x4, scoped, tag = 'scoped memory for _toad_forward_padded.2']
    %19 = vsyncpa [#allocation6], 0
    %s20 = scalar_lea.sflag [#allocation6], 1
    %21 = vsyncpa %s20, 0
    %22 = vsyncpa [#allocation8], 0
    %23 = vsyncpa [#allocation11], 0
    %24 = vsyncpa [#allocation14], 0
    loop: start=0, step=1, limit=6
    $region2: #{_toad_forward_padded.2} parent=1 // loop_pre_header
      _
    $region3: #{_toad_forward_padded.2} parent=1 // loop_header
      %s26 = sphi 0, %s30
      %p27 = scmp.ge.s32.totalorder %s26, 6
      %s36 = sphi 0, %s38
      %s39 = sphi 0, %s36
      %s40 = sphi 0, %s39
      %s56 = sphi 0, %s40
      %s60 = sphi 0, %s60
      %s62 = sphi 0, %s60
      %s63 = sphi 0, %s62
      %s77 = sphi 0, %s63
      %s81 = sphi 0, %s81
      %s83 = sphi 0, %s81
      %s84 = sphi 0, %s83
      %s98 = sphi 0, %s84
      %s102 = sphi 0, %s102
      %s104 = sphi 0, %s102
      %s105 = sphi 0, %s104
      %s119 = sphi 0, %s105
      %s123 = sphi 0, %s123
      %s125 = sphi 0, %s123
      %s126 = sphi 0, %s125
      %s140 = sphi 0, %s126
      %s144 = sphi 0, %s144
      %s146 = sphi 0, %s144
      %s147 = sphi 0, %s146
      %s161 = sphi 0, %s147
      %s165 = sphi 0, %s165
      %s167 = sphi 0, %s165
      %s168 = sphi 0, %s167
      %s182 = sphi 0, %s168
      %s188 = sphi 0, %s190
      %s191 = sphi 0, %s188
      %s192 = sphi 0, %s191
      %s208 = sphi 0, %s192
      %s214 = sphi 0, %s216
      %s217 = sphi 0, %s214
      %s218 = sphi 0, %s217
      %s234 = sphi 0, %s218
      %s240 = sphi 0, %s242
      %s243 = sphi 0, %s240
      %s244 = sphi 0, %s243
      %s260 = sphi 0, %s244
    $region4: #{_toad_forward_padded.2} parent=1 // loop_header_branch
      %29 = sbr.rel (%p27) target = $region8
    $region5: #{_toad_forward_padded.2} parent=1 // loop_body
      %s31 = ssub.s32 %s26, 1
      %s32 = ssub.s32 %s26, 2
      %s33 = sadd.s32 %s26, 1
      %s34 = ssub.s32 %s26, %s33
      %p35 = scmp.eq.s32.totalorder %s34, 0
      %s37 = sadd.s32 %s36, 1
      %s38 = scalar_select %p35, %s36, %s37
      %p41 = pneg %p35
      %p42 = scmp.eq.s32.totalorder %s26, 3
      %p43 = por %p41, %p42
      %p44 = scmp.ne.s32.totalorder %s36, %s39
      %p45 = scmp.eq.s32.totalorder %s26, 0
      %p46 = por %p44, %p45
      %p47 = scmp.ne.s32.totalorder %s36, %s39
      %p48 = scmp.eq.s32.totalorder %s31, 3
      %p49 = por %p47, %p48
      %p50 = scmp.ne.s32.totalorder %s39, %s40
      %p51 = scmp.eq.s32.totalorder %s31, 0
      %p52 = por %p50, %p51
      %p53 = scmp.ne.s32.totalorder %s39, %s40
      %p54 = scmp.eq.s32.totalorder %s32, 3
      %p55 = por %p53, %p54
      %p57 = scmp.ne.s32.totalorder %s40, %s56
      %p58 = scmp.eq.s32.totalorder %s32, 0
      %p59 = por %p57, %p58
      %s61 = sadd.s32 %s60, 1
      %p64 = scmp.eq.s32.totalorder %s26, 3
      %p65 = scmp.ne.s32.totalorder %s60, %s62
      %p66 = scmp.eq.s32.totalorder %s26, 0
      %p67 = por %p65, %p66
      %p68 = scmp.ne.s32.totalorder %s60, %s62
      %p69 = scmp.eq.s32.totalorder %s31, 3
      %p70 = por %p68, %p69
      %p71 = scmp.ne.s32.totalorder %s62, %s63
      %p72 = scmp.eq.s32.totalorder %s31, 0
      %p73 = por %p71, %p72
      %p74 = scmp.ne.s32.totalorder %s62, %s63
      %p75 = scmp.eq.s32.totalorder %s32, 3
      %p76 = por %p74, %p75
      %p78 = scmp.ne.s32.totalorder %s63, %s77
      %p79 = scmp.eq.s32.totalorder %s32, 0
      %p80 = por %p78, %p79
      %s82 = sadd.s32 %s81, 1
      %p85 = scmp.eq.s32.totalorder %s26, 3
      %p86 = scmp.ne.s32.totalorder %s81, %s83
      %p87 = scmp.eq.s32.totalorder %s26, 0
      %p88 = por %p86, %p87
      %p89 = scmp.ne.s32.totalorder %s81, %s83
      %p90 = scmp.eq.s32.totalorder %s31, 3
      %p91 = por %p89, %p90
      %p92 = scmp.ne.s32.totalorder %s83, %s84
      %p93 = scmp.eq.s32.totalorder %s31, 0
      %p94 = por %p92, %p93
      %p95 = scmp.ne.s32.totalorder %s83, %s84
      %p96 = scmp.eq.s32.totalorder %s32, 3
      %p97 = por %p95, %p96
      %p99 = scmp.ne.s32.totalorder %s84, %s98
      %p100 = scmp.eq.s32.totalorder %s32, 0
      %p101 = por %p99, %p100
      %s103 = sadd.s32 %s102, 1
      %p106 = scmp.eq.s32.totalorder %s26, 3
      %p107 = scmp.ne.s32.totalorder %s102, %s104
      %p108 = scmp.eq.s32.totalorder %s26, 0
      %p109 = por %p107, %p108
      %p110 = scmp.ne.s32.totalorder %s102, %s104
      %p111 = scmp.eq.s32.totalorder %s31, 3
      %p112 = por %p110, %p111
      %p113 = scmp.ne.s32.totalorder %s104, %s105
      %p114 = scmp.eq.s32.totalorder %s31, 0
      %p115 = por %p113, %p114
      %p116 = scmp.ne.s32.totalorder %s104, %s105
      %p117 = scmp.eq.s32.totalorder %s32, 3
      %p118 = por %p116, %p117
      %p120 = scmp.ne.s32.totalorder %s105, %s119
      %p121 = scmp.eq.s32.totalorder %s32, 0
      %p122 = por %p120, %p121
      %s124 = sadd.s32 %s123, 1
      %p127 = scmp.eq.s32.totalorder %s26, 3
      %p128 = scmp.ne.s32.totalorder %s123, %s125
      %p129 = scmp.eq.s32.totalorder %s26, 0
      %p130 = por %p128, %p129
      %p131 = scmp.ne.s32.totalorder %s123, %s125
      %p132 = scmp.eq.s32.totalorder %s31, 3
      %p133 = por %p131, %p132
      %p134 = scmp.ne.s32.totalorder %s125, %s126
      %p135 = scmp.eq.s32.totalorder %s31, 0
      %p136 = por %p134, %p135
      %p137 = scmp.ne.s32.totalorder %s125, %s126
      %p138 = scmp.eq.s32.totalorder %s32, 3
      %p139 = por %p137, %p138
      %p141 = scmp.ne.s32.totalorder %s126, %s140
      %p142 = scmp.eq.s32.totalorder %s32, 0
      %p143 = por %p141, %p142
      %s145 = sadd.s32 %s144, 1
      %p148 = scmp.eq.s32.totalorder %s26, 3
      %p149 = scmp.ne.s32.totalorder %s144, %s146
      %p150 = scmp.eq.s32.totalorder %s26, 0
      %p151 = por %p149, %p150
      %p152 = scmp.ne.s32.totalorder %s144, %s146
      %p153 = scmp.eq.s32.totalorder %s31, 3
      %p154 = por %p152, %p153
      %p155 = scmp.ne.s32.totalorder %s146, %s147
      %p156 = scmp.eq.s32.totalorder %s31, 0
      %p157 = por %p155, %p156
      %p158 = scmp.ne.s32.totalorder %s146, %s147
      %p159 = scmp.eq.s32.totalorder %s32, 3
      %p160 = por %p158, %p159
      %p162 = scmp.ne.s32.totalorder %s147, %s161
      %p163 = scmp.eq.s32.totalorder %s32, 0
      %p164 = por %p162, %p163
      %s166 = sadd.s32 %s165, 1
      %p169 = scmp.eq.s32.totalorder %s26, 3
      %p170 = scmp.ne.s32.totalorder %s165, %s167
      %p171 = scmp.eq.s32.totalorder %s26, 0
      %p172 = por %p170, %p171
      %p173 = scmp.ne.s32.totalorder %s165, %s167
      %p174 = scmp.eq.s32.totalorder %s31, 3
      %p175 = por %p173, %p174
      %p176 = scmp.ne.s32.totalorder %s167, %s168
      %p177 = scmp.eq.s32.totalorder %s31, 0
      %p178 = por %p176, %p177
      %p179 = scmp.ne.s32.totalorder %s167, %s168
      %p180 = scmp.eq.s32.totalorder %s32, 3
      %p181 = por %p179, %p180
      %p183 = scmp.ne.s32.totalorder %s168, %s182
      %p184 = scmp.eq.s32.totalorder %s32, 0
      %p185 = por %p183, %p184
      %s186 = ssub.s32 %s26, %s33
      %p187 = scmp.eq.s32.totalorder %s186, 0
      %s189 = sadd.s32 %s188, 1
      %s190 = scalar_select %p187, %s188, %s189
      %p193 = pneg %p187
      %p194 = scmp.eq.s32.totalorder %s26, 3
      %p195 = por %p193, %p194
      %p196 = scmp.ne.s32.totalorder %s188, %s191
      %p197 = scmp.eq.s32.totalorder %s26, 0
      %p198 = por %p196, %p197
      %p199 = scmp.ne.s32.totalorder %s188, %s191
      %p200 = scmp.eq.s32.totalorder %s31, 3
      %p201 = por %p199, %p200
      %p202 = scmp.ne.s32.totalorder %s191, %s192
      %p203 = scmp.eq.s32.totalorder %s31, 0
      %p204 = por %p202, %p203
      %p205 = scmp.ne.s32.totalorder %s191, %s192
      %p206 = scmp.eq.s32.totalorder %s32, 3
      %p207 = por %p205, %p206
      %p209 = scmp.ne.s32.totalorder %s192, %s208
      %p210 = scmp.eq.s32.totalorder %s32, 0
      %p211 = por %p209, %p210
      %s212 = ssub.s32 %s26, %s33
      %p213 = scmp.eq.s32.totalorder %s212, 0
      %s215 = sadd.s32 %s214, 1
      %s216 = scalar_select %p213, %s214, %s215
      %p219 = pneg %p213
      %p220 = scmp.eq.s32.totalorder %s26, 3
      %p221 = por %p219, %p220
      %p222 = scmp.ne.s32.totalorder %s214, %s217
      %p223 = scmp.eq.s32.totalorder %s26, 0
      %p224 = por %p222, %p223
      %p225 = scmp.ne.s32.totalorder %s214, %s217
      %p226 = scmp.eq.s32.totalorder %s31, 3
      %p227 = por %p225, %p226
      %p228 = scmp.ne.s32.totalorder %s217, %s218
      %p229 = scmp.eq.s32.totalorder %s31, 0
      %p230 = por %p228, %p229
      %p231 = scmp.ne.s32.totalorder %s217, %s218
      %p232 = scmp.eq.s32.totalorder %s32, 3
      %p233 = por %p231, %p232
      %p235 = scmp.ne.s32.totalorder %s218, %s234
      %p236 = scmp.eq.s32.totalorder %s32, 0
      %p237 = por %p235, %p236
      %s238 = ssub.s32 %s26, %s33
      %p239 = scmp.eq.s32.totalorder %s238, 0
      %s241 = sadd.s32 %s240, 1
      %s242 = scalar_select %p239, %s240, %s241
      %p245 = pneg %p239
      %p246 = scmp.eq.s32.totalorder %s26, 3
      %p247 = por %p245, %p246
      %p248 = scmp.ne.s32.totalorder %s240, %s243
      %p249 = scmp.eq.s32.totalorder %s26, 0
      %p250 = por %p248, %p249
      %p251 = scmp.ne.s32.totalorder %s240, %s243
      %p252 = scmp.eq.s32.totalorder %s31, 3
      %p253 = por %p251, %p252
      %p254 = scmp.ne.s32.totalorder %s243, %s244
      %p255 = scmp.eq.s32.totalorder %s31, 0
      %p256 = por %p254, %p255
      %p257 = scmp.ne.s32.totalorder %s243, %s244
      %p258 = scmp.eq.s32.totalorder %s32, 3
      %p259 = por %p257, %p258
      %p261 = scmp.ne.s32.totalorder %s244, %s260
      %p262 = scmp.eq.s32.totalorder %s32, 0
      %p263 = por %p261, %p262
      %p264 = scmp.le.s32.totalorder 1, %s26
      %p265 = scmp.lt.s32.totalorder %s26, 5
      %p266 = pnand %p264, %p265
      %p267 = pneg %p266
      // Predicated region
      $region9: #{_toad_forward_padded.2} parent=5 // pred_check
        _
      $region10: #{_toad_forward_padded.2} parent=5 // pred_check_branch
        %269 = sbr.rel (%p266) target = $region12
      $region11: #{_toad_forward_padded.2} parent=5 // pred_region
        %s270 = ssub.s32 %s26, 1
        // Predicated region
        $region13: #{_toad_forward_padded.2} parent=11 // pred_check
          %p271 = pneg %p73
        $region14: #{_toad_forward_padded.2} parent=11 // pred_check_branch
          %273 = sbr.rel (%p271) target = $region16
        $region15: #{_toad_forward_padded.2} parent=11 // pred_region
          %s275 = ssub.s32 65536, 65536
          %276 = vsyncadd [#allocation8], %s275
          %s277 = sshll.u32 [#allocation7], 4
          %s278 = int_to_ptr.vmem [resolvable:$true] %s277
          %283 = dma.hbm_to_vmem [thread:$0]  %s2, 65536, %s278, [#allocation8], 512, 512, 32
        $region16: #{_toad_forward_padded.2} parent=11 // pred_fallthru
          _
        // Predicated region
        $region17: #{_toad_forward_padded.2} parent=11 // pred_check
          %p284 = pneg %p94
        $region18: #{_toad_forward_padded.2} parent=11 // pred_check_branch
          %286 = sbr.rel (%p284) target = $region20
        $region19: #{_toad_forward_padded.2} parent=11 // pred_region
          %s288 = ssub.s32 64, 64
          %289 = vsyncadd [#allocation8], %s288
          %s291 = sshll.u32 [#allocation9], 4
          %s292 = int_to_ptr.vmem [resolvable:$true] %s291
          %294 = dma.hbm_to_vmem [thread:$0]  %s3, 64, %s292, [#allocation8]
        $region20: #{_toad_forward_padded.2} parent=11 // pred_fallthru
          _
        // Predicated region
        $region21: #{_toad_forward_padded.2} parent=11 // pred_check
          %p295 = pneg %p115
        $region22: #{_toad_forward_padded.2} parent=11 // pred_check_branch
          %297 = sbr.rel (%p295) target = $region24
        $region23: #{_toad_forward_padded.2} parent=11 // pred_region
          %s299 = ssub.s32 49152, 49152
          %300 = vsyncadd [#allocation11], %s299
          %s301 = sshll.u32 [#allocation10], 4
          %s302 = int_to_ptr.vmem [resolvable:$true] %s301
          %307 = dma.hbm_to_vmem [thread:$0]  %s4, 49152, %s302, [#allocation11], 768, 768, 48
        $region24: #{_toad_forward_padded.2} parent=11 // pred_fallthru
          _
        // Predicated region
        $region25: #{_toad_forward_padded.2} parent=11 // pred_check
          %p308 = pneg %p136
        $region26: #{_toad_forward_padded.2} parent=11 // pred_check_branch
          %310 = sbr.rel (%p308) target = $region28
        $region27: #{_toad_forward_padded.2} parent=11 // pred_region
          %s312 = ssub.s32 96, 96
          %313 = vsyncadd [#allocation11], %s312
          %s315 = sshll.u32 [#allocation12], 4
          %s316 = int_to_ptr.vmem [resolvable:$true] %s315
          %318 = dma.hbm_to_vmem [thread:$0]  %s5, 96, %s316, [#allocation11]
        $region28: #{_toad_forward_padded.2} parent=11 // pred_fallthru
          _
        // Predicated region
        $region29: #{_toad_forward_padded.2} parent=11 // pred_check
          %p319 = pneg %p157
        $region30: #{_toad_forward_padded.2} parent=11 // pred_check_branch
          %321 = sbr.rel (%p319) target = $region32
        $region31: #{_toad_forward_padded.2} parent=11 // pred_region
          %s323 = ssub.s32 48, 48
          %324 = vsyncadd [#allocation14], %s323
          %s326 = sshll.u32 [#allocation13], 4
          %s327 = int_to_ptr.vmem [resolvable:$true] %s326
          %329 = dma.hbm_to_vmem [thread:$0]  %s6, 48, %s327, [#allocation14]
        $region32: #{_toad_forward_padded.2} parent=11 // pred_fallthru
          _
        // Predicated region
        $region33: #{_toad_forward_padded.2} parent=11 // pred_check
          %p330 = pneg %p178
        $region34: #{_toad_forward_padded.2} parent=11 // pred_check_branch
          %332 = sbr.rel (%p330) target = $region36
        $region35: #{_toad_forward_padded.2} parent=11 // pred_region
          _
        $region36: #{_toad_forward_padded.2} parent=11 // pred_fallthru
          _
      $region12: #{_toad_forward_padded.2} parent=5 // pred_fallthru
        _
      %p333 = scmp.lt.s32.totalorder %s26, 4
      // Predicated region
      $region37: #{_toad_forward_padded.2} parent=5 // pred_check
        %p334 = pneg %p333
      $region38: #{_toad_forward_padded.2} parent=5 // pred_check_branch
        %336 = sbr.rel (%p334) target = $region40
      $region39: #{_toad_forward_padded.2} parent=5 // pred_region
        // Predicated region
        $region41: #{_toad_forward_padded.2} parent=39 // pred_check
          %p337 = pneg %p46
        $region42: #{_toad_forward_padded.2} parent=39 // pred_check_branch
          %339 = sbr.rel (%p337) target = $region44
        $region43: #{_toad_forward_padded.2} parent=39 // pred_region
          %s340 = sand.u32 %s36, 1
          %s341 = scalar_lea.sflag [#allocation6], %s340
          %s342 = sand.u32 %s36, 1
          %s343 = smul.addr %s342, 1024
          %s344 = scalar_lea.vmem [#allocation5], %s343
          %s345 = smul.u32 16, %s26
          %s347 = ssub.s32 16384, 16384
          %348 = vsyncadd %s341, %s347
          %s349 = smul.addr %s345, 8
          %s350 = smul.addr %s349, 128
          %s351 = scalar_lea.hbm %s1, %s350
          %s352 = sshll.u32 %s344, 4
          %s353 = int_to_ptr.vmem [resolvable:$true] %s352
          %358 = dma.hbm_to_vmem [thread:$0]  %s351, 16384, %s353, %s341, 1024, 1024, 64
        $region44: #{_toad_forward_padded.2} parent=39 // pred_fallthru
          _
      $region40: #{_toad_forward_padded.2} parent=5 // pred_fallthru
        _
      %p359 = scmp.le.s32.totalorder 1, %s26
      %p360 = scmp.lt.s32.totalorder %s26, 5
      %p361 = pnand %p359, %p360
      %p362 = pneg %p361
      // Predicated region
      $region45: #{_toad_forward_padded.2} parent=5 // pred_check
        _
      $region46: #{_toad_forward_padded.2} parent=5 // pred_check_branch
        %364 = sbr.rel (%p361) target = $region48
      $region47: #{_toad_forward_padded.2} parent=5 // pred_region
        %s365 = ssub.s32 %s26, 1
        %s366 = sand.u32 %s39, 1
        %s367 = scalar_lea.sflag [#allocation6], %s366
        %s368 = sand.u32 %s39, 1
        %s369 = smul.addr %s368, 1024
        %s370 = scalar_lea.vmem [#allocation5], %s369
        // Predicated region
        $region49: #{_toad_forward_padded.2} parent=47 // pred_check
          %p371 = pneg %p52
        $region50: #{_toad_forward_padded.2} parent=47 // pred_check_branch
          %373 = sbr.rel (%p371) target = $region52
        $region51: #{_toad_forward_padded.2} parent=47 // pred_region
          %374 = dma.done %s367, 16384
        $region52: #{_toad_forward_padded.2} parent=47 // pred_fallthru
          _
        // Predicated region
        $region53: #{_toad_forward_padded.2} parent=47 // pred_check
          %p375 = pneg %p73
        $region54: #{_toad_forward_padded.2} parent=47 // pred_check_branch
          %377 = sbr.rel (%p375) target = $region56
        $region55: #{_toad_forward_padded.2} parent=47 // pred_region
          %378 = dma.done [#allocation8], 65536
        $region56: #{_toad_forward_padded.2} parent=47 // pred_fallthru
          _
        // Predicated region
        $region57: #{_toad_forward_padded.2} parent=47 // pred_check
          %p379 = pneg %p94
        $region58: #{_toad_forward_padded.2} parent=47 // pred_check_branch
          %381 = sbr.rel (%p379) target = $region60
        $region59: #{_toad_forward_padded.2} parent=47 // pred_region
          %382 = dma.done [#allocation8], 64
        $region60: #{_toad_forward_padded.2} parent=47 // pred_fallthru
          _
        // Predicated region
        $region61: #{_toad_forward_padded.2} parent=47 // pred_check
          %p383 = pneg %p115
        $region62: #{_toad_forward_padded.2} parent=47 // pred_check_branch
          %385 = sbr.rel (%p383) target = $region64
        $region63: #{_toad_forward_padded.2} parent=47 // pred_region
          %386 = dma.done [#allocation11], 49152
        $region64: #{_toad_forward_padded.2} parent=47 // pred_fallthru
          _
        // Predicated region
        $region65: #{_toad_forward_padded.2} parent=47 // pred_check
          %p387 = pneg %p136
        $region66: #{_toad_forward_padded.2} parent=47 // pred_check_branch
          %389 = sbr.rel (%p387) target = $region68
        $region67: #{_toad_forward_padded.2} parent=47 // pred_region
          %390 = dma.done [#allocation11], 96
        $region68: #{_toad_forward_padded.2} parent=47 // pred_fallthru
          _
        // Predicated region
        $region69: #{_toad_forward_padded.2} parent=47 // pred_check
          %p391 = pneg %p157
        $region70: #{_toad_forward_padded.2} parent=47 // pred_check_branch
          %393 = sbr.rel (%p391) target = $region72
        $region71: #{_toad_forward_padded.2} parent=47 // pred_region
          %394 = dma.done [#allocation14], 48
        $region72: #{_toad_forward_padded.2} parent=47 // pred_fallthru
          _
        %s395 = sand.u32 %s39, 1
        %s396 = scalar_lea.sflag [#allocation6], %s395
        %s397 = sand.u32 %s39, 1
        %s398 = smul.addr %s397, 1024
        %s399 = scalar_lea.vmem [#allocation5], %s398
        %p400 = pneg %p52
        %p401 = pneg %p49
        %p402 = pneg %p73
        %p403 = pneg %p70
        %p404 = pneg %p94
        %p405 = pneg %p91
        %p406 = pneg %p115
        %p407 = pneg %p112
        %p408 = pneg %p136
        %p409 = pneg %p133
        %p410 = pneg %p157
        %p411 = pneg %p154
        %p412 = pneg %p178
        %p413 = pneg %p175
        %p414 = pneg %p204
        %p415 = pneg %p201
        %p416 = scmp.lt.s32.totalorder %s31, 3
        %s417 = scalar_select %p416, %s31, 3
        %s418 = scalar_lea.vmem %s8, %s417
        %p419 = pneg %p230
        %p420 = pneg %p227
        %p421 = scmp.lt.s32.totalorder %s31, 3
        %s422 = scalar_select %p421, %s31, 3
        %s423 = scalar_lea.vmem %s9, %s422
        %p424 = pneg %p256
        %p425 = pneg %p253
        %p426 = scmp.lt.s32.totalorder %s31, 3
        %s427 = scalar_select %p426, %s31, 3
        %s428 = smul.addr %s427, 4
        %s429 = scalar_lea.vmem %s10, %s428
        %s430 = smul.u32 16, %s31
        %p431 = scmp.lt.s32.totalorder %s31, 3
        %s432 = scalar_select %p431, %s31, 3
        %s433 = scalar_lea.vmem %s8, %s432
        %p434 = scmp.lt.s32.totalorder %s31, 3
        %s435 = scalar_select %p434, %s31, 3
        %s436 = scalar_lea.vmem %s9, %s435
        %p437 = scmp.lt.s32.totalorder %s31, 3
        %s438 = scalar_select %p437, %s31, 3
        %s439 = smul.addr %s438, 4
        %s440 = scalar_lea.vmem %s10, %s439
        %v441 = vld [vmem:[%s370] sm:$0xff]
        %v442 = vld [vmem:[%s370 + $0x8] sm:$0xff]
        %v443 = vld [vmem:[%s370 + $0x10] sm:$0xff]
        %v444 = vld [vmem:[%s370 + $0x18] sm:$0xff]
        %v445 = vld [vmem:[%s370 + $0x20] sm:$0xff]
        %v446 = vld [vmem:[%s370 + $0x28] sm:$0xff]
        %v447 = vld [vmem:[%s370 + $0x30] sm:$0xff]
        %v448 = vld [vmem:[%s370 + $0x38] sm:$0xff]
        %v449 = vld [vmem:[%s370 + $0x40] sm:$0xff]
        %v450 = vld [vmem:[%s370 + $0x48] sm:$0xff]
        %v451 = vld [vmem:[%s370 + $0x50] sm:$0xff]
        %v452 = vld [vmem:[%s370 + $0x58] sm:$0xff]
        %v453 = vld [vmem:[%s370 + $0x60] sm:$0xff]
        %v454 = vld [vmem:[%s370 + $0x68] sm:$0xff]
        %v455 = vld [vmem:[%s370 + $0x70] sm:$0xff]
        %v456 = vld [vmem:[%s370 + $0x78] sm:$0xff]
        %v457 = vld [vmem:[%s370 + $0x80] sm:$0xff]
        %v458 = vld [vmem:[%s370 + $0x88] sm:$0xff]
        %v459 = vld [vmem:[%s370 + $0x90] sm:$0xff]
        %v460 = vld [vmem:[%s370 + $0x98] sm:$0xff]
        %v461 = vld [vmem:[%s370 + $0xa0] sm:$0xff]
        %v462 = vld [vmem:[%s370 + $0xa8] sm:$0xff]
        %v463 = vld [vmem:[%s370 + $0xb0] sm:$0xff]
        %v464 = vld [vmem:[%s370 + $0xb8] sm:$0xff]
        %v465 = vld [vmem:[%s370 + $0xc0] sm:$0xff]
        %v466 = vld [vmem:[%s370 + $0xc8] sm:$0xff]
        %v467 = vld [vmem:[%s370 + $0xd0] sm:$0xff]
        %v468 = vld [vmem:[%s370 + $0xd8] sm:$0xff]
        %v469 = vld [vmem:[%s370 + $0xe0] sm:$0xff]
        %v470 = vld [vmem:[%s370 + $0xe8] sm:$0xff]
        %v471 = vld [vmem:[%s370 + $0xf0] sm:$0xff]
        %v472 = vld [vmem:[%s370 + $0xf8] sm:$0xff]
        %v473 = vld [vmem:[%s370 + $0x100] sm:$0xff]
        %v474 = vld [vmem:[%s370 + $0x108] sm:$0xff]
        %v475 = vld [vmem:[%s370 + $0x110] sm:$0xff]
        %v476 = vld [vmem:[%s370 + $0x118] sm:$0xff]
        %v477 = vld [vmem:[%s370 + $0x120] sm:$0xff]
        %v478 = vld [vmem:[%s370 + $0x128] sm:$0xff]
        %v479 = vld [vmem:[%s370 + $0x130] sm:$0xff]
        %v480 = vld [vmem:[%s370 + $0x138] sm:$0xff]
        %v481 = vld [vmem:[%s370 + $0x140] sm:$0xff]
        %v482 = vld [vmem:[%s370 + $0x148] sm:$0xff]
        %v483 = vld [vmem:[%s370 + $0x150] sm:$0xff]
        %v484 = vld [vmem:[%s370 + $0x158] sm:$0xff]
        %v485 = vld [vmem:[%s370 + $0x160] sm:$0xff]
        %v486 = vld [vmem:[%s370 + $0x168] sm:$0xff]
        %v487 = vld [vmem:[%s370 + $0x170] sm:$0xff]
        %v488 = vld [vmem:[%s370 + $0x178] sm:$0xff]
        %v489 = vld [vmem:[%s370 + $0x180] sm:$0xff]
        %v490 = vld [vmem:[%s370 + $0x188] sm:$0xff]
        %v491 = vld [vmem:[%s370 + $0x190] sm:$0xff]
        %v492 = vld [vmem:[%s370 + $0x198] sm:$0xff]
        %v493 = vld [vmem:[%s370 + $0x1a0] sm:$0xff]
        %v494 = vld [vmem:[%s370 + $0x1a8] sm:$0xff]
        %v495 = vld [vmem:[%s370 + $0x1b0] sm:$0xff]
        %v496 = vld [vmem:[%s370 + $0x1b8] sm:$0xff]
        %v497 = vld [vmem:[%s370 + $0x1c0] sm:$0xff]
        %v498 = vld [vmem:[%s370 + $0x1c8] sm:$0xff]
        %v499 = vld [vmem:[%s370 + $0x1d0] sm:$0xff]
        %v500 = vld [vmem:[%s370 + $0x1d8] sm:$0xff]
        %v501 = vld [vmem:[%s370 + $0x1e0] sm:$0xff]
        %v502 = vld [vmem:[%s370 + $0x1e8] sm:$0xff]
        %v503 = vld [vmem:[%s370 + $0x1f0] sm:$0xff]
        %v504 = vld [vmem:[%s370 + $0x1f8] sm:$0xff]
        %v505 = vld [vmem:[%s370 + $0x200] sm:$0xff]
        %v506 = vld [vmem:[%s370 + $0x208] sm:$0xff]
        %v507 = vld [vmem:[%s370 + $0x210] sm:$0xff]
        %v508 = vld [vmem:[%s370 + $0x218] sm:$0xff]
        %v509 = vld [vmem:[%s370 + $0x220] sm:$0xff]
        %v510 = vld [vmem:[%s370 + $0x228] sm:$0xff]
        %v511 = vld [vmem:[%s370 + $0x230] sm:$0xff]
        %v512 = vld [vmem:[%s370 + $0x238] sm:$0xff]
        %v513 = vld [vmem:[%s370 + $0x240] sm:$0xff]
        %v514 = vld [vmem:[%s370 + $0x248] sm:$0xff]
        %v515 = vld [vmem:[%s370 + $0x250] sm:$0xff]
        %v516 = vld [vmem:[%s370 + $0x258] sm:$0xff]
        %v517 = vld [vmem:[%s370 + $0x260] sm:$0xff]
        %v518 = vld [vmem:[%s370 + $0x268] sm:$0xff]
        %v519 = vld [vmem:[%s370 + $0x270] sm:$0xff]
        %v520 = vld [vmem:[%s370 + $0x278] sm:$0xff]
        %v521 = vld [vmem:[%s370 + $0x280] sm:$0xff]
        %v522 = vld [vmem:[%s370 + $0x288] sm:$0xff]
        %v523 = vld [vmem:[%s370 + $0x290] sm:$0xff]
        %v524 = vld [vmem:[%s370 + $0x298] sm:$0xff]
        %v525 = vld [vmem:[%s370 + $0x2a0] sm:$0xff]
        %v526 = vld [vmem:[%s370 + $0x2a8] sm:$0xff]
        %v527 = vld [vmem:[%s370 + $0x2b0] sm:$0xff]
        %v528 = vld [vmem:[%s370 + $0x2b8] sm:$0xff]
        %v529 = vld [vmem:[%s370 + $0x2c0] sm:$0xff]
        %v530 = vld [vmem:[%s370 + $0x2c8] sm:$0xff]
        %v531 = vld [vmem:[%s370 + $0x2d0] sm:$0xff]
        %v532 = vld [vmem:[%s370 + $0x2d8] sm:$0xff]
        %v533 = vld [vmem:[%s370 + $0x2e0] sm:$0xff]
        %v534 = vld [vmem:[%s370 + $0x2e8] sm:$0xff]
        %v535 = vld [vmem:[%s370 + $0x2f0] sm:$0xff]
        %v536 = vld [vmem:[%s370 + $0x2f8] sm:$0xff]
        %v537 = vld [vmem:[%s370 + $0x300] sm:$0xff]
        %v538 = vld [vmem:[%s370 + $0x308] sm:$0xff]
        %v539 = vld [vmem:[%s370 + $0x310] sm:$0xff]
        %v540 = vld [vmem:[%s370 + $0x318] sm:$0xff]
        %v541 = vld [vmem:[%s370 + $0x320] sm:$0xff]
        %v542 = vld [vmem:[%s370 + $0x328] sm:$0xff]
        %v543 = vld [vmem:[%s370 + $0x330] sm:$0xff]
        %v544 = vld [vmem:[%s370 + $0x338] sm:$0xff]
        %v545 = vld [vmem:[%s370 + $0x340] sm:$0xff]
        %v546 = vld [vmem:[%s370 + $0x348] sm:$0xff]
        %v547 = vld [vmem:[%s370 + $0x350] sm:$0xff]
        %v548 = vld [vmem:[%s370 + $0x358] sm:$0xff]
        %v549 = vld [vmem:[%s370 + $0x360] sm:$0xff]
        %v550 = vld [vmem:[%s370 + $0x368] sm:$0xff]
        %v551 = vld [vmem:[%s370 + $0x370] sm:$0xff]
        %v552 = vld [vmem:[%s370 + $0x378] sm:$0xff]
        %v553 = vld [vmem:[%s370 + $0x380] sm:$0xff]
        %v554 = vld [vmem:[%s370 + $0x388] sm:$0xff]
        %v555 = vld [vmem:[%s370 + $0x390] sm:$0xff]
        %v556 = vld [vmem:[%s370 + $0x398] sm:$0xff]
        %v557 = vld [vmem:[%s370 + $0x3a0] sm:$0xff]
        %v558 = vld [vmem:[%s370 + $0x3a8] sm:$0xff]
        %v559 = vld [vmem:[%s370 + $0x3b0] sm:$0xff]
        %v560 = vld [vmem:[%s370 + $0x3b8] sm:$0xff]
        %v561 = vld [vmem:[%s370 + $0x3c0] sm:$0xff]
        %v562 = vld [vmem:[%s370 + $0x3c8] sm:$0xff]
        %v563 = vld [vmem:[%s370 + $0x3d0] sm:$0xff]
        %v564 = vld [vmem:[%s370 + $0x3d8] sm:$0xff]
        %v565 = vld [vmem:[%s370 + $0x3e0] sm:$0xff]
        %v566 = vld [vmem:[%s370 + $0x3e8] sm:$0xff]
        %v567 = vld [vmem:[%s370 + $0x3f0] sm:$0xff]
        %v568 = vld [vmem:[%s370 + $0x3f8] sm:$0xff]
        %v569 = vld [vmem:[#allocation7] sm:$0xff]
        %v570 = vld [vmem:[#allocation7 + $0x8] sm:$0xff]
        %v571 = vld [vmem:[#allocation7 + $0x10] sm:$0xff]
        %v572 = vld [vmem:[#allocation7 + $0x18] sm:$0xff]
        %v573 = vld [vmem:[#allocation7 + $0x20] sm:$0xff]
        %v574 = vld [vmem:[#allocation7 + $0x28] sm:$0xff]
        %v575 = vld [vmem:[#allocation7 + $0x30] sm:$0xff]
        %v576 = vld [vmem:[#allocation7 + $0x38] sm:$0xff]
        %v577 = vld [vmem:[#allocation7 + $0x40] sm:$0xff]
        %v578 = vld [vmem:[#allocation7 + $0x48] sm:$0xff]
        %v579 = vld [vmem:[#allocation7 + $0x50] sm:$0xff]
        %v580 = vld [vmem:[#allocation7 + $0x58] sm:$0xff]
        %v581 = vld [vmem:[#allocation7 + $0x60] sm:$0xff]
        %v582 = vld [vmem:[#allocation7 + $0x68] sm:$0xff]
        %v583 = vld [vmem:[#allocation7 + $0x70] sm:$0xff]
        %v584 = vld [vmem:[#allocation7 + $0x78] sm:$0xff]
        %v585 = vld [vmem:[#allocation7 + $0x80] sm:$0xff]
        %v586 = vld [vmem:[#allocation7 + $0x88] sm:$0xff]
        %v587 = vld [vmem:[#allocation7 + $0x90] sm:$0xff]
        %v588 = vld [vmem:[#allocation7 + $0x98] sm:$0xff]
        %v589 = vld [vmem:[#allocation7 + $0xa0] sm:$0xff]
        %v590 = vld [vmem:[#allocation7 + $0xa8] sm:$0xff]
        %v591 = vld [vmem:[#allocation7 + $0xb0] sm:$0xff]
        %v592 = vld [vmem:[#allocation7 + $0xb8] sm:$0xff]
        %v593 = vld [vmem:[#allocation7 + $0xc0] sm:$0xff]
        %v594 = vld [vmem:[#allocation7 + $0xc8] sm:$0xff]
        %v595 = vld [vmem:[#allocation7 + $0xd0] sm:$0xff]
        %v596 = vld [vmem:[#allocation7 + $0xd8] sm:$0xff]
        %v597 = vld [vmem:[#allocation7 + $0xe0] sm:$0xff]
        %v598 = vld [vmem:[#allocation7 + $0xe8] sm:$0xff]
        %v599 = vld [vmem:[#allocation7 + $0xf0] sm:$0xff]
        %v600 = vld [vmem:[#allocation7 + $0xf8] sm:$0xff]
        %v601 = vld [vmem:[#allocation7 + $0x100] sm:$0xff]
        %v602 = vld [vmem:[#allocation7 + $0x108] sm:$0xff]
        %v603 = vld [vmem:[#allocation7 + $0x110] sm:$0xff]
        %v604 = vld [vmem:[#allocation7 + $0x118] sm:$0xff]
        %v605 = vld [vmem:[#allocation7 + $0x120] sm:$0xff]
        %v606 = vld [vmem:[#allocation7 + $0x128] sm:$0xff]
        %v607 = vld [vmem:[#allocation7 + $0x130] sm:$0xff]
        %v608 = vld [vmem:[#allocation7 + $0x138] sm:$0xff]
        %v609 = vld [vmem:[#allocation7 + $0x140] sm:$0xff]
        %v610 = vld [vmem:[#allocation7 + $0x148] sm:$0xff]
        %v611 = vld [vmem:[#allocation7 + $0x150] sm:$0xff]
        %v612 = vld [vmem:[#allocation7 + $0x158] sm:$0xff]
        %v613 = vld [vmem:[#allocation7 + $0x160] sm:$0xff]
        %v614 = vld [vmem:[#allocation7 + $0x168] sm:$0xff]
        %v615 = vld [vmem:[#allocation7 + $0x170] sm:$0xff]
        %v616 = vld [vmem:[#allocation7 + $0x178] sm:$0xff]
        %v617 = vld [vmem:[#allocation7 + $0x180] sm:$0xff]
        %v618 = vld [vmem:[#allocation7 + $0x188] sm:$0xff]
        %v619 = vld [vmem:[#allocation7 + $0x190] sm:$0xff]
        %v620 = vld [vmem:[#allocation7 + $0x198] sm:$0xff]
        %v621 = vld [vmem:[#allocation7 + $0x1a0] sm:$0xff]
        %v622 = vld [vmem:[#allocation7 + $0x1a8] sm:$0xff]
        %v623 = vld [vmem:[#allocation7 + $0x1b0] sm:$0xff]
        %v624 = vld [vmem:[#allocation7 + $0x1b8] sm:$0xff]
        %v625 = vld [vmem:[#allocation7 + $0x1c0] sm:$0xff]
        %v626 = vld [vmem:[#allocation7 + $0x1c8] sm:$0xff]
        %v627 = vld [vmem:[#allocation7 + $0x1d0] sm:$0xff]
        %v628 = vld [vmem:[#allocation7 + $0x1d8] sm:$0xff]
        %v629 = vld [vmem:[#allocation7 + $0x1e0] sm:$0xff]
        %v630 = vld [vmem:[#allocation7 + $0x1e8] sm:$0xff]
        %v631 = vld [vmem:[#allocation7 + $0x1f0] sm:$0xff]
        %v632 = vld [vmem:[#allocation7 + $0x1f8] sm:$0xff]
        %v633 = vld [vmem:[#allocation7 + $0x200] sm:$0xff]
        %v634 = vld [vmem:[#allocation7 + $0x208] sm:$0xff]
        %v635 = vld [vmem:[#allocation7 + $0x210] sm:$0xff]
        %v636 = vld [vmem:[#allocation7 + $0x218] sm:$0xff]
        %v637 = vld [vmem:[#allocation7 + $0x220] sm:$0xff]
        %v638 = vld [vmem:[#allocation7 + $0x228] sm:$0xff]
        %v639 = vld [vmem:[#allocation7 + $0x230] sm:$0xff]
        %v640 = vld [vmem:[#allocation7 + $0x238] sm:$0xff]
        %v641 = vld [vmem:[#allocation7 + $0x240] sm:$0xff]
        %v642 = vld [vmem:[#allocation7 + $0x248] sm:$0xff]
        %v643 = vld [vmem:[#allocation7 + $0x250] sm:$0xff]
        %v644 = vld [vmem:[#allocation7 + $0x258] sm:$0xff]
        %v645 = vld [vmem:[#allocation7 + $0x260] sm:$0xff]
        %v646 = vld [vmem:[#allocation7 + $0x268] sm:$0xff]
        %v647 = vld [vmem:[#allocation7 + $0x270] sm:$0xff]
        %v648 = vld [vmem:[#allocation7 + $0x278] sm:$0xff]
        %v649 = vld [vmem:[#allocation7 + $0x280] sm:$0xff]
        %v650 = vld [vmem:[#allocation7 + $0x288] sm:$0xff]
        %v651 = vld [vmem:[#allocation7 + $0x290] sm:$0xff]
        %v652 = vld [vmem:[#allocation7 + $0x298] sm:$0xff]
        %v653 = vld [vmem:[#allocation7 + $0x2a0] sm:$0xff]
        %v654 = vld [vmem:[#allocation7 + $0x2a8] sm:$0xff]
        %v655 = vld [vmem:[#allocation7 + $0x2b0] sm:$0xff]
        %v656 = vld [vmem:[#allocation7 + $0x2b8] sm:$0xff]
        %v657 = vld [vmem:[#allocation7 + $0x2c0] sm:$0xff]
        %v658 = vld [vmem:[#allocation7 + $0x2c8] sm:$0xff]
        %v659 = vld [vmem:[#allocation7 + $0x2d0] sm:$0xff]
        %v660 = vld [vmem:[#allocation7 + $0x2d8] sm:$0xff]
        %v661 = vld [vmem:[#allocation7 + $0x2e0] sm:$0xff]
        %v662 = vld [vmem:[#allocation7 + $0x2e8] sm:$0xff]
        %v663 = vld [vmem:[#allocation7 + $0x2f0] sm:$0xff]
        %v664 = vld [vmem:[#allocation7 + $0x2f8] sm:$0xff]
        %v665 = vld [vmem:[#allocation7 + $0x300] sm:$0xff]
        %v666 = vld [vmem:[#allocation7 + $0x308] sm:$0xff]
        %v667 = vld [vmem:[#allocation7 + $0x310] sm:$0xff]
        %v668 = vld [vmem:[#allocation7 + $0x318] sm:$0xff]
        %v669 = vld [vmem:[#allocation7 + $0x320] sm:$0xff]
        %v670 = vld [vmem:[#allocation7 + $0x328] sm:$0xff]
        %v671 = vld [vmem:[#allocation7 + $0x330] sm:$0xff]
        %v672 = vld [vmem:[#allocation7 + $0x338] sm:$0xff]
        %v673 = vld [vmem:[#allocation7 + $0x340] sm:$0xff]
        %v674 = vld [vmem:[#allocation7 + $0x348] sm:$0xff]
        %v675 = vld [vmem:[#allocation7 + $0x350] sm:$0xff]
        %v676 = vld [vmem:[#allocation7 + $0x358] sm:$0xff]
        %v677 = vld [vmem:[#allocation7 + $0x360] sm:$0xff]
        %v678 = vld [vmem:[#allocation7 + $0x368] sm:$0xff]
        %v679 = vld [vmem:[#allocation7 + $0x370] sm:$0xff]
        %v680 = vld [vmem:[#allocation7 + $0x378] sm:$0xff]
        %v681 = vld [vmem:[#allocation7 + $0x380] sm:$0xff]
        %v682 = vld [vmem:[#allocation7 + $0x388] sm:$0xff]
        %v683 = vld [vmem:[#allocation7 + $0x390] sm:$0xff]
        %v684 = vld [vmem:[#allocation7 + $0x398] sm:$0xff]
        %v685 = vld [vmem:[#allocation7 + $0x3a0] sm:$0xff]
        %v686 = vld [vmem:[#allocation7 + $0x3a8] sm:$0xff]
        %v687 = vld [vmem:[#allocation7 + $0x3b0] sm:$0xff]
        %v688 = vld [vmem:[#allocation7 + $0x3b8] sm:$0xff]
        %v689 = vld [vmem:[#allocation7 + $0x3c0] sm:$0xff]
        %v690 = vld [vmem:[#allocation7 + $0x3c8] sm:$0xff]
        %v691 = vld [vmem:[#allocation7 + $0x3d0] sm:$0xff]
        %v692 = vld [vmem:[#allocation7 + $0x3d8] sm:$0xff]
        %v693 = vld [vmem:[#allocation7 + $0x3e0] sm:$0xff]
        %v694 = vld [vmem:[#allocation7 + $0x3e8] sm:$0xff]
        %v695 = vld [vmem:[#allocation7 + $0x3f0] sm:$0xff]
        %v696 = vld [vmem:[#allocation7 + $0x3f8] sm:$0xff]
        %v697 = vld [vmem:[#allocation7 + $0x400] sm:$0xff]
        %v698 = vld [vmem:[#allocation7 + $0x408] sm:$0xff]
        %v699 = vld [vmem:[#allocation7 + $0x410] sm:$0xff]
        %v700 = vld [vmem:[#allocation7 + $0x418] sm:$0xff]
        %v701 = vld [vmem:[#allocation7 + $0x420] sm:$0xff]
        %v702 = vld [vmem:[#allocation7 + $0x428] sm:$0xff]
        %v703 = vld [vmem:[#allocation7 + $0x430] sm:$0xff]
        %v704 = vld [vmem:[#allocation7 + $0x438] sm:$0xff]
        %v705 = vld [vmem:[#allocation7 + $0x440] sm:$0xff]
        %v706 = vld [vmem:[#allocation7 + $0x448] sm:$0xff]
        %v707 = vld [vmem:[#allocation7 + $0x450] sm:$0xff]
        %v708 = vld [vmem:[#allocation7 + $0x458] sm:$0xff]
        %v709 = vld [vmem:[#allocation7 + $0x460] sm:$0xff]
        %v710 = vld [vmem:[#allocation7 + $0x468] sm:$0xff]
        %v711 = vld [vmem:[#allocation7 + $0x470] sm:$0xff]
        %v712 = vld [vmem:[#allocation7 + $0x478] sm:$0xff]
        %v713 = vld [vmem:[#allocation7 + $0x480] sm:$0xff]
        %v714 = vld [vmem:[#allocation7 + $0x488] sm:$0xff]
        %v715 = vld [vmem:[#allocation7 + $0x490] sm:$0xff]
        %v716 = vld [vmem:[#allocation7 + $0x498] sm:$0xff]
        %v717 = vld [vmem:[#allocation7 + $0x4a0] sm:$0xff]
        %v718 = vld [vmem:[#allocation7 + $0x4a8] sm:$0xff]
        %v719 = vld [vmem:[#allocation7 + $0x4b0] sm:$0xff]
        %v720 = vld [vmem:[#allocation7 + $0x4b8] sm:$0xff]
        %v721 = vld [vmem:[#allocation7 + $0x4c0] sm:$0xff]
        %v722 = vld [vmem:[#allocation7 + $0x4c8] sm:$0xff]
        %v723 = vld [vmem:[#allocation7 + $0x4d0] sm:$0xff]
        %v724 = vld [vmem:[#allocation7 + $0x4d8] sm:$0xff]
        %v725 = vld [vmem:[#allocation7 + $0x4e0] sm:$0xff]
        %v726 = vld [vmem:[#allocation7 + $0x4e8] sm:$0xff]
        %v727 = vld [vmem:[#allocation7 + $0x4f0] sm:$0xff]
        %v728 = vld [vmem:[#allocation7 + $0x4f8] sm:$0xff]
        %v729 = vld [vmem:[#allocation7 + $0x500] sm:$0xff]
        %v730 = vld [vmem:[#allocation7 + $0x508] sm:$0xff]
        %v731 = vld [vmem:[#allocation7 + $0x510] sm:$0xff]
        %v732 = vld [vmem:[#allocation7 + $0x518] sm:$0xff]
        %v733 = vld [vmem:[#allocation7 + $0x520] sm:$0xff]
        %v734 = vld [vmem:[#allocation7 + $0x528] sm:$0xff]
        %v735 = vld [vmem:[#allocation7 + $0x530] sm:$0xff]
        %v736 = vld [vmem:[#allocation7 + $0x538] sm:$0xff]
        %v737 = vld [vmem:[#allocation7 + $0x540] sm:$0xff]
        %v738 = vld [vmem:[#allocation7 + $0x548] sm:$0xff]
        %v739 = vld [vmem:[#allocation7 + $0x550] sm:$0xff]
        %v740 = vld [vmem:[#allocation7 + $0x558] sm:$0xff]
        %v741 = vld [vmem:[#allocation7 + $0x560] sm:$0xff]
        %v742 = vld [vmem:[#allocation7 + $0x568] sm:$0xff]
        %v743 = vld [vmem:[#allocation7 + $0x570] sm:$0xff]
        %v744 = vld [vmem:[#allocation7 + $0x578] sm:$0xff]
        %v745 = vld [vmem:[#allocation7 + $0x580] sm:$0xff]
        %v746 = vld [vmem:[#allocation7 + $0x588] sm:$0xff]
        %v747 = vld [vmem:[#allocation7 + $0x590] sm:$0xff]
        %v748 = vld [vmem:[#allocation7 + $0x598] sm:$0xff]
        %v749 = vld [vmem:[#allocation7 + $0x5a0] sm:$0xff]
        %v750 = vld [vmem:[#allocation7 + $0x5a8] sm:$0xff]
        %v751 = vld [vmem:[#allocation7 + $0x5b0] sm:$0xff]
        %v752 = vld [vmem:[#allocation7 + $0x5b8] sm:$0xff]
        %v753 = vld [vmem:[#allocation7 + $0x5c0] sm:$0xff]
        %v754 = vld [vmem:[#allocation7 + $0x5c8] sm:$0xff]
        %v755 = vld [vmem:[#allocation7 + $0x5d0] sm:$0xff]
        %v756 = vld [vmem:[#allocation7 + $0x5d8] sm:$0xff]
        %v757 = vld [vmem:[#allocation7 + $0x5e0] sm:$0xff]
        %v758 = vld [vmem:[#allocation7 + $0x5e8] sm:$0xff]
        %v759 = vld [vmem:[#allocation7 + $0x5f0] sm:$0xff]
        %v760 = vld [vmem:[#allocation7 + $0x5f8] sm:$0xff]
        %v761 = vld [vmem:[#allocation7 + $0x600] sm:$0xff]
        %v762 = vld [vmem:[#allocation7 + $0x608] sm:$0xff]
        %v763 = vld [vmem:[#allocation7 + $0x610] sm:$0xff]
        %v764 = vld [vmem:[#allocation7 + $0x618] sm:$0xff]
        %v765 = vld [vmem:[#allocation7 + $0x620] sm:$0xff]
        %v766 = vld [vmem:[#allocation7 + $0x628] sm:$0xff]
        %v767 = vld [vmem:[#allocation7 + $0x630] sm:$0xff]
        %v768 = vld [vmem:[#allocation7 + $0x638] sm:$0xff]
        %v769 = vld [vmem:[#allocation7 + $0x640] sm:$0xff]
        %v770 = vld [vmem:[#allocation7 + $0x648] sm:$0xff]
        %v771 = vld [vmem:[#allocation7 + $0x650] sm:$0xff]
        %v772 = vld [vmem:[#allocation7 + $0x658] sm:$0xff]
        %v773 = vld [vmem:[#allocation7 + $0x660] sm:$0xff]
        %v774 = vld [vmem:[#allocation7 + $0x668] sm:$0xff]
        %v775 = vld [vmem:[#allocation7 + $0x670] sm:$0xff]
        %v776 = vld [vmem:[#allocation7 + $0x678] sm:$0xff]
        %v777 = vld [vmem:[#allocation7 + $0x680] sm:$0xff]
        %v778 = vld [vmem:[#allocation7 + $0x688] sm:$0xff]
        %v779 = vld [vmem:[#allocation7 + $0x690] sm:$0xff]
        %v780 = vld [vmem:[#allocation7 + $0x698] sm:$0xff]
        %v781 = vld [vmem:[#allocation7 + $0x6a0] sm:$0xff]
        %v782 = vld [vmem:[#allocation7 + $0x6a8] sm:$0xff]
        %v783 = vld [vmem:[#allocation7 + $0x6b0] sm:$0xff]
        %v784 = vld [vmem:[#allocation7 + $0x6b8] sm:$0xff]
        %v785 = vld [vmem:[#allocation7 + $0x6c0] sm:$0xff]
        %v786 = vld [vmem:[#allocation7 + $0x6c8] sm:$0xff]
        %v787 = vld [vmem:[#allocation7 + $0x6d0] sm:$0xff]
        %v788 = vld [vmem:[#allocation7 + $0x6d8] sm:$0xff]
        %v789 = vld [vmem:[#allocation7 + $0x6e0] sm:$0xff]
        %v790 = vld [vmem:[#allocation7 + $0x6e8] sm:$0xff]
        %v791 = vld [vmem:[#allocation7 + $0x6f0] sm:$0xff]
        %v792 = vld [vmem:[#allocation7 + $0x6f8] sm:$0xff]
        %v793 = vld [vmem:[#allocation7 + $0x700] sm:$0xff]
        %v794 = vld [vmem:[#allocation7 + $0x708] sm:$0xff]
        %v795 = vld [vmem:[#allocation7 + $0x710] sm:$0xff]
        %v796 = vld [vmem:[#allocation7 + $0x718] sm:$0xff]
        %v797 = vld [vmem:[#allocation7 + $0x720] sm:$0xff]
        %v798 = vld [vmem:[#allocation7 + $0x728] sm:$0xff]
        %v799 = vld [vmem:[#allocation7 + $0x730] sm:$0xff]
        %v800 = vld [vmem:[#allocation7 + $0x738] sm:$0xff]
        %v801 = vld [vmem:[#allocation7 + $0x740] sm:$0xff]
        %v802 = vld [vmem:[#allocation7 + $0x748] sm:$0xff]
        %v803 = vld [vmem:[#allocation7 + $0x750] sm:$0xff]
        %v804 = vld [vmem:[#allocation7 + $0x758] sm:$0xff]
        %v805 = vld [vmem:[#allocation7 + $0x760] sm:$0xff]
        %v806 = vld [vmem:[#allocation7 + $0x768] sm:$0xff]
        %v807 = vld [vmem:[#allocation7 + $0x770] sm:$0xff]
        %v808 = vld [vmem:[#allocation7 + $0x778] sm:$0xff]
        %v809 = vld [vmem:[#allocation7 + $0x780] sm:$0xff]
        %v810 = vld [vmem:[#allocation7 + $0x788] sm:$0xff]
        %v811 = vld [vmem:[#allocation7 + $0x790] sm:$0xff]
        %v812 = vld [vmem:[#allocation7 + $0x798] sm:$0xff]
        %v813 = vld [vmem:[#allocation7 + $0x7a0] sm:$0xff]
        %v814 = vld [vmem:[#allocation7 + $0x7a8] sm:$0xff]
        %v815 = vld [vmem:[#allocation7 + $0x7b0] sm:$0xff]
        %v816 = vld [vmem:[#allocation7 + $0x7b8] sm:$0xff]
        %v817 = vld [vmem:[#allocation7 + $0x7c0] sm:$0xff]
        %v818 = vld [vmem:[#allocation7 + $0x7c8] sm:$0xff]
        %v819 = vld [vmem:[#allocation7 + $0x7d0] sm:$0xff]
        %v820 = vld [vmem:[#allocation7 + $0x7d8] sm:$0xff]
        %v821 = vld [vmem:[#allocation7 + $0x7e0] sm:$0xff]
        %v822 = vld [vmem:[#allocation7 + $0x7e8] sm:$0xff]
        %v823 = vld [vmem:[#allocation7 + $0x7f0] sm:$0xff]
        %v824 = vld [vmem:[#allocation7 + $0x7f8] sm:$0xff]
        %v825 = vld [vmem:[#allocation7 + $0x800] sm:$0xff]
        %v826 = vld [vmem:[#allocation7 + $0x808] sm:$0xff]
        %v827 = vld [vmem:[#allocation7 + $0x810] sm:$0xff]
        %v828 = vld [vmem:[#allocation7 + $0x818] sm:$0xff]
        %v829 = vld [vmem:[#allocation7 + $0x820] sm:$0xff]
        %v830 = vld [vmem:[#allocation7 + $0x828] sm:$0xff]
        %v831 = vld [vmem:[#allocation7 + $0x830] sm:$0xff]
        %v832 = vld [vmem:[#allocation7 + $0x838] sm:$0xff]
        %v833 = vld [vmem:[#allocation7 + $0x840] sm:$0xff]
        %v834 = vld [vmem:[#allocation7 + $0x848] sm:$0xff]
        %v835 = vld [vmem:[#allocation7 + $0x850] sm:$0xff]
        %v836 = vld [vmem:[#allocation7 + $0x858] sm:$0xff]
        %v837 = vld [vmem:[#allocation7 + $0x860] sm:$0xff]
        %v838 = vld [vmem:[#allocation7 + $0x868] sm:$0xff]
        %v839 = vld [vmem:[#allocation7 + $0x870] sm:$0xff]
        %v840 = vld [vmem:[#allocation7 + $0x878] sm:$0xff]
        %v841 = vld [vmem:[#allocation7 + $0x880] sm:$0xff]
        %v842 = vld [vmem:[#allocation7 + $0x888] sm:$0xff]
        %v843 = vld [vmem:[#allocation7 + $0x890] sm:$0xff]
        %v844 = vld [vmem:[#allocation7 + $0x898] sm:$0xff]
        %v845 = vld [vmem:[#allocation7 + $0x8a0] sm:$0xff]
        %v846 = vld [vmem:[#allocation7 + $0x8a8] sm:$0xff]
        %v847 = vld [vmem:[#allocation7 + $0x8b0] sm:$0xff]
        %v848 = vld [vmem:[#allocation7 + $0x8b8] sm:$0xff]
        %v849 = vld [vmem:[#allocation7 + $0x8c0] sm:$0xff]
        %v850 = vld [vmem:[#allocation7 + $0x8c8] sm:$0xff]
        %v851 = vld [vmem:[#allocation7 + $0x8d0] sm:$0xff]
        %v852 = vld [vmem:[#allocation7 + $0x8d8] sm:$0xff]
        %v853 = vld [vmem:[#allocation7 + $0x8e0] sm:$0xff]
        %v854 = vld [vmem:[#allocation7 + $0x8e8] sm:$0xff]
        %v855 = vld [vmem:[#allocation7 + $0x8f0] sm:$0xff]
        %v856 = vld [vmem:[#allocation7 + $0x8f8] sm:$0xff]
        %v857 = vld [vmem:[#allocation7 + $0x900] sm:$0xff]
        %v858 = vld [vmem:[#allocation7 + $0x908] sm:$0xff]
        %v859 = vld [vmem:[#allocation7 + $0x910] sm:$0xff]
        %v860 = vld [vmem:[#allocation7 + $0x918] sm:$0xff]
        %v861 = vld [vmem:[#allocation7 + $0x920] sm:$0xff]
        %v862 = vld [vmem:[#allocation7 + $0x928] sm:$0xff]
        %v863 = vld [vmem:[#allocation7 + $0x930] sm:$0xff]
        %v864 = vld [vmem:[#allocation7 + $0x938] sm:$0xff]
        %v865 = vld [vmem:[#allocation7 + $0x940] sm:$0xff]
        %v866 = vld [vmem:[#allocation7 + $0x948] sm:$0xff]
        %v867 = vld [vmem:[#allocation7 + $0x950] sm:$0xff]
        %v868 = vld [vmem:[#allocation7 + $0x958] sm:$0xff]
        %v869 = vld [vmem:[#allocation7 + $0x960] sm:$0xff]
        %v870 = vld [vmem:[#allocation7 + $0x968] sm:$0xff]
        %v871 = vld [vmem:[#allocation7 + $0x970] sm:$0xff]
        %v872 = vld [vmem:[#allocation7 + $0x978] sm:$0xff]
        %v873 = vld [vmem:[#allocation7 + $0x980] sm:$0xff]
        %v874 = vld [vmem:[#allocation7 + $0x988] sm:$0xff]
        %v875 = vld [vmem:[#allocation7 + $0x990] sm:$0xff]
        %v876 = vld [vmem:[#allocation7 + $0x998] sm:$0xff]
        %v877 = vld [vmem:[#allocation7 + $0x9a0] sm:$0xff]
        %v878 = vld [vmem:[#allocation7 + $0x9a8] sm:$0xff]
        %v879 = vld [vmem:[#allocation7 + $0x9b0] sm:$0xff]
        %v880 = vld [vmem:[#allocation7 + $0x9b8] sm:$0xff]
        %v881 = vld [vmem:[#allocation7 + $0x9c0] sm:$0xff]
        %v882 = vld [vmem:[#allocation7 + $0x9c8] sm:$0xff]
        %v883 = vld [vmem:[#allocation7 + $0x9d0] sm:$0xff]
        %v884 = vld [vmem:[#allocation7 + $0x9d8] sm:$0xff]
        %v885 = vld [vmem:[#allocation7 + $0x9e0] sm:$0xff]
        %v886 = vld [vmem:[#allocation7 + $0x9e8] sm:$0xff]
        %v887 = vld [vmem:[#allocation7 + $0x9f0] sm:$0xff]
        %v888 = vld [vmem:[#allocation7 + $0x9f8] sm:$0xff]
        %v889 = vld [vmem:[#allocation7 + $0xa00] sm:$0xff]
        %v890 = vld [vmem:[#allocation7 + $0xa08] sm:$0xff]
        %v891 = vld [vmem:[#allocation7 + $0xa10] sm:$0xff]
        %v892 = vld [vmem:[#allocation7 + $0xa18] sm:$0xff]
        %v893 = vld [vmem:[#allocation7 + $0xa20] sm:$0xff]
        %v894 = vld [vmem:[#allocation7 + $0xa28] sm:$0xff]
        %v895 = vld [vmem:[#allocation7 + $0xa30] sm:$0xff]
        %v896 = vld [vmem:[#allocation7 + $0xa38] sm:$0xff]
        %v897 = vld [vmem:[#allocation7 + $0xa40] sm:$0xff]
        %v898 = vld [vmem:[#allocation7 + $0xa48] sm:$0xff]
        %v899 = vld [vmem:[#allocation7 + $0xa50] sm:$0xff]
        %v900 = vld [vmem:[#allocation7 + $0xa58] sm:$0xff]
        %v901 = vld [vmem:[#allocation7 + $0xa60] sm:$0xff]
        %v902 = vld [vmem:[#allocation7 + $0xa68] sm:$0xff]
        %v903 = vld [vmem:[#allocation7 + $0xa70] sm:$0xff]
        %v904 = vld [vmem:[#allocation7 + $0xa78] sm:$0xff]
        %v905 = vld [vmem:[#allocation7 + $0xa80] sm:$0xff]
        %v906 = vld [vmem:[#allocation7 + $0xa88] sm:$0xff]
        %v907 = vld [vmem:[#allocation7 + $0xa90] sm:$0xff]
        %v908 = vld [vmem:[#allocation7 + $0xa98] sm:$0xff]
        %v909 = vld [vmem:[#allocation7 + $0xaa0] sm:$0xff]
        %v910 = vld [vmem:[#allocation7 + $0xaa8] sm:$0xff]
        %v911 = vld [vmem:[#allocation7 + $0xab0] sm:$0xff]
        %v912 = vld [vmem:[#allocation7 + $0xab8] sm:$0xff]
        %v913 = vld [vmem:[#allocation7 + $0xac0] sm:$0xff]
        %v914 = vld [vmem:[#allocation7 + $0xac8] sm:$0xff]
        %v915 = vld [vmem:[#allocation7 + $0xad0] sm:$0xff]
        %v916 = vld [vmem:[#allocation7 + $0xad8] sm:$0xff]
        %v917 = vld [vmem:[#allocation7 + $0xae0] sm:$0xff]
        %v918 = vld [vmem:[#allocation7 + $0xae8] sm:$0xff]
        %v919 = vld [vmem:[#allocation7 + $0xaf0] sm:$0xff]
        %v920 = vld [vmem:[#allocation7 + $0xaf8] sm:$0xff]
        %v921 = vld [vmem:[#allocation7 + $0xb00] sm:$0xff]
        %v922 = vld [vmem:[#allocation7 + $0xb08] sm:$0xff]
        %v923 = vld [vmem:[#allocation7 + $0xb10] sm:$0xff]
        %v924 = vld [vmem:[#allocation7 + $0xb18] sm:$0xff]
        %v925 = vld [vmem:[#allocation7 + $0xb20] sm:$0xff]
        %v926 = vld [vmem:[#allocation7 + $0xb28] sm:$0xff]
        %v927 = vld [vmem:[#allocation7 + $0xb30] sm:$0xff]
        %v928 = vld [vmem:[#allocation7 + $0xb38] sm:$0xff]
        %v929 = vld [vmem:[#allocation7 + $0xb40] sm:$0xff]
        %v930 = vld [vmem:[#allocation7 + $0xb48] sm:$0xff]
        %v931 = vld [vmem:[#allocation7 + $0xb50] sm:$0xff]
        %v932 = vld [vmem:[#allocation7 + $0xb58] sm:$0xff]
        %v933 = vld [vmem:[#allocation7 + $0xb60] sm:$0xff]
        %v934 = vld [vmem:[#allocation7 + $0xb68] sm:$0xff]
        %v935 = vld [vmem:[#allocation7 + $0xb70] sm:$0xff]
        %v936 = vld [vmem:[#allocation7 + $0xb78] sm:$0xff]
        %v937 = vld [vmem:[#allocation7 + $0xb80] sm:$0xff]
        %v938 = vld [vmem:[#allocation7 + $0xb88] sm:$0xff]
        %v939 = vld [vmem:[#allocation7 + $0xb90] sm:$0xff]
        %v940 = vld [vmem:[#allocation7 + $0xb98] sm:$0xff]
        %v941 = vld [vmem:[#allocation7 + $0xba0] sm:$0xff]
        %v942 = vld [vmem:[#allocation7 + $0xba8] sm:$0xff]
        %v943 = vld [vmem:[#allocation7 + $0xbb0] sm:$0xff]
        %v944 = vld [vmem:[#allocation7 + $0xbb8] sm:$0xff]
        %v945 = vld [vmem:[#allocation7 + $0xbc0] sm:$0xff]
        %v946 = vld [vmem:[#allocation7 + $0xbc8] sm:$0xff]
        %v947 = vld [vmem:[#allocation7 + $0xbd0] sm:$0xff]
        %v948 = vld [vmem:[#allocation7 + $0xbd8] sm:$0xff]
        %v949 = vld [vmem:[#allocation7 + $0xbe0] sm:$0xff]
        %v950 = vld [vmem:[#allocation7 + $0xbe8] sm:$0xff]
        %v951 = vld [vmem:[#allocation7 + $0xbf0] sm:$0xff]
        %v952 = vld [vmem:[#allocation7 + $0xbf8] sm:$0xff]
        %v953 = vld [vmem:[#allocation7 + $0xc00] sm:$0xff]
        %v954 = vld [vmem:[#allocation7 + $0xc08] sm:$0xff]
        %v955 = vld [vmem:[#allocation7 + $0xc10] sm:$0xff]
        %v956 = vld [vmem:[#allocation7 + $0xc18] sm:$0xff]
        %v957 = vld [vmem:[#allocation7 + $0xc20] sm:$0xff]
        %v958 = vld [vmem:[#allocation7 + $0xc28] sm:$0xff]
        %v959 = vld [vmem:[#allocation7 + $0xc30] sm:$0xff]
        %v960 = vld [vmem:[#allocation7 + $0xc38] sm:$0xff]
        %v961 = vld [vmem:[#allocation7 + $0xc40] sm:$0xff]
        %v962 = vld [vmem:[#allocation7 + $0xc48] sm:$0xff]
        %v963 = vld [vmem:[#allocation7 + $0xc50] sm:$0xff]
        %v964 = vld [vmem:[#allocation7 + $0xc58] sm:$0xff]
        %v965 = vld [vmem:[#allocation7 + $0xc60] sm:$0xff]
        %v966 = vld [vmem:[#allocation7 + $0xc68] sm:$0xff]
        %v967 = vld [vmem:[#allocation7 + $0xc70] sm:$0xff]
        %v968 = vld [vmem:[#allocation7 + $0xc78] sm:$0xff]
        %v969 = vld [vmem:[#allocation7 + $0xc80] sm:$0xff]
        %v970 = vld [vmem:[#allocation7 + $0xc88] sm:$0xff]
        %v971 = vld [vmem:[#allocation7 + $0xc90] sm:$0xff]
        %v972 = vld [vmem:[#allocation7 + $0xc98] sm:$0xff]
        %v973 = vld [vmem:[#allocation7 + $0xca0] sm:$0xff]
        %v974 = vld [vmem:[#allocation7 + $0xca8] sm:$0xff]
        %v975 = vld [vmem:[#allocation7 + $0xcb0] sm:$0xff]
        %v976 = vld [vmem:[#allocation7 + $0xcb8] sm:$0xff]
        %v977 = vld [vmem:[#allocation7 + $0xcc0] sm:$0xff]
        %v978 = vld [vmem:[#allocation7 + $0xcc8] sm:$0xff]
        %v979 = vld [vmem:[#allocation7 + $0xcd0] sm:$0xff]
        %v980 = vld [vmem:[#allocation7 + $0xcd8] sm:$0xff]
        %v981 = vld [vmem:[#allocation7 + $0xce0] sm:$0xff]
        %v982 = vld [vmem:[#allocation7 + $0xce8] sm:$0xff]
        %v983 = vld [vmem:[#allocation7 + $0xcf0] sm:$0xff]
        %v984 = vld [vmem:[#allocation7 + $0xcf8] sm:$0xff]
        %v985 = vld [vmem:[#allocation7 + $0xd00] sm:$0xff]
        %v986 = vld [vmem:[#allocation7 + $0xd08] sm:$0xff]
        %v987 = vld [vmem:[#allocation7 + $0xd10] sm:$0xff]
        %v988 = vld [vmem:[#allocation7 + $0xd18] sm:$0xff]
        %v989 = vld [vmem:[#allocation7 + $0xd20] sm:$0xff]
        %v990 = vld [vmem:[#allocation7 + $0xd28] sm:$0xff]
        %v991 = vld [vmem:[#allocation7 + $0xd30] sm:$0xff]
        %v992 = vld [vmem:[#allocation7 + $0xd38] sm:$0xff]
        %v993 = vld [vmem:[#allocation7 + $0xd40] sm:$0xff]
        %v994 = vld [vmem:[#allocation7 + $0xd48] sm:$0xff]
        %v995 = vld [vmem:[#allocation7 + $0xd50] sm:$0xff]
        %v996 = vld [vmem:[#allocation7 + $0xd58] sm:$0xff]
        %v997 = vld [vmem:[#allocation7 + $0xd60] sm:$0xff]
        %v998 = vld [vmem:[#allocation7 + $0xd68] sm:$0xff]
        %v999 = vld [vmem:[#allocation7 + $0xd70] sm:$0xff]
        %v1000 = vld [vmem:[#allocation7 + $0xd78] sm:$0xff]
        %v1001 = vld [vmem:[#allocation7 + $0xd80] sm:$0xff]
        %v1002 = vld [vmem:[#allocation7 + $0xd88] sm:$0xff]
        %v1003 = vld [vmem:[#allocation7 + $0xd90] sm:$0xff]
        %v1004 = vld [vmem:[#allocation7 + $0xd98] sm:$0xff]
        %v1005 = vld [vmem:[#allocation7 + $0xda0] sm:$0xff]
        %v1006 = vld [vmem:[#allocation7 + $0xda8] sm:$0xff]
        %v1007 = vld [vmem:[#allocation7 + $0xdb0] sm:$0xff]
        %v1008 = vld [vmem:[#allocation7 + $0xdb8] sm:$0xff]
        %v1009 = vld [vmem:[#allocation7 + $0xdc0] sm:$0xff]
        %v1010 = vld [vmem:[#allocation7 + $0xdc8] sm:$0xff]
        %v1011 = vld [vmem:[#allocation7 + $0xdd0] sm:$0xff]
        %v1012 = vld [vmem:[#allocation7 + $0xdd8] sm:$0xff]
        %v1013 = vld [vmem:[#allocation7 + $0xde0] sm:$0xff]
        %v1014 = vld [vmem:[#allocation7 + $0xde8] sm:$0xff]
        %v1015 = vld [vmem:[#allocation7 + $0xdf0] sm:$0xff]
        %v1016 = vld [vmem:[#allocation7 + $0xdf8] sm:$0xff]
        %v1017 = vld [vmem:[#allocation7 + $0xe00] sm:$0xff]
        %v1018 = vld [vmem:[#allocation7 + $0xe08] sm:$0xff]
        %v1019 = vld [vmem:[#allocation7 + $0xe10] sm:$0xff]
        %v1020 = vld [vmem:[#allocation7 + $0xe18] sm:$0xff]
        %v1021 = vld [vmem:[#allocation7 + $0xe20] sm:$0xff]
        %v1022 = vld [vmem:[#allocation7 + $0xe28] sm:$0xff]
        %v1023 = vld [vmem:[#allocation7 + $0xe30] sm:$0xff]
        %v1024 = vld [vmem:[#allocation7 + $0xe38] sm:$0xff]
        %v1025 = vld [vmem:[#allocation7 + $0xe40] sm:$0xff]
        %v1026 = vld [vmem:[#allocation7 + $0xe48] sm:$0xff]
        %v1027 = vld [vmem:[#allocation7 + $0xe50] sm:$0xff]
        %v1028 = vld [vmem:[#allocation7 + $0xe58] sm:$0xff]
        %v1029 = vld [vmem:[#allocation7 + $0xe60] sm:$0xff]
        %v1030 = vld [vmem:[#allocation7 + $0xe68] sm:$0xff]
        %v1031 = vld [vmem:[#allocation7 + $0xe70] sm:$0xff]
        %v1032 = vld [vmem:[#allocation7 + $0xe78] sm:$0xff]
        %v1033 = vld [vmem:[#allocation7 + $0xe80] sm:$0xff]
        %v1034 = vld [vmem:[#allocation7 + $0xe88] sm:$0xff]
        %v1035 = vld [vmem:[#allocation7 + $0xe90] sm:$0xff]
        %v1036 = vld [vmem:[#allocation7 + $0xe98] sm:$0xff]
        %v1037 = vld [vmem:[#allocation7 + $0xea0] sm:$0xff]
        %v1038 = vld [vmem:[#allocation7 + $0xea8] sm:$0xff]
        %v1039 = vld [vmem:[#allocation7 + $0xeb0] sm:$0xff]
        %v1040 = vld [vmem:[#allocation7 + $0xeb8] sm:$0xff]
        %v1041 = vld [vmem:[#allocation7 + $0xec0] sm:$0xff]
        %v1042 = vld [vmem:[#allocation7 + $0xec8] sm:$0xff]
        %v1043 = vld [vmem:[#allocation7 + $0xed0] sm:$0xff]
        %v1044 = vld [vmem:[#allocation7 + $0xed8] sm:$0xff]
        %v1045 = vld [vmem:[#allocation7 + $0xee0] sm:$0xff]
        %v1046 = vld [vmem:[#allocation7 + $0xee8] sm:$0xff]
        %v1047 = vld [vmem:[#allocation7 + $0xef0] sm:$0xff]
        %v1048 = vld [vmem:[#allocation7 + $0xef8] sm:$0xff]
        %v1049 = vld [vmem:[#allocation7 + $0xf00] sm:$0xff]
        %v1050 = vld [vmem:[#allocation7 + $0xf08] sm:$0xff]
        %v1051 = vld [vmem:[#allocation7 + $0xf10] sm:$0xff]
        %v1052 = vld [vmem:[#allocation7 + $0xf18] sm:$0xff]
        %v1053 = vld [vmem:[#allocation7 + $0xf20] sm:$0xff]
        %v1054 = vld [vmem:[#allocation7 + $0xf28] sm:$0xff]
        %v1055 = vld [vmem:[#allocation7 + $0xf30] sm:$0xff]
        %v1056 = vld [vmem:[#allocation7 + $0xf38] sm:$0xff]
        %v1057 = vld [vmem:[#allocation7 + $0xf40] sm:$0xff]
        %v1058 = vld [vmem:[#allocation7 + $0xf48] sm:$0xff]
        %v1059 = vld [vmem:[#allocation7 + $0xf50] sm:$0xff]
        %v1060 = vld [vmem:[#allocation7 + $0xf58] sm:$0xff]
        %v1061 = vld [vmem:[#allocation7 + $0xf60] sm:$0xff]
        %v1062 = vld [vmem:[#allocation7 + $0xf68] sm:$0xff]
        %v1063 = vld [vmem:[#allocation7 + $0xf70] sm:$0xff]
        %v1064 = vld [vmem:[#allocation7 + $0xf78] sm:$0xff]
        %v1065 = vld [vmem:[#allocation7 + $0xf80] sm:$0xff]
        %v1066 = vld [vmem:[#allocation7 + $0xf88] sm:$0xff]
        %v1067 = vld [vmem:[#allocation7 + $0xf90] sm:$0xff]
        %v1068 = vld [vmem:[#allocation7 + $0xf98] sm:$0xff]
        %v1069 = vld [vmem:[#allocation7 + $0xfa0] sm:$0xff]
        %v1070 = vld [vmem:[#allocation7 + $0xfa8] sm:$0xff]
        %v1071 = vld [vmem:[#allocation7 + $0xfb0] sm:$0xff]
        %v1072 = vld [vmem:[#allocation7 + $0xfb8] sm:$0xff]
        %v1073 = vld [vmem:[#allocation7 + $0xfc0] sm:$0xff]
        %v1074 = vld [vmem:[#allocation7 + $0xfc8] sm:$0xff]
        %v1075 = vld [vmem:[#allocation7 + $0xfd0] sm:$0xff]
        %v1076 = vld [vmem:[#allocation7 + $0xfd8] sm:$0xff]
        %v1077 = vld [vmem:[#allocation7 + $0xfe0] sm:$0xff]
        %v1078 = vld [vmem:[#allocation7 + $0xfe8] sm:$0xff]
        %v1079 = vld [vmem:[#allocation7 + $0xff0] sm:$0xff]
        %v1080 = vld [vmem:[#allocation7 + $0xff8] sm:$0xff]
        %v1081 = vld [vmem:[#allocation9] sm:$0xf]
        %v1083 = vlaneseq
        %v1084 = vshrl.u32 %v1083, 7
        %v1085 = vsub.s32 0, %v1084
        %v1086 = vrot.slane %v1081, %v1085
        %v1087 = vlaneseq
        %v1088 = vshrl.u32 %v1087, 7
        %v1089 = vsub.s32 1, %v1088
        %v1090 = vrot.slane %v1081, %v1089
        %v1091 = vlaneseq
        %v1092 = vshrl.u32 %v1091, 7
        %v1093 = vsub.s32 2, %v1092
        %v1094 = vrot.slane %v1081, %v1093
        %v1095 = vlaneseq
        %v1096 = vshrl.u32 %v1095, 7
        %v1097 = vsub.s32 3, %v1096
        %v1098 = vrot.slane %v1081, %v1097
        %1103 = vmatprep.subr.mxu0 %v570
        %1104 = vmatpush1.msra.mxu0 %v569
        %1105 = vmatprep.subr.mxu0 %v574
        %1106 = vmatpush1.msra.mxu0 %v573
        %1107 = vmatprep.subr.mxu0 %v578
        %1108 = vmatpush1.msra.mxu0 %v577
        %1109 = vmatprep.subr.mxu0 %v582
        %1110 = vmatpush1.msra.mxu0 %v581
        %1111 = vmatprep.subr.mxu0 %v586
        %1112 = vmatpush1.msra.mxu0 %v585
        %1113 = vmatprep.subr.mxu0 %v590
        %1114 = vmatpush1.msra.mxu0 %v589
        %1115 = vmatprep.subr.mxu0 %v594
        %1116 = vmatpush1.msra.mxu0 %v593
        %1117 = vmatprep.subr.mxu0 %v598
        %1118 = vmatpush1.msra.mxu0 %v597
        %1119 = vmatprep.subr.mxu0 %v602
        %1120 = vmatpush1.msra.mxu0 %v601
        %1121 = vmatprep.subr.mxu0 %v606
        %1122 = vmatpush1.msra.mxu0 %v605
        %1123 = vmatprep.subr.mxu0 %v610
        %1124 = vmatpush1.msra.mxu0 %v609
        %1125 = vmatprep.subr.mxu0 %v614
        %1126 = vmatpush1.msra.mxu0 %v613
        %1127 = vmatprep.subr.mxu0 %v618
        %1128 = vmatpush1.msra.mxu0 %v617
        %1129 = vmatprep.subr.mxu0 %v622
        %1130 = vmatpush1.msra.mxu0 %v621
        %1131 = vmatprep.subr.mxu0 %v626
        %1132 = vmatpush1.msra.mxu0 %v625
        %1133 = vmatprep.subr.mxu0 %v630
        %1134 = vmatpush1.msra.mxu0 %v629
        %1135 = vmatprep.subr.mxu0 %v634
        %1136 = vmatpush1.msra.mxu0 %v633
        %1137 = vmatprep.subr.mxu0 %v638
        %1138 = vmatpush1.msra.mxu0 %v637
        %1139 = vmatprep.subr.mxu0 %v642
        %1140 = vmatpush1.msra.mxu0 %v641
        %1141 = vmatprep.subr.mxu0 %v646
        %1142 = vmatpush1.msra.mxu0 %v645
        %1143 = vmatprep.subr.mxu0 %v650
        %1144 = vmatpush1.msra.mxu0 %v649
        %1145 = vmatprep.subr.mxu0 %v654
        %1146 = vmatpush1.msra.mxu0 %v653
        %1147 = vmatprep.subr.mxu0 %v658
        %1148 = vmatpush1.msra.mxu0 %v657
        %1149 = vmatprep.subr.mxu0 %v662
        %1150 = vmatpush1.msra.mxu0 %v661
        %1151 = vmatprep.subr.mxu0 %v666
        %1152 = vmatpush1.msra.mxu0 %v665
        %1153 = vmatprep.subr.mxu0 %v670
        %1154 = vmatpush1.msra.mxu0 %v669
        %1155 = vmatprep.subr.mxu0 %v674
        %1156 = vmatpush1.msra.mxu0 %v673
        %1157 = vmatprep.subr.mxu0 %v678
        %1158 = vmatpush1.msra.mxu0 %v677
        %1159 = vmatprep.subr.mxu0 %v682
        %1160 = vmatpush1.msra.mxu0 %v681
        %1161 = vmatprep.subr.mxu0 %v686
        %1162 = vmatpush1.msra.mxu0 %v685
        %1163 = vmatprep.subr.mxu0 %v690
        %1164 = vmatpush1.msra.mxu0 %v689
        %1165 = vmatprep.subr.mxu0 %v694
        %1166 = vmatpush1.msra.mxu0 %v693
        %1167 = vmatprep.mubr.f32.mxu0 %v442
        %1168 = vmatmul.mubr.f32.gmra.mrb[0].mxu0 %v441
        %v1169 = vpop.f32.mrb[0].mxu0
        %v1170 = vadd.f32 %v1086, %v1169
        %v1171 = vpop.f32.mrb[0].mxu0
        %v1172 = vadd.f32 %v1090, %v1171
        %1173 = vmatprep.mubr.f32.mxu0 %v450
        %1174 = vmatmul.mubr.f32.gmra.mrb[0].mxu0 %v449
        %v1175 = vpop.f32.mrb[0].mxu0
        %v1176 = vadd.f32 %v1086, %v1175
        %v1177 = vpop.f32.mrb[0].mxu0
        %v1178 = vadd.f32 %v1090, %v1177
        %1179 = vmatprep.mubr.f32.mxu0 %v458
        %1180 = vmatmul.mubr.f32.gmra.mrb[0].mxu0 %v457
        %v1181 = vpop.f32.mrb[0].mxu0
        %v1182 = vadd.f32 %v1086, %v1181
        %v1183 = vpop.f32.mrb[0].mxu0
        %v1184 = vadd.f32 %v1090, %v1183
        %1185 = vmatprep.mubr.f32.mxu0 %v466
        %1186 = vmatmul.mubr.f32.gmra.mrb[0].mxu0 %v465
        %v1187 = vpop.f32.mrb[0].mxu0
        %v1188 = vadd.f32 %v1086, %v1187
        %v1189 = vpop.f32.mrb[0].mxu0
        %v1190 = vadd.f32 %v1090, %v1189
        %1191 = vmatprep.mubr.f32.mxu0 %v474
        %1192 = vmatmul.mubr.f32.gmra.mrb[0].mxu0 %v473
        %v1193 = vpop.f32.mrb[0].mxu0
        %v1194 = vadd.f32 %v1086, %v1193
        %v1195 = vpop.f32.mrb[0].mxu0
        %v1196 = vadd.f32 %v1090, %v1195
        %1197 = vmatprep.mubr.f32.mxu0 %v482
        %1198 = vmatmul.mubr.f32.gmra.mrb[0].mxu0 %v481
        %v1199 = vpop.f32.mrb[0].mxu0
        %v1200 = vadd.f32 %v1086, %v1199
        %v1201 = vpop.f32.mrb[0].mxu0
        %v1202 = vadd.f32 %v1090, %v1201
        %1203 = vmatprep.mubr.f32.mxu0 %v490
        %1204 = vmatmul.mubr.f32.gmra.mrb[0].mxu0 %v489
        %v1205 = vpop.f32.mrb[0].mxu0
        %v1206 = vadd.f32 %v1086, %v1205
        %v1207 = vpop.f32.mrb[0].mxu0
        %v1208 = vadd.f32 %v1090, %v1207
        %1209 = vmatprep.mubr.f32.mxu0 %v498
        %1210 = vmatmul.mubr.f32.gmra.mrb[0].mxu0 %v497
        %v1211 = vpop.f32.mrb[0].mxu0
        %v1212 = vadd.f32 %v1086, %v1211
        %v1213 = vpop.f32.mrb[0].mxu0
        %v1214 = vadd.f32 %v1090, %v1213
        %1215 = vmatprep.mubr.f32.mxu0 %v506
        %1216 = vmatmul.mubr.f32.gmra.mrb[0].mxu0 %v505
        %v1217 = vpop.f32.mrb[0].mxu0
        %v1218 = vadd.f32 %v1086, %v1217
        %v1219 = vpop.f32.mrb[0].mxu0
        %v1220 = vadd.f32 %v1090, %v1219
        %1221 = vmatprep.mubr.f32.mxu0 %v514
        %1222 = vmatmul.mubr.f32.gmra.mrb[0].mxu0 %v513
        %v1223 = vpop.f32.mrb[0].mxu0
        %v1224 = vadd.f32 %v1086, %v1223
        %v1225 = vpop.f32.mrb[0].mxu0
        %v1226 = vadd.f32 %v1090, %v1225
        %1227 = vmatprep.mubr.f32.mxu0 %v522
        %1228 = vmatmul.mubr.f32.gmra.mrb[0].mxu0 %v521
        %v1229 = vpop.f32.mrb[0].mxu0
        %v1230 = vadd.f32 %v1086, %v1229
        %v1231 = vpop.f32.mrb[0].mxu0
        %v1232 = vadd.f32 %v1090, %v1231
        %1233 = vmatprep.mubr.f32.mxu0 %v530
        %1234 = vmatmul.mubr.f32.gmra.mrb[0].mxu0 %v529
        %v1235 = vpop.f32.mrb[0].mxu0
        %v1236 = vadd.f32 %v1086, %v1235
        %v1237 = vpop.f32.mrb[0].mxu0
        %v1238 = vadd.f32 %v1090, %v1237
        %1239 = vmatprep.mubr.f32.mxu0 %v538
        %1240 = vmatmul.mubr.f32.gmra.mrb[0].mxu0 %v537
        %v1241 = vpop.f32.mrb[0].mxu0
        %v1242 = vadd.f32 %v1086, %v1241
        %v1243 = vpop.f32.mrb[0].mxu0
        %v1244 = vadd.f32 %v1090, %v1243
        %1245 = vmatprep.mubr.f32.mxu0 %v546
        %1246 = vmatmul.mubr.f32.gmra.mrb[0].mxu0 %v545
        %v1247 = vpop.f32.mrb[0].mxu0
        %v1248 = vadd.f32 %v1086, %v1247
        %v1249 = vpop.f32.mrb[0].mxu0
        %v1250 = vadd.f32 %v1090, %v1249
        %1251 = vmatprep.mubr.f32.mxu0 %v554
        %1252 = vmatmul.mubr.f32.gmra.mrb[0].mxu0 %v553
        %v1253 = vpop.f32.mrb[0].mxu0
        %v1254 = vadd.f32 %v1086, %v1253
        %v1255 = vpop.f32.mrb[0].mxu0
        %v1256 = vadd.f32 %v1090, %v1255
        %1257 = vmatprep.mubr.f32.mxu0 %v562
        %1258 = vmatmul.mubr.f32.gmra.mrb[0].mxu0 %v561
        %v1259 = vpop.f32.mrb[0].mxu0
        %v1260 = vadd.f32 %v1086, %v1259
        %v1261 = vpop.f32.mrb[0].mxu0
        %v1262 = vadd.f32 %v1090, %v1261
        %1263 = vdwg.mxu0
        %1264 = vmatprep.subr.mxu0 %v698
        %1265 = vmatpush1.msra.mxu0 %v697
        %1266 = vmatprep.subr.mxu0 %v702
        %1267 = vmatpush1.msra.mxu0 %v701
        %1268 = vmatprep.subr.mxu0 %v706
        %1269 = vmatpush1.msra.mxu0 %v705
        %1270 = vmatprep.subr.mxu0 %v710
        %1271 = vmatpush1.msra.mxu0 %v709
        %1272 = vmatprep.subr.mxu0 %v714
        %1273 = vmatpush1.msra.mxu0 %v713
        %1274 = vmatprep.subr.mxu0 %v718
        %1275 = vmatpush1.msra.mxu0 %v717
        %1276 = vmatprep.subr.mxu0 %v722
        %1277 = vmatpush1.msra.mxu0 %v721
        %1278 = vmatprep.subr.mxu0 %v726
        %1279 = vmatpush1.msra.mxu0 %v725
        %1280 = vmatprep.subr.mxu0 %v730
        %1281 = vmatpush1.msra.mxu0 %v729
        %1282 = vmatprep.subr.mxu0 %v734
        %1283 = vmatpush1.msra.mxu0 %v733
        %1284 = vmatprep.subr.mxu0 %v738
        %1285 = vmatpush1.msra.mxu0 %v737
        %1286 = vmatprep.subr.mxu0 %v742
        %1287 = vmatpush1.msra.mxu0 %v741
        %1288 = vmatprep.subr.mxu0 %v746
        %1289 = vmatpush1.msra.mxu0 %v745
        %1290 = vmatprep.subr.mxu0 %v750
        %1291 = vmatpush1.msra.mxu0 %v749
        %1292 = vmatprep.subr.mxu0 %v754
        %1293 = vmatpush1.msra.mxu0 %v753
        %1294 = vmatprep.subr.mxu0 %v758
        %1295 = vmatpush1.msra.mxu0 %v757
        %1296 = vmatprep.subr.mxu0 %v762
        %1297 = vmatpush1.msra.mxu0 %v761
        %1298 = vmatprep.subr.mxu0 %v766
        %1299 = vmatpush1.msra.mxu0 %v765
        %1300 = vmatprep.subr.mxu0 %v770
        %1301 = vmatpush1.msra.mxu0 %v769
        %1302 = vmatprep.subr.mxu0 %v774
        %1303 = vmatpush1.msra.mxu0 %v773
        %1304 = vmatprep.subr.mxu0 %v778
        %1305 = vmatpush1.msra.mxu0 %v777
        %1306 = vmatprep.subr.mxu0 %v782
        %1307 = vmatpush1.msra.mxu0 %v781
        %1308 = vmatprep.subr.mxu0 %v786
        %1309 = vmatpush1.msra.mxu0 %v785
        %1310 = vmatprep.subr.mxu0 %v790
        %1311 = vmatpush1.msra.mxu0 %v789
        %1312 = vmatprep.subr.mxu0 %v794
        %1313 = vmatpush1.msra.mxu0 %v793
        %1314 = vmatprep.subr.mxu0 %v798
        %1315 = vmatpush1.msra.mxu0 %v797
        %1316 = vmatprep.subr.mxu0 %v802
        %1317 = vmatpush1.msra.mxu0 %v801
        %1318 = vmatprep.subr.mxu0 %v806
        %1319 = vmatpush1.msra.mxu0 %v805
        %1320 = vmatprep.subr.mxu0 %v810
        %1321 = vmatpush1.msra.mxu0 %v809
        %1322 = vmatprep.subr.mxu0 %v814
        %1323 = vmatpush1.msra.mxu0 %v813
        %1324 = vmatprep.subr.mxu0 %v818
        %1325 = vmatpush1.msra.mxu0 %v817
        %1326 = vmatprep.subr.mxu0 %v822
        %1327 = vmatpush1.msra.mxu0 %v821
        %1328 = vmatprep.mubr.f32.mxu0 %v444
        %1329 = vmatmul.mubr.f32.gmra.mrb[0].mxu0 %v443
        %v1330 = vpop.f32.mrb[0].mxu0
        %v1331 = vadd.f32 %v1170, %v1330
        %v1332 = vpop.f32.mrb[0].mxu0
        %v1333 = vadd.f32 %v1172, %v1332
        %1334 = vmatprep.mubr.f32.mxu0 %v452
        %1335 = vmatmul.mubr.f32.gmra.mrb[0].mxu0 %v451
        %v1336 = vpop.f32.mrb[0].mxu0
        %v1337 = vadd.f32 %v1176, %v1336
        %v1338 = vpop.f32.mrb[0].mxu0
        %v1339 = vadd.f32 %v1178, %v1338
        %1340 = vmatprep.mubr.f32.mxu0 %v460
        %1341 = vmatmul.mubr.f32.gmra.mrb[0].mxu0 %v459
        %v1342 = vpop.f32.mrb[0].mxu0
        %v1343 = vadd.f32 %v1182, %v1342
        %v1344 = vpop.f32.mrb[0].mxu0
        %v1345 = vadd.f32 %v1184, %v1344
        %1346 = vmatprep.mubr.f32.mxu0 %v468
        %1347 = vmatmul.mubr.f32.gmra.mrb[0].mxu0 %v467
        %v1348 = vpop.f32.mrb[0].mxu0
        %v1349 = vadd.f32 %v1188, %v1348
        %v1350 = vpop.f32.mrb[0].mxu0
        %v1351 = vadd.f32 %v1190, %v1350
        %1352 = vmatprep.mubr.f32.mxu0 %v476
        %1353 = vmatmul.mubr.f32.gmra.mrb[0].mxu0 %v475
        %v1354 = vpop.f32.mrb[0].mxu0
        %v1355 = vadd.f32 %v1194, %v1354
        %v1356 = vpop.f32.mrb[0].mxu0
        %v1357 = vadd.f32 %v1196, %v1356
        %1358 = vmatprep.mubr.f32.mxu0 %v484
        %1359 = vmatmul.mubr.f32.gmra.mrb[0].mxu0 %v483
        %v1360 = vpop.f32.mrb[0].mxu0
        %v1361 = vadd.f32 %v1200, %v1360
        %v1362 = vpop.f32.mrb[0].mxu0
        %v1363 = vadd.f32 %v1202, %v1362
        %1364 = vmatprep.mubr.f32.mxu0 %v492
        %1365 = vmatmul.mubr.f32.gmra.mrb[0].mxu0 %v491
        %v1366 = vpop.f32.mrb[0].mxu0
        %v1367 = vadd.f32 %v1206, %v1366
        %v1368 = vpop.f32.mrb[0].mxu0
        %v1369 = vadd.f32 %v1208, %v1368
        %1370 = vmatprep.mubr.f32.mxu0 %v500
        %1371 = vmatmul.mubr.f32.gmra.mrb[0].mxu0 %v499
        %v1372 = vpop.f32.mrb[0].mxu0
        %v1373 = vadd.f32 %v1212, %v1372
        %v1374 = vpop.f32.mrb[0].mxu0
        %v1375 = vadd.f32 %v1214, %v1374
        %1376 = vmatprep.mubr.f32.mxu0 %v508
        %1377 = vmatmul.mubr.f32.gmra.mrb[0].mxu0 %v507
        %v1378 = vpop.f32.mrb[0].mxu0
        %v1379 = vadd.f32 %v1218, %v1378
        %v1380 = vpop.f32.mrb[0].mxu0
        %v1381 = vadd.f32 %v1220, %v1380
        %1382 = vmatprep.mubr.f32.mxu0 %v516
        %1383 = vmatmul.mubr.f32.gmra.mrb[0].mxu0 %v515
        %v1384 = vpop.f32.mrb[0].mxu0
        %v1385 = vadd.f32 %v1224, %v1384
        %v1386 = vpop.f32.mrb[0].mxu0
        %v1387 = vadd.f32 %v1226, %v1386
        %1388 = vmatprep.mubr.f32.mxu0 %v524
        %1389 = vmatmul.mubr.f32.gmra.mrb[0].mxu0 %v523
        %v1390 = vpop.f32.mrb[0].mxu0
        %v1391 = vadd.f32 %v1230, %v1390
        %v1392 = vpop.f32.mrb[0].mxu0
        %v1393 = vadd.f32 %v1232, %v1392
        %1394 = vmatprep.mubr.f32.mxu0 %v532
        %1395 = vmatmul.mubr.f32.gmra.mrb[0].mxu0 %v531
        %v1396 = vpop.f32.mrb[0].mxu0
        %v1397 = vadd.f32 %v1236, %v1396
        %v1398 = vpop.f32.mrb[0].mxu0
        %v1399 = vadd.f32 %v1238, %v1398
        %1400 = vmatprep.mubr.f32.mxu0 %v540
        %1401 = vmatmul.mubr.f32.gmra.mrb[0].mxu0 %v539
        %v1402 = vpop.f32.mrb[0].mxu0
        %v1403 = vadd.f32 %v1242, %v1402
        %v1404 = vpop.f32.mrb[0].mxu0
        %v1405 = vadd.f32 %v1244, %v1404
        %1406 = vmatprep.mubr.f32.mxu0 %v548
        %1407 = vmatmul.mubr.f32.gmra.mrb[0].mxu0 %v547
        %v1408 = vpop.f32.mrb[0].mxu0
        %v1409 = vadd.f32 %v1248, %v1408
        %v1410 = vpop.f32.mrb[0].mxu0
        %v1411 = vadd.f32 %v1250, %v1410
        %1412 = vmatprep.mubr.f32.mxu0 %v556
        %1413 = vmatmul.mubr.f32.gmra.mrb[0].mxu0 %v555
        %v1414 = vpop.f32.mrb[0].mxu0
        %v1415 = vadd.f32 %v1254, %v1414
        %v1416 = vpop.f32.mrb[0].mxu0
        %v1417 = vadd.f32 %v1256, %v1416
        %1418 = vmatprep.mubr.f32.mxu0 %v564
        %1419 = vmatmul.mubr.f32.gmra.mrb[0].mxu0 %v563
        %v1420 = vpop.f32.mrb[0].mxu0
        %v1421 = vadd.f32 %v1260, %v1420
        %v1422 = vpop.f32.mrb[0].mxu0
        %v1423 = vadd.f32 %v1262, %v1422
        %1424 = vdwg.mxu0
        %1425 = vmatprep.subr.mxu0 %v826
        %1426 = vmatpush1.msra.mxu0 %v825
        %1427 = vmatprep.subr.mxu0 %v830
        %1428 = vmatpush1.msra.mxu0 %v829
        %1429 = vmatprep.subr.mxu0 %v834
        %1430 = vmatpush1.msra.mxu0 %v833
        %1431 = vmatprep.subr.mxu0 %v838
        %1432 = vmatpush1.msra.mxu0 %v837
        %1433 = vmatprep.subr.mxu0 %v842
        %1434 = vmatpush1.msra.mxu0 %v841
        %1435 = vmatprep.subr.mxu0 %v846
        %1436 = vmatpush1.msra.mxu0 %v845
        %1437 = vmatprep.subr.mxu0 %v850
        %1438 = vmatpush1.msra.mxu0 %v849
        %1439 = vmatprep.subr.mxu0 %v854
        %1440 = vmatpush1.msra.mxu0 %v853
        %1441 = vmatprep.subr.mxu0 %v858
        %1442 = vmatpush1.msra.mxu0 %v857
        %1443 = vmatprep.subr.mxu0 %v862
        %1444 = vmatpush1.msra.mxu0 %v861
        %1445 = vmatprep.subr.mxu0 %v866
        %1446 = vmatpush1.msra.mxu0 %v865
        %1447 = vmatprep.subr.mxu0 %v870
        %1448 = vmatpush1.msra.mxu0 %v869
        %1449 = vmatprep.subr.mxu0 %v874
        %1450 = vmatpush1.msra.mxu0 %v873
        %1451 = vmatprep.subr.mxu0 %v878
        %1452 = vmatpush1.msra.mxu0 %v877
        %1453 = vmatprep.subr.mxu0 %v882
        %1454 = vmatpush1.msra.mxu0 %v881
        %1455 = vmatprep.subr.mxu0 %v886
        %1456 = vmatpush1.msra.mxu0 %v885
        %1457 = vmatprep.subr.mxu0 %v890
        %1458 = vmatpush1.msra.mxu0 %v889
        %1459 = vmatprep.subr.mxu0 %v894
        %1460 = vmatpush1.msra.mxu0 %v893
        %1461 = vmatprep.subr.mxu0 %v898
        %1462 = vmatpush1.msra.mxu0 %v897
        %1463 = vmatprep.subr.mxu0 %v902
        %1464 = vmatpush1.msra.mxu0 %v901
        %1465 = vmatprep.subr.mxu0 %v906
        %1466 = vmatpush1.msra.mxu0 %v905
        %1467 = vmatprep.subr.mxu0 %v910
        %1468 = vmatpush1.msra.mxu0 %v909
        %1469 = vmatprep.subr.mxu0 %v914
        %1470 = vmatpush1.msra.mxu0 %v913
        %1471 = vmatprep.subr.mxu0 %v918
        %1472 = vmatpush1.msra.mxu0 %v917
        %1473 = vmatprep.subr.mxu0 %v922
        %1474 = vmatpush1.msra.mxu0 %v921
        %1475 = vmatprep.subr.mxu0 %v926
        %1476 = vmatpush1.msra.mxu0 %v925
        %1477 = vmatprep.subr.mxu0 %v930
        %1478 = vmatpush1.msra.mxu0 %v929
        %1479 = vmatprep.subr.mxu0 %v934
        %1480 = vmatpush1.msra.mxu0 %v933
        %1481 = vmatprep.subr.mxu0 %v938
        %1482 = vmatpush1.msra.mxu0 %v937
        %1483 = vmatprep.subr.mxu0 %v942
        %1484 = vmatpush1.msra.mxu0 %v941
        %1485 = vmatprep.subr.mxu0 %v946
        %1486 = vmatpush1.msra.mxu0 %v945
        %1487 = vmatprep.subr.mxu0 %v950
        %1488 = vmatpush1.msra.mxu0 %v949
        %1489 = vmatprep.mubr.f32.mxu0 %v446
        %1490 = vmatmul.mubr.f32.gmra.mrb[0].mxu0 %v445
        %v1491 = vpop.f32.mrb[0].mxu0
        %v1492 = vadd.f32 %v1331, %v1491
        %v1493 = vpop.f32.mrb[0].mxu0
        %v1494 = vadd.f32 %v1333, %v1493
        %1495 = vmatprep.mubr.f32.mxu0 %v454
        %1496 = vmatmul.mubr.f32.gmra.mrb[0].mxu0 %v453
        %v1497 = vpop.f32.mrb[0].mxu0
        %v1498 = vadd.f32 %v1337, %v1497
        %v1499 = vpop.f32.mrb[0].mxu0
        %v1500 = vadd.f32 %v1339, %v1499
        %1501 = vmatprep.mubr.f32.mxu0 %v462
        %1502 = vmatmul.mubr.f32.gmra.mrb[0].mxu0 %v461
        %v1503 = vpop.f32.mrb[0].mxu0
        %v1504 = vadd.f32 %v1343, %v1503
        %v1505 = vpop.f32.mrb[0].mxu0
        %v1506 = vadd.f32 %v1345, %v1505
        %1507 = vmatprep.mubr.f32.mxu0 %v470
        %1508 = vmatmul.mubr.f32.gmra.mrb[0].mxu0 %v469
        %v1509 = vpop.f32.mrb[0].mxu0
        %v1510 = vadd.f32 %v1349, %v1509
        %v1511 = vpop.f32.mrb[0].mxu0
        %v1512 = vadd.f32 %v1351, %v1511
        %1513 = vmatprep.mubr.f32.mxu0 %v478
        %1514 = vmatmul.mubr.f32.gmra.mrb[0].mxu0 %v477
        %v1515 = vpop.f32.mrb[0].mxu0
        %v1516 = vadd.f32 %v1355, %v1515
        %v1517 = vpop.f32.mrb[0].mxu0
        %v1518 = vadd.f32 %v1357, %v1517
        %1519 = vmatprep.mubr.f32.mxu0 %v486
        %1520 = vmatmul.mubr.f32.gmra.mrb[0].mxu0 %v485
        %v1521 = vpop.f32.mrb[0].mxu0
        %v1522 = vadd.f32 %v1361, %v1521
        %v1523 = vpop.f32.mrb[0].mxu0
        %v1524 = vadd.f32 %v1363, %v1523
        %1525 = vmatprep.mubr.f32.mxu0 %v494
        %1526 = vmatmul.mubr.f32.gmra.mrb[0].mxu0 %v493
        %v1527 = vpop.f32.mrb[0].mxu0
        %v1528 = vadd.f32 %v1367, %v1527
        %v1529 = vpop.f32.mrb[0].mxu0
        %v1530 = vadd.f32 %v1369, %v1529
        %1531 = vmatprep.mubr.f32.mxu0 %v502
        %1532 = vmatmul.mubr.f32.gmra.mrb[0].mxu0 %v501
        %v1533 = vpop.f32.mrb[0].mxu0
        %v1534 = vadd.f32 %v1373, %v1533
        %v1535 = vpop.f32.mrb[0].mxu0
        %v1536 = vadd.f32 %v1375, %v1535
        %1537 = vmatprep.mubr.f32.mxu0 %v510
        %1538 = vmatmul.mubr.f32.gmra.mrb[0].mxu0 %v509
        %v1539 = vpop.f32.mrb[0].mxu0
        %v1540 = vadd.f32 %v1379, %v1539
        %v1541 = vpop.f32.mrb[0].mxu0
        %v1542 = vadd.f32 %v1381, %v1541
        %1543 = vmatprep.mubr.f32.mxu0 %v518
        %1544 = vmatmul.mubr.f32.gmra.mrb[0].mxu0 %v517
        %v1545 = vpop.f32.mrb[0].mxu0
        %v1546 = vadd.f32 %v1385, %v1545
        %v1547 = vpop.f32.mrb[0].mxu0
        %v1548 = vadd.f32 %v1387, %v1547
        %1549 = vmatprep.mubr.f32.mxu0 %v526
        %1550 = vmatmul.mubr.f32.gmra.mrb[0].mxu0 %v525
        %v1551 = vpop.f32.mrb[0].mxu0
        %v1552 = vadd.f32 %v1391, %v1551
        %v1553 = vpop.f32.mrb[0].mxu0
        %v1554 = vadd.f32 %v1393, %v1553
        %1555 = vmatprep.mubr.f32.mxu0 %v534
        %1556 = vmatmul.mubr.f32.gmra.mrb[0].mxu0 %v533
        %v1557 = vpop.f32.mrb[0].mxu0
        %v1558 = vadd.f32 %v1397, %v1557
        %v1559 = vpop.f32.mrb[0].mxu0
        %v1560 = vadd.f32 %v1399, %v1559
        %1561 = vmatprep.mubr.f32.mxu0 %v542
        %1562 = vmatmul.mubr.f32.gmra.mrb[0].mxu0 %v541
        %v1563 = vpop.f32.mrb[0].mxu0
        %v1564 = vadd.f32 %v1403, %v1563
        %v1565 = vpop.f32.mrb[0].mxu0
        %v1566 = vadd.f32 %v1405, %v1565
        %1567 = vmatprep.mubr.f32.mxu0 %v550
        %1568 = vmatmul.mubr.f32.gmra.mrb[0].mxu0 %v549
        %v1569 = vpop.f32.mrb[0].mxu0
        %v1570 = vadd.f32 %v1409, %v1569
        %v1571 = vpop.f32.mrb[0].mxu0
        %v1572 = vadd.f32 %v1411, %v1571
        %1573 = vmatprep.mubr.f32.mxu0 %v558
        %1574 = vmatmul.mubr.f32.gmra.mrb[0].mxu0 %v557
        %v1575 = vpop.f32.mrb[0].mxu0
        %v1576 = vadd.f32 %v1415, %v1575
        %v1577 = vpop.f32.mrb[0].mxu0
        %v1578 = vadd.f32 %v1417, %v1577
        %1579 = vmatprep.mubr.f32.mxu0 %v566
        %1580 = vmatmul.mubr.f32.gmra.mrb[0].mxu0 %v565
        %v1581 = vpop.f32.mrb[0].mxu0
        %v1582 = vadd.f32 %v1421, %v1581
        %v1583 = vpop.f32.mrb[0].mxu0
        %v1584 = vadd.f32 %v1423, %v1583
        %1585 = vdwg.mxu0
        %1586 = vmatprep.subr.mxu0 %v954
        %1587 = vmatpush1.msra.mxu0 %v953
        %1588 = vmatprep.subr.mxu0 %v958
        %1589 = vmatpush1.msra.mxu0 %v957
        %1590 = vmatprep.subr.mxu0 %v962
        %1591 = vmatpush1.msra.mxu0 %v961
        %1592 = vmatprep.subr.mxu0 %v966
        %1593 = vmatpush1.msra.mxu0 %v965
        %1594 = vmatprep.subr.mxu0 %v970
        %1595 = vmatpush1.msra.mxu0 %v969
        %1596 = vmatprep.subr.mxu0 %v974
        %1597 = vmatpush1.msra.mxu0 %v973
        %1598 = vmatprep.subr.mxu0 %v978
        %1599 = vmatpush1.msra.mxu0 %v977
        %1600 = vmatprep.subr.mxu0 %v982
        %1601 = vmatpush1.msra.mxu0 %v981
        %1602 = vmatprep.subr.mxu0 %v986
        %1603 = vmatpush1.msra.mxu0 %v985
        %1604 = vmatprep.subr.mxu0 %v990
        %1605 = vmatpush1.msra.mxu0 %v989
        %1606 = vmatprep.subr.mxu0 %v994
        %1607 = vmatpush1.msra.mxu0 %v993
        %1608 = vmatprep.subr.mxu0 %v998
        %1609 = vmatpush1.msra.mxu0 %v997
        %1610 = vmatprep.subr.mxu0 %v1002
        %1611 = vmatpush1.msra.mxu0 %v1001
        %1612 = vmatprep.subr.mxu0 %v1006
        %1613 = vmatpush1.msra.mxu0 %v1005
        %1614 = vmatprep.subr.mxu0 %v1010
        %1615 = vmatpush1.msra.mxu0 %v1009
        %1616 = vmatprep.subr.mxu0 %v1014
        %1617 = vmatpush1.msra.mxu0 %v1013
        %1618 = vmatprep.subr.mxu0 %v1018
        %1619 = vmatpush1.msra.mxu0 %v1017
        %1620 = vmatprep.subr.mxu0 %v1022
        %1621 = vmatpush1.msra.mxu0 %v1021
        %1622 = vmatprep.subr.mxu0 %v1026
        %1623 = vmatpush1.msra.mxu0 %v1025
        %1624 = vmatprep.subr.mxu0 %v1030
        %1625 = vmatpush1.msra.mxu0 %v1029
        %1626 = vmatprep.subr.mxu0 %v1034
        %1627 = vmatpush1.msra.mxu0 %v1033
        %1628 = vmatprep.subr.mxu0 %v1038
        %1629 = vmatpush1.msra.mxu0 %v1037
        %1630 = vmatprep.subr.mxu0 %v1042
        %1631 = vmatpush1.msra.mxu0 %v1041
        %1632 = vmatprep.subr.mxu0 %v1046
        %1633 = vmatpush1.msra.mxu0 %v1045
        %1634 = vmatprep.subr.mxu0 %v1050
        %1635 = vmatpush1.msra.mxu0 %v1049
        %1636 = vmatprep.subr.mxu0 %v1054
        %1637 = vmatpush1.msra.mxu0 %v1053
        %1638 = vmatprep.subr.mxu0 %v1058
        %1639 = vmatpush1.msra.mxu0 %v1057
        %1640 = vmatprep.subr.mxu0 %v1062
        %1641 = vmatpush1.msra.mxu0 %v1061
        %1642 = vmatprep.subr.mxu0 %v1066
        %1643 = vmatpush1.msra.mxu0 %v1065
        %1644 = vmatprep.subr.mxu0 %v1070
        %1645 = vmatpush1.msra.mxu0 %v1069
        %1646 = vmatprep.subr.mxu0 %v1074
        %1647 = vmatpush1.msra.mxu0 %v1073
        %1648 = vmatprep.subr.mxu0 %v1078
        %1649 = vmatpush1.msra.mxu0 %v1077
        %1650 = vmatprep.mubr.f32.mxu0 %v448
        %1651 = vmatmul.mubr.f32.gmra.mrb[0].mxu0 %v447
        %v1652 = vpop.f32.mrb[0].mxu0
        %v1653 = vadd.f32 %v1492, %v1652
        %v1654 = vpop.f32.mrb[0].mxu0
        %v1655 = vadd.f32 %v1494, %v1654
        %1656 = vmatprep.mubr.f32.mxu0 %v456
        %1657 = vmatmul.mubr.f32.gmra.mrb[0].mxu0 %v455
        %v1658 = vpop.f32.mrb[0].mxu0
        %v1659 = vadd.f32 %v1498, %v1658
        %v1660 = vpop.f32.mrb[0].mxu0
        %v1661 = vadd.f32 %v1500, %v1660
        %1662 = vmatprep.mubr.f32.mxu0 %v464
        %1663 = vmatmul.mubr.f32.gmra.mrb[0].mxu0 %v463
        %v1664 = vpop.f32.mrb[0].mxu0
        %v1665 = vadd.f32 %v1504, %v1664
        %v1666 = vpop.f32.mrb[0].mxu0
        %v1667 = vadd.f32 %v1506, %v1666
        %1668 = vmatprep.mubr.f32.mxu0 %v472
        %1669 = vmatmul.mubr.f32.gmra.mrb[0].mxu0 %v471
        %v1670 = vpop.f32.mrb[0].mxu0
        %v1671 = vadd.f32 %v1510, %v1670
        %v1672 = vpop.f32.mrb[0].mxu0
        %v1673 = vadd.f32 %v1512, %v1672
        %1674 = vmatprep.mubr.f32.mxu0 %v480
        %1675 = vmatmul.mubr.f32.gmra.mrb[0].mxu0 %v479
        %v1676 = vpop.f32.mrb[0].mxu0
        %v1677 = vadd.f32 %v1516, %v1676
        %v1678 = vpop.f32.mrb[0].mxu0
        %v1679 = vadd.f32 %v1518, %v1678
        %1680 = vmatprep.mubr.f32.mxu0 %v488
        %1681 = vmatmul.mubr.f32.gmra.mrb[0].mxu0 %v487
        %v1682 = vpop.f32.mrb[0].mxu0
        %v1683 = vadd.f32 %v1522, %v1682
        %v1684 = vpop.f32.mrb[0].mxu0
        %v1685 = vadd.f32 %v1524, %v1684
        %1686 = vmatprep.mubr.f32.mxu0 %v496
        %1687 = vmatmul.mubr.f32.gmra.mrb[0].mxu0 %v495
        %v1688 = vpop.f32.mrb[0].mxu0
        %v1689 = vadd.f32 %v1528, %v1688
        %v1690 = vpop.f32.mrb[0].mxu0
        %v1691 = vadd.f32 %v1530, %v1690
        %1692 = vmatprep.mubr.f32.mxu0 %v504
        %1693 = vmatmul.mubr.f32.gmra.mrb[0].mxu0 %v503
        %v1694 = vpop.f32.mrb[0].mxu0
        %v1695 = vadd.f32 %v1534, %v1694
        %v1696 = vpop.f32.mrb[0].mxu0
        %v1697 = vadd.f32 %v1536, %v1696
        %1698 = vmatprep.mubr.f32.mxu0 %v512
        %1699 = vmatmul.mubr.f32.gmra.mrb[0].mxu0 %v511
        %v1700 = vpop.f32.mrb[0].mxu0
        %v1701 = vadd.f32 %v1540, %v1700
        %v1702 = vpop.f32.mrb[0].mxu0
        %v1703 = vadd.f32 %v1542, %v1702
        %1704 = vmatprep.mubr.f32.mxu0 %v520
        %1705 = vmatmul.mubr.f32.gmra.mrb[0].mxu0 %v519
        %v1706 = vpop.f32.mrb[0].mxu0
        %v1707 = vadd.f32 %v1546, %v1706
        %v1708 = vpop.f32.mrb[0].mxu0
        %v1709 = vadd.f32 %v1548, %v1708
        %1710 = vmatprep.mubr.f32.mxu0 %v528
        %1711 = vmatmul.mubr.f32.gmra.mrb[0].mxu0 %v527
        %v1712 = vpop.f32.mrb[0].mxu0
        %v1713 = vadd.f32 %v1552, %v1712
        %v1714 = vpop.f32.mrb[0].mxu0
        %v1715 = vadd.f32 %v1554, %v1714
        %1716 = vmatprep.mubr.f32.mxu0 %v536
        %1717 = vmatmul.mubr.f32.gmra.mrb[0].mxu0 %v535
        %v1718 = vpop.f32.mrb[0].mxu0
        %v1719 = vadd.f32 %v1558, %v1718
        %v1720 = vpop.f32.mrb[0].mxu0
        %v1721 = vadd.f32 %v1560, %v1720
        %1722 = vmatprep.mubr.f32.mxu0 %v544
        %1723 = vmatmul.mubr.f32.gmra.mrb[0].mxu0 %v543
        %v1724 = vpop.f32.mrb[0].mxu0
        %v1725 = vadd.f32 %v1564, %v1724
        %v1726 = vpop.f32.mrb[0].mxu0
        %v1727 = vadd.f32 %v1566, %v1726
        %1728 = vmatprep.mubr.f32.mxu0 %v552
        %1729 = vmatmul.mubr.f32.gmra.mrb[0].mxu0 %v551
        %v1730 = vpop.f32.mrb[0].mxu0
        %v1731 = vadd.f32 %v1570, %v1730
        %v1732 = vpop.f32.mrb[0].mxu0
        %v1733 = vadd.f32 %v1572, %v1732
        %1734 = vmatprep.mubr.f32.mxu0 %v560
        %1735 = vmatmul.mubr.f32.gmra.mrb[0].mxu0 %v559
        %v1736 = vpop.f32.mrb[0].mxu0
        %v1737 = vadd.f32 %v1576, %v1736
        %v1738 = vpop.f32.mrb[0].mxu0
        %v1739 = vadd.f32 %v1578, %v1738
        %1740 = vmatprep.mubr.f32.mxu0 %v568
        %1741 = vmatmul.mubr.f32.gmra.mrb[0].mxu0 %v567
        %v1742 = vpop.f32.mrb[0].mxu0
        %v1743 = vadd.f32 %v1582, %v1742
        %v1744 = vpop.f32.mrb[0].mxu0
        %v1745 = vadd.f32 %v1584, %v1744
        %1746 = vdwg.mxu0
        %1747 = vmatprep.subr.mxu0 %v572
        %1748 = vmatpush1.msra.mxu0 %v571
        %1749 = vmatprep.subr.mxu0 %v576
        %1750 = vmatpush1.msra.mxu0 %v575
        %1751 = vmatprep.subr.mxu0 %v580
        %1752 = vmatpush1.msra.mxu0 %v579
        %1753 = vmatprep.subr.mxu0 %v584
        %1754 = vmatpush1.msra.mxu0 %v583
        %1755 = vmatprep.subr.mxu0 %v588
        %1756 = vmatpush1.msra.mxu0 %v587
        %1757 = vmatprep.subr.mxu0 %v592
        %1758 = vmatpush1.msra.mxu0 %v591
        %1759 = vmatprep.subr.mxu0 %v596
        %1760 = vmatpush1.msra.mxu0 %v595
        %1761 = vmatprep.subr.mxu0 %v600
        %1762 = vmatpush1.msra.mxu0 %v599
        %1763 = vmatprep.subr.mxu0 %v604
        %1764 = vmatpush1.msra.mxu0 %v603
        %1765 = vmatprep.subr.mxu0 %v608
        %1766 = vmatpush1.msra.mxu0 %v607
        %1767 = vmatprep.subr.mxu0 %v612
        %1768 = vmatpush1.msra.mxu0 %v611
        %1769 = vmatprep.subr.mxu0 %v616
        %1770 = vmatpush1.msra.mxu0 %v615
        %1771 = vmatprep.subr.mxu0 %v620
        %1772 = vmatpush1.msra.mxu0 %v619
        %1773 = vmatprep.subr.mxu0 %v624
        %1774 = vmatpush1.msra.mxu0 %v623
        %1775 = vmatprep.subr.mxu0 %v628
        %1776 = vmatpush1.msra.mxu0 %v627
        %1777 = vmatprep.subr.mxu0 %v632
        %1778 = vmatpush1.msra.mxu0 %v631
        %1779 = vmatprep.subr.mxu0 %v636
        %1780 = vmatpush1.msra.mxu0 %v635
        %1781 = vmatprep.subr.mxu0 %v640
        %1782 = vmatpush1.msra.mxu0 %v639
        %1783 = vmatprep.subr.mxu0 %v644
        %1784 = vmatpush1.msra.mxu0 %v643
        %1785 = vmatprep.subr.mxu0 %v648
        %1786 = vmatpush1.msra.mxu0 %v647
        %1787 = vmatprep.subr.mxu0 %v652
        %1788 = vmatpush1.msra.mxu0 %v651
        %1789 = vmatprep.subr.mxu0 %v656
        %1790 = vmatpush1.msra.mxu0 %v655
        %1791 = vmatprep.subr.mxu0 %v660
        %1792 = vmatpush1.msra.mxu0 %v659
        %1793 = vmatprep.subr.mxu0 %v664
        %1794 = vmatpush1.msra.mxu0 %v663
        %1795 = vmatprep.subr.mxu0 %v668
        %1796 = vmatpush1.msra.mxu0 %v667
        %1797 = vmatprep.subr.mxu0 %v672
        %1798 = vmatpush1.msra.mxu0 %v671
        %1799 = vmatprep.subr.mxu0 %v676
        %1800 = vmatpush1.msra.mxu0 %v675
        %1801 = vmatprep.subr.mxu0 %v680
        %1802 = vmatpush1.msra.mxu0 %v679
        %1803 = vmatprep.subr.mxu0 %v684
        %1804 = vmatpush1.msra.mxu0 %v683
        %1805 = vmatprep.subr.mxu0 %v688
        %1806 = vmatpush1.msra.mxu0 %v687
        %1807 = vmatprep.subr.mxu0 %v692
        %1808 = vmatpush1.msra.mxu0 %v691
        %1809 = vmatprep.subr.mxu0 %v696
        %1810 = vmatpush1.msra.mxu0 %v695
        %1811 = vmatprep.mubr.f32.mxu0 %v442
        %1812 = vmatmul.mubr.f32.gmra.mrb[0].mxu0 %v441
        %v1813 = vpop.f32.mrb[0].mxu0
        %v1814 = vadd.f32 %v1094, %v1813
        %v1815 = vpop.f32.mrb[0].mxu0
        %v1816 = vadd.f32 %v1098, %v1815
        %1817 = vmatprep.mubr.f32.mxu0 %v450
        %1818 = vmatmul.mubr.f32.gmra.mrb[0].mxu0 %v449
        %v1819 = vpop.f32.mrb[0].mxu0
        %v1820 = vadd.f32 %v1094, %v1819
        %v1821 = vpop.f32.mrb[0].mxu0
        %v1822 = vadd.f32 %v1098, %v1821
        %1823 = vmatprep.mubr.f32.mxu0 %v458
        %1824 = vmatmul.mubr.f32.gmra.mrb[0].mxu0 %v457
        %v1825 = vpop.f32.mrb[0].mxu0
        %v1826 = vadd.f32 %v1094, %v1825
        %v1827 = vpop.f32.mrb[0].mxu0
        %v1828 = vadd.f32 %v1098, %v1827
        %1829 = vmatprep.mubr.f32.mxu0 %v466
        %1830 = vmatmul.mubr.f32.gmra.mrb[0].mxu0 %v465
        %v1831 = vpop.f32.mrb[0].mxu0
        %v1832 = vadd.f32 %v1094, %v1831
        %v1833 = vpop.f32.mrb[0].mxu0
        %v1834 = vadd.f32 %v1098, %v1833
        %1835 = vmatprep.mubr.f32.mxu0 %v474
        %1836 = vmatmul.mubr.f32.gmra.mrb[0].mxu0 %v473
        %v1837 = vpop.f32.mrb[0].mxu0
        %v1838 = vadd.f32 %v1094, %v1837
        %v1839 = vpop.f32.mrb[0].mxu0
        %v1840 = vadd.f32 %v1098, %v1839
        %1841 = vmatprep.mubr.f32.mxu0 %v482
        %1842 = vmatmul.mubr.f32.gmra.mrb[0].mxu0 %v481
        %v1843 = vpop.f32.mrb[0].mxu0
        %v1844 = vadd.f32 %v1094, %v1843
        %v1845 = vpop.f32.mrb[0].mxu0
        %v1846 = vadd.f32 %v1098, %v1845
        %1847 = vmatprep.mubr.f32.mxu0 %v490
        %1848 = vmatmul.mubr.f32.gmra.mrb[0].mxu0 %v489
        %v1849 = vpop.f32.mrb[0].mxu0
        %v1850 = vadd.f32 %v1094, %v1849
        %v1851 = vpop.f32.mrb[0].mxu0
        %v1852 = vadd.f32 %v1098, %v1851
        %1853 = vmatprep.mubr.f32.mxu0 %v498
        %1854 = vmatmul.mubr.f32.gmra.mrb[0].mxu0 %v497
        %v1855 = vpop.f32.mrb[0].mxu0
        %v1856 = vadd.f32 %v1094, %v1855
        %v1857 = vpop.f32.mrb[0].mxu0
        %v1858 = vadd.f32 %v1098, %v1857
        %1859 = vmatprep.mubr.f32.mxu0 %v506
        %1860 = vmatmul.mubr.f32.gmra.mrb[0].mxu0 %v505
        %v1861 = vpop.f32.mrb[0].mxu0
        %v1862 = vadd.f32 %v1094, %v1861
        %v1863 = vpop.f32.mrb[0].mxu0
        %v1864 = vadd.f32 %v1098, %v1863
        %1865 = vmatprep.mubr.f32.mxu0 %v514
        %1866 = vmatmul.mubr.f32.gmra.mrb[0].mxu0 %v513
        %v1867 = vpop.f32.mrb[0].mxu0
        %v1868 = vadd.f32 %v1094, %v1867
        %v1869 = vpop.f32.mrb[0].mxu0
        %v1870 = vadd.f32 %v1098, %v1869
        %1871 = vmatprep.mubr.f32.mxu0 %v522
        %1872 = vmatmul.mubr.f32.gmra.mrb[0].mxu0 %v521
        %v1873 = vpop.f32.mrb[0].mxu0
        %v1874 = vadd.f32 %v1094, %v1873
        %v1875 = vpop.f32.mrb[0].mxu0
        %v1876 = vadd.f32 %v1098, %v1875
        %1877 = vmatprep.mubr.f32.mxu0 %v530
        %1878 = vmatmul.mubr.f32.gmra.mrb[0].mxu0 %v529
        %v1879 = vpop.f32.mrb[0].mxu0
        %v1880 = vadd.f32 %v1094, %v1879
        %v1881 = vpop.f32.mrb[0].mxu0
        %v1882 = vadd.f32 %v1098, %v1881
        %1883 = vmatprep.mubr.f32.mxu0 %v538
        %1884 = vmatmul.mubr.f32.gmra.mrb[0].mxu0 %v537
        %v1885 = vpop.f32.mrb[0].mxu0
        %v1886 = vadd.f32 %v1094, %v1885
        %v1887 = vpop.f32.mrb[0].mxu0
        %v1888 = vadd.f32 %v1098, %v1887
        %1889 = vmatprep.mubr.f32.mxu0 %v546
        %1890 = vmatmul.mubr.f32.gmra.mrb[0].mxu0 %v545
        %v1891 = vpop.f32.mrb[0].mxu0
        %v1892 = vadd.f32 %v1094, %v1891
        %v1893 = vpop.f32.mrb[0].mxu0
        %v1894 = vadd.f32 %v1098, %v1893
        %1895 = vmatprep.mubr.f32.mxu0 %v554
        %1896 = vmatmul.mubr.f32.gmra.mrb[0].mxu0 %v553
        %v1897 = vpop.f32.mrb[0].mxu0
        %v1898 = vadd.f32 %v1094, %v1897
        %v1899 = vpop.f32.mrb[0].mxu0
        %v1900 = vadd.f32 %v1098, %v1899
        %1901 = vmatprep.mubr.f32.mxu0 %v562
        %1902 = vmatmul.mubr.f32.gmra.mrb[0].mxu0 %v561
        %v1903 = vpop.f32.mrb[0].mxu0
        %v1904 = vadd.f32 %v1094, %v1903
        %v1905 = vpop.f32.mrb[0].mxu0
        %v1906 = vadd.f32 %v1098, %v1905
        %1907 = vdwg.mxu0
        %1908 = vmatprep.subr.mxu0 %v700
        %1909 = vmatpush1.msra.mxu0 %v699
        %1910 = vmatprep.subr.mxu0 %v704
        %1911 = vmatpush1.msra.mxu0 %v703
        %1912 = vmatprep.subr.mxu0 %v708
        %1913 = vmatpush1.msra.mxu0 %v707
        %1914 = vmatprep.subr.mxu0 %v712
        %1915 = vmatpush1.msra.mxu0 %v711
        %1916 = vmatprep.subr.mxu0 %v716
        %1917 = vmatpush1.msra.mxu0 %v715
        %1918 = vmatprep.subr.mxu0 %v720
        %1919 = vmatpush1.msra.mxu0 %v719
        %1920 = vmatprep.subr.mxu0 %v724
        %1921 = vmatpush1.msra.mxu0 %v723
        %1922 = vmatprep.subr.mxu0 %v728
        %1923 = vmatpush1.msra.mxu0 %v727
        %1924 = vmatprep.subr.mxu0 %v732
        %1925 = vmatpush1.msra.mxu0 %v731
        %1926 = vmatprep.subr.mxu0 %v736
        %1927 = vmatpush1.msra.mxu0 %v735
        %1928 = vmatprep.subr.mxu0 %v740
        %1929 = vmatpush1.msra.mxu0 %v739
        %1930 = vmatprep.subr.mxu0 %v744
        %1931 = vmatpush1.msra.mxu0 %v743
        %1932 = vmatprep.subr.mxu0 %v748
        %1933 = vmatpush1.msra.mxu0 %v747
        %1934 = vmatprep.subr.mxu0 %v752
        %1935 = vmatpush1.msra.mxu0 %v751
        %1936 = vmatprep.subr.mxu0 %v756
        %1937 = vmatpush1.msra.mxu0 %v755
        %1938 = vmatprep.subr.mxu0 %v760
        %1939 = vmatpush1.msra.mxu0 %v759
        %1940 = vmatprep.subr.mxu0 %v764
        %1941 = vmatpush1.msra.mxu0 %v763
        %1942 = vmatprep.subr.mxu0 %v768
        %1943 = vmatpush1.msra.mxu0 %v767
        %1944 = vmatprep.subr.mxu0 %v772
        %1945 = vmatpush1.msra.mxu0 %v771
        %1946 = vmatprep.subr.mxu0 %v776
        %1947 = vmatpush1.msra.mxu0 %v775
        %1948 = vmatprep.subr.mxu0 %v780
        %1949 = vmatpush1.msra.mxu0 %v779
        %1950 = vmatprep.subr.mxu0 %v784
        %1951 = vmatpush1.msra.mxu0 %v783
        %1952 = vmatprep.subr.mxu0 %v788
        %1953 = vmatpush1.msra.mxu0 %v787
        %1954 = vmatprep.subr.mxu0 %v792
        %1955 = vmatpush1.msra.mxu0 %v791
        %1956 = vmatprep.subr.mxu0 %v796
        %1957 = vmatpush1.msra.mxu0 %v795
        %1958 = vmatprep.subr.mxu0 %v800
        %1959 = vmatpush1.msra.mxu0 %v799
        %1960 = vmatprep.subr.mxu0 %v804
        %1961 = vmatpush1.msra.mxu0 %v803
        %1962 = vmatprep.subr.mxu0 %v808
        %1963 = vmatpush1.msra.mxu0 %v807
        %1964 = vmatprep.subr.mxu0 %v812
        %1965 = vmatpush1.msra.mxu0 %v811
        %1966 = vmatprep.subr.mxu0 %v816
        %1967 = vmatpush1.msra.mxu0 %v815
        %1968 = vmatprep.subr.mxu0 %v820
        %1969 = vmatpush1.msra.mxu0 %v819
        %1970 = vmatprep.subr.mxu0 %v824
        %1971 = vmatpush1.msra.mxu0 %v823
        %1972 = vmatprep.mubr.f32.mxu0 %v444
        %1973 = vmatmul.mubr.f32.gmra.mrb[0].mxu0 %v443
        %v1974 = vpop.f32.mrb[0].mxu0
        %v1975 = vadd.f32 %v1814, %v1974
        %v1976 = vpop.f32.mrb[0].mxu0
        %v1977 = vadd.f32 %v1816, %v1976
        %1978 = vmatprep.mubr.f32.mxu0 %v452
        %1979 = vmatmul.mubr.f32.gmra.mrb[0].mxu0 %v451
        %v1980 = vpop.f32.mrb[0].mxu0
        %v1981 = vadd.f32 %v1820, %v1980
        %v1982 = vpop.f32.mrb[0].mxu0
        %v1983 = vadd.f32 %v1822, %v1982
        %1984 = vmatprep.mubr.f32.mxu0 %v460
        %1985 = vmatmul.mubr.f32.gmra.mrb[0].mxu0 %v459
        %v1986 = vpop.f32.mrb[0].mxu0
        %v1987 = vadd.f32 %v1826, %v1986
        %v1988 = vpop.f32.mrb[0].mxu0
        %v1989 = vadd.f32 %v1828, %v1988
        %1990 = vmatprep.mubr.f32.mxu0 %v468
        %1991 = vmatmul.mubr.f32.gmra.mrb[0].mxu0 %v467
        %v1992 = vpop.f32.mrb[0].mxu0
        %v1993 = vadd.f32 %v1832, %v1992
        %v1994 = vpop.f32.mrb[0].mxu0
        %v1995 = vadd.f32 %v1834, %v1994
        %1996 = vmatprep.mubr.f32.mxu0 %v476
        %1997 = vmatmul.mubr.f32.gmra.mrb[0].mxu0 %v475
        %v1998 = vpop.f32.mrb[0].mxu0
        %v1999 = vadd.f32 %v1838, %v1998
        %v2000 = vpop.f32.mrb[0].mxu0
        %v2001 = vadd.f32 %v1840, %v2000
        %2002 = vmatprep.mubr.f32.mxu0 %v484
        %2003 = vmatmul.mubr.f32.gmra.mrb[0].mxu0 %v483
        %v2004 = vpop.f32.mrb[0].mxu0
        %v2005 = vadd.f32 %v1844, %v2004
        %v2006 = vpop.f32.mrb[0].mxu0
        %v2007 = vadd.f32 %v1846, %v2006
        %2008 = vmatprep.mubr.f32.mxu0 %v492
        %2009 = vmatmul.mubr.f32.gmra.mrb[0].mxu0 %v491
        %v2010 = vpop.f32.mrb[0].mxu0
        %v2011 = vadd.f32 %v1850, %v2010
        %v2012 = vpop.f32.mrb[0].mxu0
        %v2013 = vadd.f32 %v1852, %v2012
        %2014 = vmatprep.mubr.f32.mxu0 %v500
        %2015 = vmatmul.mubr.f32.gmra.mrb[0].mxu0 %v499
        %v2016 = vpop.f32.mrb[0].mxu0
        %v2017 = vadd.f32 %v1856, %v2016
        %v2018 = vpop.f32.mrb[0].mxu0
        %v2019 = vadd.f32 %v1858, %v2018
        %2020 = vmatprep.mubr.f32.mxu0 %v508
        %2021 = vmatmul.mubr.f32.gmra.mrb[0].mxu0 %v507
        %v2022 = vpop.f32.mrb[0].mxu0
        %v2023 = vadd.f32 %v1862, %v2022
        %v2024 = vpop.f32.mrb[0].mxu0
        %v2025 = vadd.f32 %v1864, %v2024
        %2026 = vmatprep.mubr.f32.mxu0 %v516
        %2027 = vmatmul.mubr.f32.gmra.mrb[0].mxu0 %v515
        %v2028 = vpop.f32.mrb[0].mxu0
        %v2029 = vadd.f32 %v1868, %v2028
        %v2030 = vpop.f32.mrb[0].mxu0
        %v2031 = vadd.f32 %v1870, %v2030
        %2032 = vmatprep.mubr.f32.mxu0 %v524
        %2033 = vmatmul.mubr.f32.gmra.mrb[0].mxu0 %v523
        %v2034 = vpop.f32.mrb[0].mxu0
        %v2035 = vadd.f32 %v1874, %v2034
        %v2036 = vpop.f32.mrb[0].mxu0
        %v2037 = vadd.f32 %v1876, %v2036
        %2038 = vmatprep.mubr.f32.mxu0 %v532
        %2039 = vmatmul.mubr.f32.gmra.mrb[0].mxu0 %v531
        %v2040 = vpop.f32.mrb[0].mxu0
        %v2041 = vadd.f32 %v1880, %v2040
        %v2042 = vpop.f32.mrb[0].mxu0
        %v2043 = vadd.f32 %v1882, %v2042
        %2044 = vmatprep.mubr.f32.mxu0 %v540
        %2045 = vmatmul.mubr.f32.gmra.mrb[0].mxu0 %v539
        %v2046 = vpop.f32.mrb[0].mxu0
        %v2047 = vadd.f32 %v1886, %v2046
        %v2048 = vpop.f32.mrb[0].mxu0
        %v2049 = vadd.f32 %v1888, %v2048
        %2050 = vmatprep.mubr.f32.mxu0 %v548
        %2051 = vmatmul.mubr.f32.gmra.mrb[0].mxu0 %v547
        %v2052 = vpop.f32.mrb[0].mxu0
        %v2053 = vadd.f32 %v1892, %v2052
        %v2054 = vpop.f32.mrb[0].mxu0
        %v2055 = vadd.f32 %v1894, %v2054
        %2056 = vmatprep.mubr.f32.mxu0 %v556
        %2057 = vmatmul.mubr.f32.gmra.mrb[0].mxu0 %v555
        %v2058 = vpop.f32.mrb[0].mxu0
        %v2059 = vadd.f32 %v1898, %v2058
        %v2060 = vpop.f32.mrb[0].mxu0
        %v2061 = vadd.f32 %v1900, %v2060
        %2062 = vmatprep.mubr.f32.mxu0 %v564
        %2063 = vmatmul.mubr.f32.gmra.mrb[0].mxu0 %v563
        %v2064 = vpop.f32.mrb[0].mxu0
        %v2065 = vadd.f32 %v1904, %v2064
        %v2066 = vpop.f32.mrb[0].mxu0
        %v2067 = vadd.f32 %v1906, %v2066
        %2068 = vdwg.mxu0
        %2069 = vmatprep.subr.mxu0 %v828
        %2070 = vmatpush1.msra.mxu0 %v827
        %2071 = vmatprep.subr.mxu0 %v832
        %2072 = vmatpush1.msra.mxu0 %v831
        %2073 = vmatprep.subr.mxu0 %v836
        %2074 = vmatpush1.msra.mxu0 %v835
        %2075 = vmatprep.subr.mxu0 %v840
        %2076 = vmatpush1.msra.mxu0 %v839
        %2077 = vmatprep.subr.mxu0 %v844
        %2078 = vmatpush1.msra.mxu0 %v843
        %2079 = vmatprep.subr.mxu0 %v848
        %2080 = vmatpush1.msra.mxu0 %v847
        %2081 = vmatprep.subr.mxu0 %v852
        %2082 = vmatpush1.msra.mxu0 %v851
        %2083 = vmatprep.subr.mxu0 %v856
        %2084 = vmatpush1.msra.mxu0 %v855
        %2085 = vmatprep.subr.mxu0 %v860
        %2086 = vmatpush1.msra.mxu0 %v859
        %2087 = vmatprep.subr.mxu0 %v864
        %2088 = vmatpush1.msra.mxu0 %v863
        %2089 = vmatprep.subr.mxu0 %v868
        %2090 = vmatpush1.msra.mxu0 %v867
        %2091 = vmatprep.subr.mxu0 %v872
        %2092 = vmatpush1.msra.mxu0 %v871
        %2093 = vmatprep.subr.mxu0 %v876
        %2094 = vmatpush1.msra.mxu0 %v875
        %2095 = vmatprep.subr.mxu0 %v880
        %2096 = vmatpush1.msra.mxu0 %v879
        %2097 = vmatprep.subr.mxu0 %v884
        %2098 = vmatpush1.msra.mxu0 %v883
        %2099 = vmatprep.subr.mxu0 %v888
        %2100 = vmatpush1.msra.mxu0 %v887
        %2101 = vmatprep.subr.mxu0 %v892
        %2102 = vmatpush1.msra.mxu0 %v891
        %2103 = vmatprep.subr.mxu0 %v896
        %2104 = vmatpush1.msra.mxu0 %v895
        %2105 = vmatprep.subr.mxu0 %v900
        %2106 = vmatpush1.msra.mxu0 %v899
        %2107 = vmatprep.subr.mxu0 %v904
        %2108 = vmatpush1.msra.mxu0 %v903
        %2109 = vmatprep.subr.mxu0 %v908
        %2110 = vmatpush1.msra.mxu0 %v907
        %2111 = vmatprep.subr.mxu0 %v912
        %2112 = vmatpush1.msra.mxu0 %v911
        %2113 = vmatprep.subr.mxu0 %v916
        %2114 = vmatpush1.msra.mxu0 %v915
        %2115 = vmatprep.subr.mxu0 %v920
        %2116 = vmatpush1.msra.mxu0 %v919
        %2117 = vmatprep.subr.mxu0 %v924
        %2118 = vmatpush1.msra.mxu0 %v923
        %2119 = vmatprep.subr.mxu0 %v928
        %2120 = vmatpush1.msra.mxu0 %v927
        %2121 = vmatprep.subr.mxu0 %v932
        %2122 = vmatpush1.msra.mxu0 %v931
        %2123 = vmatprep.subr.mxu0 %v936
        %2124 = vmatpush1.msra.mxu0 %v935
        %2125 = vmatprep.subr.mxu0 %v940
        %2126 = vmatpush1.msra.mxu0 %v939
        %2127 = vmatprep.subr.mxu0 %v944
        %2128 = vmatpush1.msra.mxu0 %v943
        %2129 = vmatprep.subr.mxu0 %v948
        %2130 = vmatpush1.msra.mxu0 %v947
        %2131 = vmatprep.subr.mxu0 %v952
        %2132 = vmatpush1.msra.mxu0 %v951
        %2133 = vmatprep.mubr.f32.mxu0 %v446
        %2134 = vmatmul.mubr.f32.gmra.mrb[0].mxu0 %v445
        %v2135 = vpop.f32.mrb[0].mxu0
        %v2136 = vadd.f32 %v1975, %v2135
        %v2137 = vpop.f32.mrb[0].mxu0
        %v2138 = vadd.f32 %v1977, %v2137
        %2139 = vmatprep.mubr.f32.mxu0 %v454
        %2140 = vmatmul.mubr.f32.gmra.mrb[0].mxu0 %v453
        %v2141 = vpop.f32.mrb[0].mxu0
        %v2142 = vadd.f32 %v1981, %v2141
        %v2143 = vpop.f32.mrb[0].mxu0
        %v2144 = vadd.f32 %v1983, %v2143
        %2145 = vmatprep.mubr.f32.mxu0 %v462
        %2146 = vmatmul.mubr.f32.gmra.mrb[0].mxu0 %v461
        %v2147 = vpop.f32.mrb[0].mxu0
        %v2148 = vadd.f32 %v1987, %v2147
        %v2149 = vpop.f32.mrb[0].mxu0
        %v2150 = vadd.f32 %v1989, %v2149
        %2151 = vmatprep.mubr.f32.mxu0 %v470
        %2152 = vmatmul.mubr.f32.gmra.mrb[0].mxu0 %v469
        %v2153 = vpop.f32.mrb[0].mxu0
        %v2154 = vadd.f32 %v1993, %v2153
        %v2155 = vpop.f32.mrb[0].mxu0
        %v2156 = vadd.f32 %v1995, %v2155
        %2157 = vmatprep.mubr.f32.mxu0 %v478
        %2158 = vmatmul.mubr.f32.gmra.mrb[0].mxu0 %v477
        %v2159 = vpop.f32.mrb[0].mxu0
        %v2160 = vadd.f32 %v1999, %v2159
        %v2161 = vpop.f32.mrb[0].mxu0
        %v2162 = vadd.f32 %v2001, %v2161
        %2163 = vmatprep.mubr.f32.mxu0 %v486
        %2164 = vmatmul.mubr.f32.gmra.mrb[0].mxu0 %v485
        %v2165 = vpop.f32.mrb[0].mxu0
        %v2166 = vadd.f32 %v2005, %v2165
        %v2167 = vpop.f32.mrb[0].mxu0
        %v2168 = vadd.f32 %v2007, %v2167
        %2169 = vmatprep.mubr.f32.mxu0 %v494
        %2170 = vmatmul.mubr.f32.gmra.mrb[0].mxu0 %v493
        %v2171 = vpop.f32.mrb[0].mxu0
        %v2172 = vadd.f32 %v2011, %v2171
        %v2173 = vpop.f32.mrb[0].mxu0
        %v2174 = vadd.f32 %v2013, %v2173
        %2175 = vmatprep.mubr.f32.mxu0 %v502
        %2176 = vmatmul.mubr.f32.gmra.mrb[0].mxu0 %v501
        %v2177 = vpop.f32.mrb[0].mxu0
        %v2178 = vadd.f32 %v2017, %v2177
        %v2179 = vpop.f32.mrb[0].mxu0
        %v2180 = vadd.f32 %v2019, %v2179
        %2181 = vmatprep.mubr.f32.mxu0 %v510
        %2182 = vmatmul.mubr.f32.gmra.mrb[0].mxu0 %v509
        %v2183 = vpop.f32.mrb[0].mxu0
        %v2184 = vadd.f32 %v2023, %v2183
        %v2185 = vpop.f32.mrb[0].mxu0
        %v2186 = vadd.f32 %v2025, %v2185
        %2187 = vmatprep.mubr.f32.mxu0 %v518
        %2188 = vmatmul.mubr.f32.gmra.mrb[0].mxu0 %v517
        %v2189 = vpop.f32.mrb[0].mxu0
        %v2190 = vadd.f32 %v2029, %v2189
        %v2191 = vpop.f32.mrb[0].mxu0
        %v2192 = vadd.f32 %v2031, %v2191
        %2193 = vmatprep.mubr.f32.mxu0 %v526
        %2194 = vmatmul.mubr.f32.gmra.mrb[0].mxu0 %v525
        %v2195 = vpop.f32.mrb[0].mxu0
        %v2196 = vadd.f32 %v2035, %v2195
        %v2197 = vpop.f32.mrb[0].mxu0
        %v2198 = vadd.f32 %v2037, %v2197
        %2199 = vmatprep.mubr.f32.mxu0 %v534
        %2200 = vmatmul.mubr.f32.gmra.mrb[0].mxu0 %v533
        %v2201 = vpop.f32.mrb[0].mxu0
        %v2202 = vadd.f32 %v2041, %v2201
        %v2203 = vpop.f32.mrb[0].mxu0
        %v2204 = vadd.f32 %v2043, %v2203
        %2205 = vmatprep.mubr.f32.mxu0 %v542
        %2206 = vmatmul.mubr.f32.gmra.mrb[0].mxu0 %v541
        %v2207 = vpop.f32.mrb[0].mxu0
        %v2208 = vadd.f32 %v2047, %v2207
        %v2209 = vpop.f32.mrb[0].mxu0
        %v2210 = vadd.f32 %v2049, %v2209
        %2211 = vmatprep.mubr.f32.mxu0 %v550
        %2212 = vmatmul.mubr.f32.gmra.mrb[0].mxu0 %v549
        %v2213 = vpop.f32.mrb[0].mxu0
        %v2214 = vadd.f32 %v2053, %v2213
        %v2215 = vpop.f32.mrb[0].mxu0
        %v2216 = vadd.f32 %v2055, %v2215
        %2217 = vmatprep.mubr.f32.mxu0 %v558
        %2218 = vmatmul.mubr.f32.gmra.mrb[0].mxu0 %v557
        %v2219 = vpop.f32.mrb[0].mxu0
        %v2220 = vadd.f32 %v2059, %v2219
        %v2221 = vpop.f32.mrb[0].mxu0
        %v2222 = vadd.f32 %v2061, %v2221
        %2223 = vmatprep.mubr.f32.mxu0 %v566
        %2224 = vmatmul.mubr.f32.gmra.mrb[0].mxu0 %v565
        %v2225 = vpop.f32.mrb[0].mxu0
        %v2226 = vadd.f32 %v2065, %v2225
        %v2227 = vpop.f32.mrb[0].mxu0
        %v2228 = vadd.f32 %v2067, %v2227
        %2229 = vdwg.mxu0
        %2230 = vmatprep.subr.mxu0 %v956
        %2231 = vmatpush1.msra.mxu0 %v955
        %2232 = vmatprep.subr.mxu0 %v960
        %2233 = vmatpush1.msra.mxu0 %v959
        %2234 = vmatprep.subr.mxu0 %v964
        %2235 = vmatpush1.msra.mxu0 %v963
        %2236 = vmatprep.subr.mxu0 %v968
        %2237 = vmatpush1.msra.mxu0 %v967
        %2238 = vmatprep.subr.mxu0 %v972
        %2239 = vmatpush1.msra.mxu0 %v971
        %2240 = vmatprep.subr.mxu0 %v976
        %2241 = vmatpush1.msra.mxu0 %v975
        %2242 = vmatprep.subr.mxu0 %v980
        %2243 = vmatpush1.msra.mxu0 %v979
        %2244 = vmatprep.subr.mxu0 %v984
        %2245 = vmatpush1.msra.mxu0 %v983
        %2246 = vmatprep.subr.mxu0 %v988
        %2247 = vmatpush1.msra.mxu0 %v987
        %2248 = vmatprep.subr.mxu0 %v992
        %2249 = vmatpush1.msra.mxu0 %v991
        %2250 = vmatprep.subr.mxu0 %v996
        %2251 = vmatpush1.msra.mxu0 %v995
        %2252 = vmatprep.subr.mxu0 %v1000
        %2253 = vmatpush1.msra.mxu0 %v999
        %2254 = vmatprep.subr.mxu0 %v1004
        %2255 = vmatpush1.msra.mxu0 %v1003
        %2256 = vmatprep.subr.mxu0 %v1008
        %2257 = vmatpush1.msra.mxu0 %v1007
        %2258 = vmatprep.subr.mxu0 %v1012
        %2259 = vmatpush1.msra.mxu0 %v1011
        %2260 = vmatprep.subr.mxu0 %v1016
        %2261 = vmatpush1.msra.mxu0 %v1015
        %2262 = vmatprep.subr.mxu0 %v1020
        %2263 = vmatpush1.msra.mxu0 %v1019
        %2264 = vmatprep.subr.mxu0 %v1024
        %2265 = vmatpush1.msra.mxu0 %v1023
        %2266 = vmatprep.subr.mxu0 %v1028
        %2267 = vmatpush1.msra.mxu0 %v1027
        %2268 = vmatprep.subr.mxu0 %v1032
        %2269 = vmatpush1.msra.mxu0 %v1031
        %2270 = vmatprep.subr.mxu0 %v1036
        %2271 = vmatpush1.msra.mxu0 %v1035
        %2272 = vmatprep.subr.mxu0 %v1040
        %2273 = vmatpush1.msra.mxu0 %v1039
        %2274 = vmatprep.subr.mxu0 %v1044
        %2275 = vmatpush1.msra.mxu0 %v1043
        %2276 = vmatprep.subr.mxu0 %v1048
        %2277 = vmatpush1.msra.mxu0 %v1047
        %2278 = vmatprep.subr.mxu0 %v1052
        %2279 = vmatpush1.msra.mxu0 %v1051
        %2280 = vmatprep.subr.mxu0 %v1056
        %2281 = vmatpush1.msra.mxu0 %v1055
        %2282 = vmatprep.subr.mxu0 %v1060
        %2283 = vmatpush1.msra.mxu0 %v1059
        %2284 = vmatprep.subr.mxu0 %v1064
        %2285 = vmatpush1.msra.mxu0 %v1063
        %2286 = vmatprep.subr.mxu0 %v1068
        %2287 = vmatpush1.msra.mxu0 %v1067
        %2288 = vmatprep.subr.mxu0 %v1072
        %2289 = vmatpush1.msra.mxu0 %v1071
        %2290 = vmatprep.subr.mxu0 %v1076
        %2291 = vmatpush1.msra.mxu0 %v1075
        %2292 = vmatprep.subr.mxu0 %v1080
        %2293 = vmatpush1.msra.mxu0 %v1079
        %2294 = vmatprep.mubr.f32.mxu0 %v448
        %2295 = vmatmul.mubr.f32.gmra.mrb[0].mxu0 %v447
        %v2296 = vpop.f32.mrb[0].mxu0
        %v2297 = vadd.f32 %v2136, %v2296
        %v2298 = vpop.f32.mrb[0].mxu0
        %v2299 = vadd.f32 %v2138, %v2298
        %2300 = vmatprep.mubr.f32.mxu0 %v456
        %2301 = vmatmul.mubr.f32.gmra.mrb[0].mxu0 %v455
        %v2302 = vpop.f32.mrb[0].mxu0
        %v2303 = vadd.f32 %v2142, %v2302
        %v2304 = vpop.f32.mrb[0].mxu0
        %v2305 = vadd.f32 %v2144, %v2304
        %2306 = vmatprep.mubr.f32.mxu0 %v464
        %2307 = vmatmul.mubr.f32.gmra.mrb[0].mxu0 %v463
        %v2308 = vpop.f32.mrb[0].mxu0
        %v2309 = vadd.f32 %v2148, %v2308
        %v2310 = vpop.f32.mrb[0].mxu0
        %v2311 = vadd.f32 %v2150, %v2310
        %2312 = vmatprep.mubr.f32.mxu0 %v472
        %2313 = vmatmul.mubr.f32.gmra.mrb[0].mxu0 %v471
        %v2314 = vpop.f32.mrb[0].mxu0
        %v2315 = vadd.f32 %v2154, %v2314
        %v2316 = vpop.f32.mrb[0].mxu0
        %v2317 = vadd.f32 %v2156, %v2316
        %2318 = vmatprep.mubr.f32.mxu0 %v480
        %2319 = vmatmul.mubr.f32.gmra.mrb[0].mxu0 %v479
        %v2320 = vpop.f32.mrb[0].mxu0
        %v2321 = vadd.f32 %v2160, %v2320
        %v2322 = vpop.f32.mrb[0].mxu0
        %v2323 = vadd.f32 %v2162, %v2322
        %2324 = vmatprep.mubr.f32.mxu0 %v488
        %2325 = vmatmul.mubr.f32.gmra.mrb[0].mxu0 %v487
        %v2326 = vpop.f32.mrb[0].mxu0
        %v2327 = vadd.f32 %v2166, %v2326
        %v2328 = vpop.f32.mrb[0].mxu0
        %v2329 = vadd.f32 %v2168, %v2328
        %2330 = vmatprep.mubr.f32.mxu0 %v496
        %2331 = vmatmul.mubr.f32.gmra.mrb[0].mxu0 %v495
        %v2332 = vpop.f32.mrb[0].mxu0
        %v2333 = vadd.f32 %v2172, %v2332
        %v2334 = vpop.f32.mrb[0].mxu0
        %v2335 = vadd.f32 %v2174, %v2334
        %2336 = vmatprep.mubr.f32.mxu0 %v504
        %2337 = vmatmul.mubr.f32.gmra.mrb[0].mxu0 %v503
        %v2338 = vpop.f32.mrb[0].mxu0
        %v2339 = vadd.f32 %v2178, %v2338
        %v2340 = vpop.f32.mrb[0].mxu0
        %v2341 = vadd.f32 %v2180, %v2340
        %2342 = vmatprep.mubr.f32.mxu0 %v512
        %2343 = vmatmul.mubr.f32.gmra.mrb[0].mxu0 %v511
        %v2344 = vpop.f32.mrb[0].mxu0
        %v2345 = vadd.f32 %v2184, %v2344
        %v2346 = vpop.f32.mrb[0].mxu0
        %v2347 = vadd.f32 %v2186, %v2346
        %2348 = vmatprep.mubr.f32.mxu0 %v520
        %2349 = vmatmul.mubr.f32.gmra.mrb[0].mxu0 %v519
        %v2350 = vpop.f32.mrb[0].mxu0
        %v2351 = vadd.f32 %v2190, %v2350
        %v2352 = vpop.f32.mrb[0].mxu0
        %v2353 = vadd.f32 %v2192, %v2352
        %2354 = vmatprep.mubr.f32.mxu0 %v528
        %2355 = vmatmul.mubr.f32.gmra.mrb[0].mxu0 %v527
        %v2356 = vpop.f32.mrb[0].mxu0
        %v2357 = vadd.f32 %v2196, %v2356
        %v2358 = vpop.f32.mrb[0].mxu0
        %v2359 = vadd.f32 %v2198, %v2358
        %2360 = vmatprep.mubr.f32.mxu0 %v536
        %2361 = vmatmul.mubr.f32.gmra.mrb[0].mxu0 %v535
        %v2362 = vpop.f32.mrb[0].mxu0
        %v2363 = vadd.f32 %v2202, %v2362
        %v2364 = vpop.f32.mrb[0].mxu0
        %v2365 = vadd.f32 %v2204, %v2364
        %2366 = vmatprep.mubr.f32.mxu0 %v544
        %2367 = vmatmul.mubr.f32.gmra.mrb[0].mxu0 %v543
        %v2368 = vpop.f32.mrb[0].mxu0
        %v2369 = vadd.f32 %v2208, %v2368
        %v2370 = vpop.f32.mrb[0].mxu0
        %v2371 = vadd.f32 %v2210, %v2370
        %2372 = vmatprep.mubr.f32.mxu0 %v552
        %2373 = vmatmul.mubr.f32.gmra.mrb[0].mxu0 %v551
        %v2374 = vpop.f32.mrb[0].mxu0
        %v2375 = vadd.f32 %v2214, %v2374
        %v2376 = vpop.f32.mrb[0].mxu0
        %v2377 = vadd.f32 %v2216, %v2376
        %2378 = vmatprep.mubr.f32.mxu0 %v560
        %2379 = vmatmul.mubr.f32.gmra.mrb[0].mxu0 %v559
        %v2380 = vpop.f32.mrb[0].mxu0
        %v2381 = vadd.f32 %v2220, %v2380
        %v2382 = vpop.f32.mrb[0].mxu0
        %v2383 = vadd.f32 %v2222, %v2382
        %2384 = vmatprep.mubr.f32.mxu0 %v568
        %2385 = vmatmul.mubr.f32.gmra.mrb[0].mxu0 %v567
        %v2386 = vpop.f32.mrb[0].mxu0
        %v2387 = vadd.f32 %v2226, %v2386
        %v2388 = vpop.f32.mrb[0].mxu0
        %v2389 = vadd.f32 %v2228, %v2388
        %2390 = vdwg.mxu0
        %v2391 = vmax.f32 %v1653, 0.0
        %v2392 = vmax.f32 %v1655, 0.0
        %v2393 = vmax.f32 %v2297, 0.0
        %v2394 = vmax.f32 %v2299, 0.0
        %v2395 = vmax.f32 %v1659, 0.0
        %v2396 = vmax.f32 %v1661, 0.0
        %v2397 = vmax.f32 %v2303, 0.0
        %v2398 = vmax.f32 %v2305, 0.0
        %v2399 = vmax.f32 %v1665, 0.0
        %v2400 = vmax.f32 %v1667, 0.0
        %v2401 = vmax.f32 %v2309, 0.0
        %v2402 = vmax.f32 %v2311, 0.0
        %v2403 = vmax.f32 %v1671, 0.0
        %v2404 = vmax.f32 %v1673, 0.0
        %v2405 = vmax.f32 %v2315, 0.0
        %v2406 = vmax.f32 %v2317, 0.0
        %v2407 = vmax.f32 %v1677, 0.0
        %v2408 = vmax.f32 %v1679, 0.0
        %v2409 = vmax.f32 %v2321, 0.0
        %v2410 = vmax.f32 %v2323, 0.0
        %v2411 = vmax.f32 %v1683, 0.0
        %v2412 = vmax.f32 %v1685, 0.0
        %v2413 = vmax.f32 %v2327, 0.0
        %v2414 = vmax.f32 %v2329, 0.0
        %v2415 = vmax.f32 %v1689, 0.0
        %v2416 = vmax.f32 %v1691, 0.0
        %v2417 = vmax.f32 %v2333, 0.0
        %v2418 = vmax.f32 %v2335, 0.0
        %v2419 = vmax.f32 %v1695, 0.0
        %v2420 = vmax.f32 %v1697, 0.0
        %v2421 = vmax.f32 %v2339, 0.0
        %v2422 = vmax.f32 %v2341, 0.0
        %v2423 = vmax.f32 %v1701, 0.0
        %v2424 = vmax.f32 %v1703, 0.0
        %v2425 = vmax.f32 %v2345, 0.0
        %v2426 = vmax.f32 %v2347, 0.0
        %v2427 = vmax.f32 %v1707, 0.0
        %v2428 = vmax.f32 %v1709, 0.0
        %v2429 = vmax.f32 %v2351, 0.0
        %v2430 = vmax.f32 %v2353, 0.0
        %v2431 = vmax.f32 %v1713, 0.0
        %v2432 = vmax.f32 %v1715, 0.0
        %v2433 = vmax.f32 %v2357, 0.0
        %v2434 = vmax.f32 %v2359, 0.0
        %v2435 = vmax.f32 %v1719, 0.0
        %v2436 = vmax.f32 %v1721, 0.0
        %v2437 = vmax.f32 %v2363, 0.0
        %v2438 = vmax.f32 %v2365, 0.0
        %v2439 = vmax.f32 %v1725, 0.0
        %v2440 = vmax.f32 %v1727, 0.0
        %v2441 = vmax.f32 %v2369, 0.0
        %v2442 = vmax.f32 %v2371, 0.0
        %v2443 = vmax.f32 %v1731, 0.0
        %v2444 = vmax.f32 %v1733, 0.0
        %v2445 = vmax.f32 %v2375, 0.0
        %v2446 = vmax.f32 %v2377, 0.0
        %v2447 = vmax.f32 %v1737, 0.0
        %v2448 = vmax.f32 %v1739, 0.0
        %v2449 = vmax.f32 %v2381, 0.0
        %v2450 = vmax.f32 %v2383, 0.0
        %v2451 = vmax.f32 %v1743, 0.0
        %v2452 = vmax.f32 %v1745, 0.0
        %v2453 = vmax.f32 %v2387, 0.0
        %v2454 = vmax.f32 %v2389, 0.0
        %v2455 = vld [vmem:[#allocation10] sm:$0xff]
        %v2456 = vld [vmem:[#allocation10 + $0x8] sm:$0xff]
        %v2457 = vld [vmem:[#allocation10 + $0x10] sm:$0xff]
        %v2458 = vld [vmem:[#allocation10 + $0x18] sm:$0xff]
        %v2459 = vld [vmem:[#allocation10 + $0x20] sm:$0xff]
        %v2460 = vld [vmem:[#allocation10 + $0x28] sm:$0xff]
        %v2461 = vld [vmem:[#allocation10 + $0x30] sm:$0xff]
        %v2462 = vld [vmem:[#allocation10 + $0x38] sm:$0xff]
        %v2463 = vld [vmem:[#allocation10 + $0x40] sm:$0xff]
        %v2464 = vld [vmem:[#allocation10 + $0x48] sm:$0xff]
        %v2465 = vld [vmem:[#allocation10 + $0x50] sm:$0xff]
        %v2466 = vld [vmem:[#allocation10 + $0x58] sm:$0xff]
        %v2467 = vld [vmem:[#allocation10 + $0x60] sm:$0xff]
        %v2468 = vld [vmem:[#allocation10 + $0x68] sm:$0xff]
        %v2469 = vld [vmem:[#allocation10 + $0x70] sm:$0xff]
        %v2470 = vld [vmem:[#allocation10 + $0x78] sm:$0xff]
        %v2471 = vld [vmem:[#allocation10 + $0x80] sm:$0xff]
        %v2472 = vld [vmem:[#allocation10 + $0x88] sm:$0xff]
        %v2473 = vld [vmem:[#allocation10 + $0x90] sm:$0xff]
        %v2474 = vld [vmem:[#allocation10 + $0x98] sm:$0xff]
        %v2475 = vld [vmem:[#allocation10 + $0xa0] sm:$0xff]
        %v2476 = vld [vmem:[#allocation10 + $0xa8] sm:$0xff]
        %v2477 = vld [vmem:[#allocation10 + $0xb0] sm:$0xff]
        %v2478 = vld [vmem:[#allocation10 + $0xb8] sm:$0xff]
        %v2479 = vld [vmem:[#allocation10 + $0xc0] sm:$0xff]
        %v2480 = vld [vmem:[#allocation10 + $0xc8] sm:$0xff]
        %v2481 = vld [vmem:[#allocation10 + $0xd0] sm:$0xff]
        %v2482 = vld [vmem:[#allocation10 + $0xd8] sm:$0xff]
        %v2483 = vld [vmem:[#allocation10 + $0xe0] sm:$0xff]
        %v2484 = vld [vmem:[#allocation10 + $0xe8] sm:$0xff]
        %v2485 = vld [vmem:[#allocation10 + $0xf0] sm:$0xff]
        %v2486 = vld [vmem:[#allocation10 + $0xf8] sm:$0xff]
        %v2487 = vld [vmem:[#allocation10 + $0x100] sm:$0xff]
        %v2488 = vld [vmem:[#allocation10 + $0x108] sm:$0xff]
        %v2489 = vld [vmem:[#allocation10 + $0x110] sm:$0xff]
        %v2490 = vld [vmem:[#allocation10 + $0x118] sm:$0xff]
        %v2491 = vld [vmem:[#allocation10 + $0x120] sm:$0xff]
        %v2492 = vld [vmem:[#allocation10 + $0x128] sm:$0xff]
        %v2493 = vld [vmem:[#allocation10 + $0x130] sm:$0xff]
        %v2494 = vld [vmem:[#allocation10 + $0x138] sm:$0xff]
        %v2495 = vld [vmem:[#allocation10 + $0x140] sm:$0xff]
        %v2496 = vld [vmem:[#allocation10 + $0x148] sm:$0xff]
        %v2497 = vld [vmem:[#allocation10 + $0x150] sm:$0xff]
        %v2498 = vld [vmem:[#allocation10 + $0x158] sm:$0xff]
        %v2499 = vld [vmem:[#allocation10 + $0x160] sm:$0xff]
        %v2500 = vld [vmem:[#allocation10 + $0x168] sm:$0xff]
        %v2501 = vld [vmem:[#allocation10 + $0x170] sm:$0xff]
        %v2502 = vld [vmem:[#allocation10 + $0x178] sm:$0xff]
        %v2503 = vld [vmem:[#allocation10 + $0x180] sm:$0xff]
        %v2504 = vld [vmem:[#allocation10 + $0x188] sm:$0xff]
        %v2505 = vld [vmem:[#allocation10 + $0x190] sm:$0xff]
        %v2506 = vld [vmem:[#allocation10 + $0x198] sm:$0xff]
        %v2507 = vld [vmem:[#allocation10 + $0x1a0] sm:$0xff]
        %v2508 = vld [vmem:[#allocation10 + $0x1a8] sm:$0xff]
        %v2509 = vld [vmem:[#allocation10 + $0x1b0] sm:$0xff]
        %v2510 = vld [vmem:[#allocation10 + $0x1b8] sm:$0xff]
        %v2511 = vld [vmem:[#allocation10 + $0x1c0] sm:$0xff]
        %v2512 = vld [vmem:[#allocation10 + $0x1c8] sm:$0xff]
        %v2513 = vld [vmem:[#allocation10 + $0x1d0] sm:$0xff]
        %v2514 = vld [vmem:[#allocation10 + $0x1d8] sm:$0xff]
        %v2515 = vld [vmem:[#allocation10 + $0x1e0] sm:$0xff]
        %v2516 = vld [vmem:[#allocation10 + $0x1e8] sm:$0xff]
        %v2517 = vld [vmem:[#allocation10 + $0x1f0] sm:$0xff]
        %v2518 = vld [vmem:[#allocation10 + $0x1f8] sm:$0xff]
        %v2519 = vld [vmem:[#allocation10 + $0x200] sm:$0xff]
        %v2520 = vld [vmem:[#allocation10 + $0x208] sm:$0xff]
        %v2521 = vld [vmem:[#allocation10 + $0x210] sm:$0xff]
        %v2522 = vld [vmem:[#allocation10 + $0x218] sm:$0xff]
        %v2523 = vld [vmem:[#allocation10 + $0x220] sm:$0xff]
        %v2524 = vld [vmem:[#allocation10 + $0x228] sm:$0xff]
        %v2525 = vld [vmem:[#allocation10 + $0x230] sm:$0xff]
        %v2526 = vld [vmem:[#allocation10 + $0x238] sm:$0xff]
        %v2527 = vld [vmem:[#allocation10 + $0x240] sm:$0xff]
        %v2528 = vld [vmem:[#allocation10 + $0x248] sm:$0xff]
        %v2529 = vld [vmem:[#allocation10 + $0x250] sm:$0xff]
        %v2530 = vld [vmem:[#allocation10 + $0x258] sm:$0xff]
        %v2531 = vld [vmem:[#allocation10 + $0x260] sm:$0xff]
        %v2532 = vld [vmem:[#allocation10 + $0x268] sm:$0xff]
        %v2533 = vld [vmem:[#allocation10 + $0x270] sm:$0xff]
        %v2534 = vld [vmem:[#allocation10 + $0x278] sm:$0xff]
        %v2535 = vld [vmem:[#allocation10 + $0x280] sm:$0xff]
        %v2536 = vld [vmem:[#allocation10 + $0x288] sm:$0xff]
        %v2537 = vld [vmem:[#allocation10 + $0x290] sm:$0xff]
        %v2538 = vld [vmem:[#allocation10 + $0x298] sm:$0xff]
        %v2539 = vld [vmem:[#allocation10 + $0x2a0] sm:$0xff]
        %v2540 = vld [vmem:[#allocation10 + $0x2a8] sm:$0xff]
        %v2541 = vld [vmem:[#allocation10 + $0x2b0] sm:$0xff]
        %v2542 = vld [vmem:[#allocation10 + $0x2b8] sm:$0xff]
        %v2543 = vld [vmem:[#allocation10 + $0x2c0] sm:$0xff]
        %v2544 = vld [vmem:[#allocation10 + $0x2c8] sm:$0xff]
        %v2545 = vld [vmem:[#allocation10 + $0x2d0] sm:$0xff]
        %v2546 = vld [vmem:[#allocation10 + $0x2d8] sm:$0xff]
        %v2547 = vld [vmem:[#allocation10 + $0x2e0] sm:$0xff]
        %v2548 = vld [vmem:[#allocation10 + $0x2e8] sm:$0xff]
        %v2549 = vld [vmem:[#allocation10 + $0x2f0] sm:$0xff]
        %v2550 = vld [vmem:[#allocation10 + $0x2f8] sm:$0xff]
        %v2551 = vld [vmem:[#allocation10 + $0x300] sm:$0xff]
        %v2552 = vld [vmem:[#allocation10 + $0x308] sm:$0xff]
        %v2553 = vld [vmem:[#allocation10 + $0x310] sm:$0xff]
        %v2554 = vld [vmem:[#allocation10 + $0x318] sm:$0xff]
        %v2555 = vld [vmem:[#allocation10 + $0x320] sm:$0xff]
        %v2556 = vld [vmem:[#allocation10 + $0x328] sm:$0xff]
        %v2557 = vld [vmem:[#allocation10 + $0x330] sm:$0xff]
        %v2558 = vld [vmem:[#allocation10 + $0x338] sm:$0xff]
        %v2559 = vld [vmem:[#allocation10 + $0x340] sm:$0xff]
        %v2560 = vld [vmem:[#allocation10 + $0x348] sm:$0xff]
        %v2561 = vld [vmem:[#allocation10 + $0x350] sm:$0xff]
        %v2562 = vld [vmem:[#allocation10 + $0x358] sm:$0xff]
        %v2563 = vld [vmem:[#allocation10 + $0x360] sm:$0xff]
        %v2564 = vld [vmem:[#allocation10 + $0x368] sm:$0xff]
        %v2565 = vld [vmem:[#allocation10 + $0x370] sm:$0xff]
        %v2566 = vld [vmem:[#allocation10 + $0x378] sm:$0xff]
        %v2567 = vld [vmem:[#allocation10 + $0x380] sm:$0xff]
        %v2568 = vld [vmem:[#allocation10 + $0x388] sm:$0xff]
        %v2569 = vld [vmem:[#allocation10 + $0x390] sm:$0xff]
        %v2570 = vld [vmem:[#allocation10 + $0x398] sm:$0xff]
        %v2571 = vld [vmem:[#allocation10 + $0x3a0] sm:$0xff]
        %v2572 = vld [vmem:[#allocation10 + $0x3a8] sm:$0xff]
        %v2573 = vld [vmem:[#allocation10 + $0x3b0] sm:$0xff]
        %v2574 = vld [vmem:[#allocation10 + $0x3b8] sm:$0xff]
        %v2575 = vld [vmem:[#allocation10 + $0x3c0] sm:$0xff]
        %v2576 = vld [vmem:[#allocation10 + $0x3c8] sm:$0xff]
        %v2577 = vld [vmem:[#allocation10 + $0x3d0] sm:$0xff]
        %v2578 = vld [vmem:[#allocation10 + $0x3d8] sm:$0xff]
        %v2579 = vld [vmem:[#allocation10 + $0x3e0] sm:$0xff]
        %v2580 = vld [vmem:[#allocation10 + $0x3e8] sm:$0xff]
        %v2581 = vld [vmem:[#allocation10 + $0x3f0] sm:$0xff]
        %v2582 = vld [vmem:[#allocation10 + $0x3f8] sm:$0xff]
        %v2583 = vld [vmem:[#allocation10 + $0x400] sm:$0xff]
        %v2584 = vld [vmem:[#allocation10 + $0x408] sm:$0xff]
        %v2585 = vld [vmem:[#allocation10 + $0x410] sm:$0xff]
        %v2586 = vld [vmem:[#allocation10 + $0x418] sm:$0xff]
        %v2587 = vld [vmem:[#allocation10 + $0x420] sm:$0xff]
        %v2588 = vld [vmem:[#allocation10 + $0x428] sm:$0xff]
        %v2589 = vld [vmem:[#allocation10 + $0x430] sm:$0xff]
        %v2590 = vld [vmem:[#allocation10 + $0x438] sm:$0xff]
        %v2591 = vld [vmem:[#allocation10 + $0x440] sm:$0xff]
        %v2592 = vld [vmem:[#allocation10 + $0x448] sm:$0xff]
        %v2593 = vld [vmem:[#allocation10 + $0x450] sm:$0xff]
        %v2594 = vld [vmem:[#allocation10 + $0x458] sm:$0xff]
        %v2595 = vld [vmem:[#allocation10 + $0x460] sm:$0xff]
        %v2596 = vld [vmem:[#allocation10 + $0x468] sm:$0xff]
        %v2597 = vld [vmem:[#allocation10 + $0x470] sm:$0xff]
        %v2598 = vld [vmem:[#allocation10 + $0x478] sm:$0xff]
        %v2599 = vld [vmem:[#allocation10 + $0x480] sm:$0xff]
        %v2600 = vld [vmem:[#allocation10 + $0x488] sm:$0xff]
        %v2601 = vld [vmem:[#allocation10 + $0x490] sm:$0xff]
        %v2602 = vld [vmem:[#allocation10 + $0x498] sm:$0xff]
        %v2603 = vld [vmem:[#allocation10 + $0x4a0] sm:$0xff]
        %v2604 = vld [vmem:[#allocation10 + $0x4a8] sm:$0xff]
        %v2605 = vld [vmem:[#allocation10 + $0x4b0] sm:$0xff]
        %v2606 = vld [vmem:[#allocation10 + $0x4b8] sm:$0xff]
        %v2607 = vld [vmem:[#allocation10 + $0x4c0] sm:$0xff]
        %v2608 = vld [vmem:[#allocation10 + $0x4c8] sm:$0xff]
        %v2609 = vld [vmem:[#allocation10 + $0x4d0] sm:$0xff]
        %v2610 = vld [vmem:[#allocation10 + $0x4d8] sm:$0xff]
        %v2611 = vld [vmem:[#allocation10 + $0x4e0] sm:$0xff]
        %v2612 = vld [vmem:[#allocation10 + $0x4e8] sm:$0xff]
        %v2613 = vld [vmem:[#allocation10 + $0x4f0] sm:$0xff]
        %v2614 = vld [vmem:[#allocation10 + $0x4f8] sm:$0xff]
        %v2615 = vld [vmem:[#allocation10 + $0x500] sm:$0xff]
        %v2616 = vld [vmem:[#allocation10 + $0x508] sm:$0xff]
        %v2617 = vld [vmem:[#allocation10 + $0x510] sm:$0xff]
        %v2618 = vld [vmem:[#allocation10 + $0x518] sm:$0xff]
        %v2619 = vld [vmem:[#allocation10 + $0x520] sm:$0xff]
        %v2620 = vld [vmem:[#allocation10 + $0x528] sm:$0xff]
        %v2621 = vld [vmem:[#allocation10 + $0x530] sm:$0xff]
        %v2622 = vld [vmem:[#allocation10 + $0x538] sm:$0xff]
        %v2623 = vld [vmem:[#allocation10 + $0x540] sm:$0xff]
        %v2624 = vld [vmem:[#allocation10 + $0x548] sm:$0xff]
        %v2625 = vld [vmem:[#allocation10 + $0x550] sm:$0xff]
        %v2626 = vld [vmem:[#allocation10 + $0x558] sm:$0xff]
        %v2627 = vld [vmem:[#allocation10 + $0x560] sm:$0xff]
        %v2628 = vld [vmem:[#allocation10 + $0x568] sm:$0xff]
        %v2629 = vld [vmem:[#allocation10 + $0x570] sm:$0xff]
        %v2630 = vld [vmem:[#allocation10 + $0x578] sm:$0xff]
        %v2631 = vld [vmem:[#allocation10 + $0x580] sm:$0xff]
        %v2632 = vld [vmem:[#allocation10 + $0x588] sm:$0xff]
        %v2633 = vld [vmem:[#allocation10 + $0x590] sm:$0xff]
        %v2634 = vld [vmem:[#allocation10 + $0x598] sm:$0xff]
        %v2635 = vld [vmem:[#allocation10 + $0x5a0] sm:$0xff]
        %v2636 = vld [vmem:[#allocation10 + $0x5a8] sm:$0xff]
        %v2637 = vld [vmem:[#allocation10 + $0x5b0] sm:$0xff]
        %v2638 = vld [vmem:[#allocation10 + $0x5b8] sm:$0xff]
        %v2639 = vld [vmem:[#allocation10 + $0x5c0] sm:$0xff]
        %v2640 = vld [vmem:[#allocation10 + $0x5c8] sm:$0xff]
        %v2641 = vld [vmem:[#allocation10 + $0x5d0] sm:$0xff]
        %v2642 = vld [vmem:[#allocation10 + $0x5d8] sm:$0xff]
        %v2643 = vld [vmem:[#allocation10 + $0x5e0] sm:$0xff]
        %v2644 = vld [vmem:[#allocation10 + $0x5e8] sm:$0xff]
        %v2645 = vld [vmem:[#allocation10 + $0x5f0] sm:$0xff]
        %v2646 = vld [vmem:[#allocation10 + $0x5f8] sm:$0xff]
        %v2647 = vld [vmem:[#allocation10 + $0x600] sm:$0xff]
        %v2648 = vld [vmem:[#allocation10 + $0x608] sm:$0xff]
        %v2649 = vld [vmem:[#allocation10 + $0x610] sm:$0xff]
        %v2650 = vld [vmem:[#allocation10 + $0x618] sm:$0xff]
        %v2651 = vld [vmem:[#allocation10 + $0x620] sm:$0xff]
        %v2652 = vld [vmem:[#allocation10 + $0x628] sm:$0xff]
        %v2653 = vld [vmem:[#allocation10 + $0x630] sm:$0xff]
        %v2654 = vld [vmem:[#allocation10 + $0x638] sm:$0xff]
        %v2655 = vld [vmem:[#allocation10 + $0x640] sm:$0xff]
        %v2656 = vld [vmem:[#allocation10 + $0x648] sm:$0xff]
        %v2657 = vld [vmem:[#allocation10 + $0x650] sm:$0xff]
        %v2658 = vld [vmem:[#allocation10 + $0x658] sm:$0xff]
        %v2659 = vld [vmem:[#allocation10 + $0x660] sm:$0xff]
        %v2660 = vld [vmem:[#allocation10 + $0x668] sm:$0xff]
        %v2661 = vld [vmem:[#allocation10 + $0x670] sm:$0xff]
        %v2662 = vld [vmem:[#allocation10 + $0x678] sm:$0xff]
        %v2663 = vld [vmem:[#allocation10 + $0x680] sm:$0xff]
        %v2664 = vld [vmem:[#allocation10 + $0x688] sm:$0xff]
        %v2665 = vld [vmem:[#allocation10 + $0x690] sm:$0xff]
        %v2666 = vld [vmem:[#allocation10 + $0x698] sm:$0xff]
        %v2667 = vld [vmem:[#allocation10 + $0x6a0] sm:$0xff]
        %v2668 = vld [vmem:[#allocation10 + $0x6a8] sm:$0xff]
        %v2669 = vld [vmem:[#allocation10 + $0x6b0] sm:$0xff]
        %v2670 = vld [vmem:[#allocation10 + $0x6b8] sm:$0xff]
        %v2671 = vld [vmem:[#allocation10 + $0x6c0] sm:$0xff]
        %v2672 = vld [vmem:[#allocation10 + $0x6c8] sm:$0xff]
        %v2673 = vld [vmem:[#allocation10 + $0x6d0] sm:$0xff]
        %v2674 = vld [vmem:[#allocation10 + $0x6d8] sm:$0xff]
        %v2675 = vld [vmem:[#allocation10 + $0x6e0] sm:$0xff]
        %v2676 = vld [vmem:[#allocation10 + $0x6e8] sm:$0xff]
        %v2677 = vld [vmem:[#allocation10 + $0x6f0] sm:$0xff]
        %v2678 = vld [vmem:[#allocation10 + $0x6f8] sm:$0xff]
        %v2679 = vld [vmem:[#allocation10 + $0x700] sm:$0xff]
        %v2680 = vld [vmem:[#allocation10 + $0x708] sm:$0xff]
        %v2681 = vld [vmem:[#allocation10 + $0x710] sm:$0xff]
        %v2682 = vld [vmem:[#allocation10 + $0x718] sm:$0xff]
        %v2683 = vld [vmem:[#allocation10 + $0x720] sm:$0xff]
        %v2684 = vld [vmem:[#allocation10 + $0x728] sm:$0xff]
        %v2685 = vld [vmem:[#allocation10 + $0x730] sm:$0xff]
        %v2686 = vld [vmem:[#allocation10 + $0x738] sm:$0xff]
        %v2687 = vld [vmem:[#allocation10 + $0x740] sm:$0xff]
        %v2688 = vld [vmem:[#allocation10 + $0x748] sm:$0xff]
        %v2689 = vld [vmem:[#allocation10 + $0x750] sm:$0xff]
        %v2690 = vld [vmem:[#allocation10 + $0x758] sm:$0xff]
        %v2691 = vld [vmem:[#allocation10 + $0x760] sm:$0xff]
        %v2692 = vld [vmem:[#allocation10 + $0x768] sm:$0xff]
        %v2693 = vld [vmem:[#allocation10 + $0x770] sm:$0xff]
        %v2694 = vld [vmem:[#allocation10 + $0x778] sm:$0xff]
        %v2695 = vld [vmem:[#allocation10 + $0x780] sm:$0xff]
        %v2696 = vld [vmem:[#allocation10 + $0x788] sm:$0xff]
        %v2697 = vld [vmem:[#allocation10 + $0x790] sm:$0xff]
        %v2698 = vld [vmem:[#allocation10 + $0x798] sm:$0xff]
        %v2699 = vld [vmem:[#allocation10 + $0x7a0] sm:$0xff]
        %v2700 = vld [vmem:[#allocation10 + $0x7a8] sm:$0xff]
        %v2701 = vld [vmem:[#allocation10 + $0x7b0] sm:$0xff]
        %v2702 = vld [vmem:[#allocation10 + $0x7b8] sm:$0xff]
        %v2703 = vld [vmem:[#allocation10 + $0x7c0] sm:$0xff]
        %v2704 = vld [vmem:[#allocation10 + $0x7c8] sm:$0xff]
        %v2705 = vld [vmem:[#allocation10 + $0x7d0] sm:$0xff]
        %v2706 = vld [vmem:[#allocation10 + $0x7d8] sm:$0xff]
        %v2707 = vld [vmem:[#allocation10 + $0x7e0] sm:$0xff]
        %v2708 = vld [vmem:[#allocation10 + $0x7e8] sm:$0xff]
        %v2709 = vld [vmem:[#allocation10 + $0x7f0] sm:$0xff]
        %v2710 = vld [vmem:[#allocation10 + $0x7f8] sm:$0xff]
        %v2711 = vld [vmem:[#allocation10 + $0x800] sm:$0xff]
        %v2712 = vld [vmem:[#allocation10 + $0x808] sm:$0xff]
        %v2713 = vld [vmem:[#allocation10 + $0x810] sm:$0xff]
        %v2714 = vld [vmem:[#allocation10 + $0x818] sm:$0xff]
        %v2715 = vld [vmem:[#allocation10 + $0x820] sm:$0xff]
        %v2716 = vld [vmem:[#allocation10 + $0x828] sm:$0xff]
        %v2717 = vld [vmem:[#allocation10 + $0x830] sm:$0xff]
        %v2718 = vld [vmem:[#allocation10 + $0x838] sm:$0xff]
        %v2719 = vld [vmem:[#allocation10 + $0x840] sm:$0xff]
        %v2720 = vld [vmem:[#allocation10 + $0x848] sm:$0xff]
        %v2721 = vld [vmem:[#allocation10 + $0x850] sm:$0xff]
        %v2722 = vld [vmem:[#allocation10 + $0x858] sm:$0xff]
        %v2723 = vld [vmem:[#allocation10 + $0x860] sm:$0xff]
        %v2724 = vld [vmem:[#allocation10 + $0x868] sm:$0xff]
        %v2725 = vld [vmem:[#allocation10 + $0x870] sm:$0xff]
        %v2726 = vld [vmem:[#allocation10 + $0x878] sm:$0xff]
        %v2727 = vld [vmem:[#allocation10 + $0x880] sm:$0xff]
        %v2728 = vld [vmem:[#allocation10 + $0x888] sm:$0xff]
        %v2729 = vld [vmem:[#allocation10 + $0x890] sm:$0xff]
        %v2730 = vld [vmem:[#allocation10 + $0x898] sm:$0xff]
        %v2731 = vld [vmem:[#allocation10 + $0x8a0] sm:$0xff]
        %v2732 = vld [vmem:[#allocation10 + $0x8a8] sm:$0xff]
        %v2733 = vld [vmem:[#allocation10 + $0x8b0] sm:$0xff]
        %v2734 = vld [vmem:[#allocation10 + $0x8b8] sm:$0xff]
        %v2735 = vld [vmem:[#allocation10 + $0x8c0] sm:$0xff]
        %v2736 = vld [vmem:[#allocation10 + $0x8c8] sm:$0xff]
        %v2737 = vld [vmem:[#allocation10 + $0x8d0] sm:$0xff]
        %v2738 = vld [vmem:[#allocation10 + $0x8d8] sm:$0xff]
        %v2739 = vld [vmem:[#allocation10 + $0x8e0] sm:$0xff]
        %v2740 = vld [vmem:[#allocation10 + $0x8e8] sm:$0xff]
        %v2741 = vld [vmem:[#allocation10 + $0x8f0] sm:$0xff]
        %v2742 = vld [vmem:[#allocation10 + $0x8f8] sm:$0xff]
        %v2743 = vld [vmem:[#allocation10 + $0x900] sm:$0xff]
        %v2744 = vld [vmem:[#allocation10 + $0x908] sm:$0xff]
        %v2745 = vld [vmem:[#allocation10 + $0x910] sm:$0xff]
        %v2746 = vld [vmem:[#allocation10 + $0x918] sm:$0xff]
        %v2747 = vld [vmem:[#allocation10 + $0x920] sm:$0xff]
        %v2748 = vld [vmem:[#allocation10 + $0x928] sm:$0xff]
        %v2749 = vld [vmem:[#allocation10 + $0x930] sm:$0xff]
        %v2750 = vld [vmem:[#allocation10 + $0x938] sm:$0xff]
        %v2751 = vld [vmem:[#allocation10 + $0x940] sm:$0xff]
        %v2752 = vld [vmem:[#allocation10 + $0x948] sm:$0xff]
        %v2753 = vld [vmem:[#allocation10 + $0x950] sm:$0xff]
        %v2754 = vld [vmem:[#allocation10 + $0x958] sm:$0xff]
        %v2755 = vld [vmem:[#allocation10 + $0x960] sm:$0xff]
        %v2756 = vld [vmem:[#allocation10 + $0x968] sm:$0xff]
        %v2757 = vld [vmem:[#allocation10 + $0x970] sm:$0xff]
        %v2758 = vld [vmem:[#allocation10 + $0x978] sm:$0xff]
        %v2759 = vld [vmem:[#allocation10 + $0x980] sm:$0xff]
        %v2760 = vld [vmem:[#allocation10 + $0x988] sm:$0xff]
        %v2761 = vld [vmem:[#allocation10 + $0x990] sm:$0xff]
        %v2762 = vld [vmem:[#allocation10 + $0x998] sm:$0xff]
        %v2763 = vld [vmem:[#allocation10 + $0x9a0] sm:$0xff]
        %v2764 = vld [vmem:[#allocation10 + $0x9a8] sm:$0xff]
        %v2765 = vld [vmem:[#allocation10 + $0x9b0] sm:$0xff]
        %v2766 = vld [vmem:[#allocation10 + $0x9b8] sm:$0xff]
        %v2767 = vld [vmem:[#allocation10 + $0x9c0] sm:$0xff]
        %v2768 = vld [vmem:[#allocation10 + $0x9c8] sm:$0xff]
        %v2769 = vld [vmem:[#allocation10 + $0x9d0] sm:$0xff]
        %v2770 = vld [vmem:[#allocation10 + $0x9d8] sm:$0xff]
        %v2771 = vld [vmem:[#allocation10 + $0x9e0] sm:$0xff]
        %v2772 = vld [vmem:[#allocation10 + $0x9e8] sm:$0xff]
        %v2773 = vld [vmem:[#allocation10 + $0x9f0] sm:$0xff]
        %v2774 = vld [vmem:[#allocation10 + $0x9f8] sm:$0xff]
        %v2775 = vld [vmem:[#allocation10 + $0xa00] sm:$0xff]
        %v2776 = vld [vmem:[#allocation10 + $0xa08] sm:$0xff]
        %v2777 = vld [vmem:[#allocation10 + $0xa10] sm:$0xff]
        %v2778 = vld [vmem:[#allocation10 + $0xa18] sm:$0xff]
        %v2779 = vld [vmem:[#allocation10 + $0xa20] sm:$0xff]
        %v2780 = vld [vmem:[#allocation10 + $0xa28] sm:$0xff]
        %v2781 = vld [vmem:[#allocation10 + $0xa30] sm:$0xff]
        %v2782 = vld [vmem:[#allocation10 + $0xa38] sm:$0xff]
        %v2783 = vld [vmem:[#allocation10 + $0xa40] sm:$0xff]
        %v2784 = vld [vmem:[#allocation10 + $0xa48] sm:$0xff]
        %v2785 = vld [vmem:[#allocation10 + $0xa50] sm:$0xff]
        %v2786 = vld [vmem:[#allocation10 + $0xa58] sm:$0xff]
        %v2787 = vld [vmem:[#allocation10 + $0xa60] sm:$0xff]
        %v2788 = vld [vmem:[#allocation10 + $0xa68] sm:$0xff]
        %v2789 = vld [vmem:[#allocation10 + $0xa70] sm:$0xff]
        %v2790 = vld [vmem:[#allocation10 + $0xa78] sm:$0xff]
        %v2791 = vld [vmem:[#allocation10 + $0xa80] sm:$0xff]
        %v2792 = vld [vmem:[#allocation10 + $0xa88] sm:$0xff]
        %v2793 = vld [vmem:[#allocation10 + $0xa90] sm:$0xff]
        %v2794 = vld [vmem:[#allocation10 + $0xa98] sm:$0xff]
        %v2795 = vld [vmem:[#allocation10 + $0xaa0] sm:$0xff]
        %v2796 = vld [vmem:[#allocation10 + $0xaa8] sm:$0xff]
        %v2797 = vld [vmem:[#allocation10 + $0xab0] sm:$0xff]
        %v2798 = vld [vmem:[#allocation10 + $0xab8] sm:$0xff]
        %v2799 = vld [vmem:[#allocation10 + $0xac0] sm:$0xff]
        %v2800 = vld [vmem:[#allocation10 + $0xac8] sm:$0xff]
        %v2801 = vld [vmem:[#allocation10 + $0xad0] sm:$0xff]
        %v2802 = vld [vmem:[#allocation10 + $0xad8] sm:$0xff]
        %v2803 = vld [vmem:[#allocation10 + $0xae0] sm:$0xff]
        %v2804 = vld [vmem:[#allocation10 + $0xae8] sm:$0xff]
        %v2805 = vld [vmem:[#allocation10 + $0xaf0] sm:$0xff]
        %v2806 = vld [vmem:[#allocation10 + $0xaf8] sm:$0xff]
        %v2807 = vld [vmem:[#allocation10 + $0xb00] sm:$0xff]
        %v2808 = vld [vmem:[#allocation10 + $0xb08] sm:$0xff]
        %v2809 = vld [vmem:[#allocation10 + $0xb10] sm:$0xff]
        %v2810 = vld [vmem:[#allocation10 + $0xb18] sm:$0xff]
        %v2811 = vld [vmem:[#allocation10 + $0xb20] sm:$0xff]
        %v2812 = vld [vmem:[#allocation10 + $0xb28] sm:$0xff]
        %v2813 = vld [vmem:[#allocation10 + $0xb30] sm:$0xff]
        %v2814 = vld [vmem:[#allocation10 + $0xb38] sm:$0xff]
        %v2815 = vld [vmem:[#allocation10 + $0xb40] sm:$0xff]
        %v2816 = vld [vmem:[#allocation10 + $0xb48] sm:$0xff]
        %v2817 = vld [vmem:[#allocation10 + $0xb50] sm:$0xff]
        %v2818 = vld [vmem:[#allocation10 + $0xb58] sm:$0xff]
        %v2819 = vld [vmem:[#allocation10 + $0xb60] sm:$0xff]
        %v2820 = vld [vmem:[#allocation10 + $0xb68] sm:$0xff]
        %v2821 = vld [vmem:[#allocation10 + $0xb70] sm:$0xff]
        %v2822 = vld [vmem:[#allocation10 + $0xb78] sm:$0xff]
        %v2823 = vld [vmem:[#allocation10 + $0xb80] sm:$0xff]
        %v2824 = vld [vmem:[#allocation10 + $0xb88] sm:$0xff]
        %v2825 = vld [vmem:[#allocation10 + $0xb90] sm:$0xff]
        %v2826 = vld [vmem:[#allocation10 + $0xb98] sm:$0xff]
        %v2827 = vld [vmem:[#allocation10 + $0xba0] sm:$0xff]
        %v2828 = vld [vmem:[#allocation10 + $0xba8] sm:$0xff]
        %v2829 = vld [vmem:[#allocation10 + $0xbb0] sm:$0xff]
        %v2830 = vld [vmem:[#allocation10 + $0xbb8] sm:$0xff]
        %v2831 = vld [vmem:[#allocation10 + $0xbc0] sm:$0xff]
        %v2832 = vld [vmem:[#allocation10 + $0xbc8] sm:$0xff]
        %v2833 = vld [vmem:[#allocation10 + $0xbd0] sm:$0xff]
        %v2834 = vld [vmem:[#allocation10 + $0xbd8] sm:$0xff]
        %v2835 = vld [vmem:[#allocation10 + $0xbe0] sm:$0xff]
        %v2836 = vld [vmem:[#allocation10 + $0xbe8] sm:$0xff]
        %v2837 = vld [vmem:[#allocation10 + $0xbf0] sm:$0xff]
        %v2838 = vld [vmem:[#allocation10 + $0xbf8] sm:$0xff]
        %v2839 = vld [vmem:[#allocation12] sm:$0x3f]
        %v2841 = vlaneseq
        %v2842 = vshrl.u32 %v2841, 7
        %v2843 = vsub.s32 0, %v2842
        %v2844 = vrot.slane %v2839, %v2843
        %v2845 = vlaneseq
        %v2846 = vshrl.u32 %v2845, 7
        %v2847 = vsub.s32 1, %v2846
        %v2848 = vrot.slane %v2839, %v2847
        %v2849 = vlaneseq
        %v2850 = vshrl.u32 %v2849, 7
        %v2851 = vsub.s32 2, %v2850
        %v2852 = vrot.slane %v2839, %v2851
        %v2853 = vlaneseq
        %v2854 = vshrl.u32 %v2853, 7
        %v2855 = vsub.s32 3, %v2854
        %v2856 = vrot.slane %v2839, %v2855
        %v2857 = vlaneseq
        %v2858 = vshrl.u32 %v2857, 7
        %v2859 = vsub.s32 4, %v2858
        %v2860 = vrot.slane %v2839, %v2859
        %v2861 = vlaneseq
        %v2862 = vshrl.u32 %v2861, 7
        %v2863 = vsub.s32 5, %v2862
        %v2864 = vrot.slane %v2839, %v2863
        %2871 = vmatprep.subr.mxu0 %v2456
        %2872 = vmatpush1.msra.mxu0 %v2455
        %2873 = vmatprep.subr.mxu0 %v2462
        %2874 = vmatpush1.msra.mxu0 %v2461
        %2875 = vmatprep.subr.mxu0 %v2468
        %2876 = vmatpush1.msra.mxu0 %v2467
        %2877 = vmatprep.subr.mxu0 %v2474
        %2878 = vmatpush1.msra.mxu0 %v2473
        %2879 = vmatprep.subr.mxu0 %v2480
        %2880 = vmatpush1.msra.mxu0 %v2479
        %2881 = vmatprep.subr.mxu0 %v2486
        %2882 = vmatpush1.msra.mxu0 %v2485
        %2883 = vmatprep.subr.mxu0 %v2492
        %2884 = vmatpush1.msra.mxu0 %v2491
        %2885 = vmatprep.subr.mxu0 %v2498
        %2886 = vmatpush1.msra.mxu0 %v2497
        %2887 = vmatprep.subr.mxu0 %v2504
        %2888 = vmatpush1.msra.mxu0 %v2503
        %2889 = vmatprep.subr.mxu0 %v2510
        %2890 = vmatpush1.msra.mxu0 %v2509
        %2891 = vmatprep.subr.mxu0 %v2516
        %2892 = vmatpush1.msra.mxu0 %v2515
        %2893 = vmatprep.subr.mxu0 %v2522
        %2894 = vmatpush1.msra.mxu0 %v2521
        %2895 = vmatprep.subr.mxu0 %v2528
        %2896 = vmatpush1.msra.mxu0 %v2527
        %2897 = vmatprep.subr.mxu0 %v2534
        %2898 = vmatpush1.msra.mxu0 %v2533
        %2899 = vmatprep.subr.mxu0 %v2540
        %2900 = vmatpush1.msra.mxu0 %v2539
        %2901 = vmatprep.subr.mxu0 %v2546
        %2902 = vmatpush1.msra.mxu0 %v2545
        %2903 = vmatprep.subr.mxu0 %v2552
        %2904 = vmatpush1.msra.mxu0 %v2551
        %2905 = vmatprep.subr.mxu0 %v2558
        %2906 = vmatpush1.msra.mxu0 %v2557
        %2907 = vmatprep.subr.mxu0 %v2564
        %2908 = vmatpush1.msra.mxu0 %v2563
        %2909 = vmatprep.subr.mxu0 %v2570
        %2910 = vmatpush1.msra.mxu0 %v2569
        %2911 = vmatprep.subr.mxu0 %v2576
        %2912 = vmatpush1.msra.mxu0 %v2575
        %2913 = vmatprep.subr.mxu0 %v2582
        %2914 = vmatpush1.msra.mxu0 %v2581
        %2915 = vmatprep.subr.mxu0 %v2588
        %2916 = vmatpush1.msra.mxu0 %v2587
        %2917 = vmatprep.subr.mxu0 %v2594
        %2918 = vmatpush1.msra.mxu0 %v2593
        %2919 = vmatprep.subr.mxu0 %v2600
        %2920 = vmatpush1.msra.mxu0 %v2599
        %2921 = vmatprep.subr.mxu0 %v2606
        %2922 = vmatpush1.msra.mxu0 %v2605
        %2923 = vmatprep.subr.mxu0 %v2612
        %2924 = vmatpush1.msra.mxu0 %v2611
        %2925 = vmatprep.subr.mxu0 %v2618
        %2926 = vmatpush1.msra.mxu0 %v2617
        %2927 = vmatprep.subr.mxu0 %v2624
        %2928 = vmatpush1.msra.mxu0 %v2623
        %2929 = vmatprep.subr.mxu0 %v2630
        %2930 = vmatpush1.msra.mxu0 %v2629
        %2931 = vmatprep.subr.mxu0 %v2636
        %2932 = vmatpush1.msra.mxu0 %v2635
        %2933 = vmatprep.subr.mxu0 %v2642
        %2934 = vmatpush1.msra.mxu0 %v2641
        %2935 = vmatprep.mubr.f32.mxu0 %v2392
        %2936 = vmatmul.mubr.f32.gmra.mrb[0].mxu0 %v2391
        %v2937 = vpop.f32.mrb[0].mxu0
        %v2938 = vadd.f32 %v2844, %v2937
        %v2939 = vpop.f32.mrb[0].mxu0
        %v2940 = vadd.f32 %v2848, %v2939
        %2941 = vmatprep.mubr.f32.mxu0 %v2396
        %2942 = vmatmul.mubr.f32.gmra.mrb[0].mxu0 %v2395
        %v2943 = vpop.f32.mrb[0].mxu0
        %v2944 = vadd.f32 %v2844, %v2943
        %v2945 = vpop.f32.mrb[0].mxu0
        %v2946 = vadd.f32 %v2848, %v2945
        %2947 = vmatprep.mubr.f32.mxu0 %v2400
        %2948 = vmatmul.mubr.f32.gmra.mrb[0].mxu0 %v2399
        %v2949 = vpop.f32.mrb[0].mxu0
        %v2950 = vadd.f32 %v2844, %v2949
        %v2951 = vpop.f32.mrb[0].mxu0
        %v2952 = vadd.f32 %v2848, %v2951
        %2953 = vmatprep.mubr.f32.mxu0 %v2404
        %2954 = vmatmul.mubr.f32.gmra.mrb[0].mxu0 %v2403
        %v2955 = vpop.f32.mrb[0].mxu0
        %v2956 = vadd.f32 %v2844, %v2955
        %v2957 = vpop.f32.mrb[0].mxu0
        %v2958 = vadd.f32 %v2848, %v2957
        %2959 = vmatprep.mubr.f32.mxu0 %v2408
        %2960 = vmatmul.mubr.f32.gmra.mrb[0].mxu0 %v2407
        %v2961 = vpop.f32.mrb[0].mxu0
        %v2962 = vadd.f32 %v2844, %v2961
        %v2963 = vpop.f32.mrb[0].mxu0
        %v2964 = vadd.f32 %v2848, %v2963
        %2965 = vmatprep.mubr.f32.mxu0 %v2412
        %2966 = vmatmul.mubr.f32.gmra.mrb[0].mxu0 %v2411
        %v2967 = vpop.f32.mrb[0].mxu0
        %v2968 = vadd.f32 %v2844, %v2967
        %v2969 = vpop.f32.mrb[0].mxu0
        %v2970 = vadd.f32 %v2848, %v2969
        %2971 = vmatprep.mubr.f32.mxu0 %v2416
        %2972 = vmatmul.mubr.f32.gmra.mrb[0].mxu0 %v2415
        %v2973 = vpop.f32.mrb[0].mxu0
        %v2974 = vadd.f32 %v2844, %v2973
        %v2975 = vpop.f32.mrb[0].mxu0
        %v2976 = vadd.f32 %v2848, %v2975
        %2977 = vmatprep.mubr.f32.mxu0 %v2420
        %2978 = vmatmul.mubr.f32.gmra.mrb[0].mxu0 %v2419
        %v2979 = vpop.f32.mrb[0].mxu0
        %v2980 = vadd.f32 %v2844, %v2979
        %v2981 = vpop.f32.mrb[0].mxu0
        %v2982 = vadd.f32 %v2848, %v2981
        %2983 = vmatprep.mubr.f32.mxu0 %v2424
        %2984 = vmatmul.mubr.f32.gmra.mrb[0].mxu0 %v2423
        %v2985 = vpop.f32.mrb[0].mxu0
        %v2986 = vadd.f32 %v2844, %v2985
        %v2987 = vpop.f32.mrb[0].mxu0
        %v2988 = vadd.f32 %v2848, %v2987
        %2989 = vmatprep.mubr.f32.mxu0 %v2428
        %2990 = vmatmul.mubr.f32.gmra.mrb[0].mxu0 %v2427
        %v2991 = vpop.f32.mrb[0].mxu0
        %v2992 = vadd.f32 %v2844, %v2991
        %v2993 = vpop.f32.mrb[0].mxu0
        %v2994 = vadd.f32 %v2848, %v2993
        %2995 = vmatprep.mubr.f32.mxu0 %v2432
        %2996 = vmatmul.mubr.f32.gmra.mrb[0].mxu0 %v2431
        %v2997 = vpop.f32.mrb[0].mxu0
        %v2998 = vadd.f32 %v2844, %v2997
        %v2999 = vpop.f32.mrb[0].mxu0
        %v3000 = vadd.f32 %v2848, %v2999
        %3001 = vmatprep.mubr.f32.mxu0 %v2436
        %3002 = vmatmul.mubr.f32.gmra.mrb[0].mxu0 %v2435
        %v3003 = vpop.f32.mrb[0].mxu0
        %v3004 = vadd.f32 %v2844, %v3003
        %v3005 = vpop.f32.mrb[0].mxu0
        %v3006 = vadd.f32 %v2848, %v3005
        %3007 = vmatprep.mubr.f32.mxu0 %v2440
        %3008 = vmatmul.mubr.f32.gmra.mrb[0].mxu0 %v2439
        %v3009 = vpop.f32.mrb[0].mxu0
        %v3010 = vadd.f32 %v2844, %v3009
        %v3011 = vpop.f32.mrb[0].mxu0
        %v3012 = vadd.f32 %v2848, %v3011
        %3013 = vmatprep.mubr.f32.mxu0 %v2444
        %3014 = vmatmul.mubr.f32.gmra.mrb[0].mxu0 %v2443
        %v3015 = vpop.f32.mrb[0].mxu0
        %v3016 = vadd.f32 %v2844, %v3015
        %v3017 = vpop.f32.mrb[0].mxu0
        %v3018 = vadd.f32 %v2848, %v3017
        %3019 = vmatprep.mubr.f32.mxu0 %v2448
        %3020 = vmatmul.mubr.f32.gmra.mrb[0].mxu0 %v2447
        %v3021 = vpop.f32.mrb[0].mxu0
        %v3022 = vadd.f32 %v2844, %v3021
        %v3023 = vpop.f32.mrb[0].mxu0
        %v3024 = vadd.f32 %v2848, %v3023
        %3025 = vmatprep.mubr.f32.mxu0 %v2452
        %3026 = vmatmul.mubr.f32.gmra.mrb[0].mxu0 %v2451
        %v3027 = vpop.f32.mrb[0].mxu0
        %v3028 = vadd.f32 %v2844, %v3027
        %v3029 = vpop.f32.mrb[0].mxu0
        %v3030 = vadd.f32 %v2848, %v3029
        %3031 = vdwg.mxu0
        %3032 = vmatprep.subr.mxu0 %v2648
        %3033 = vmatpush1.msra.mxu0 %v2647
        %3034 = vmatprep.subr.mxu0 %v2654
        %3035 = vmatpush1.msra.mxu0 %v2653
        %3036 = vmatprep.subr.mxu0 %v2660
        %3037 = vmatpush1.msra.mxu0 %v2659
        %3038 = vmatprep.subr.mxu0 %v2666
        %3039 = vmatpush1.msra.mxu0 %v2665
        %3040 = vmatprep.subr.mxu0 %v2672
        %3041 = vmatpush1.msra.mxu0 %v2671
        %3042 = vmatprep.subr.mxu0 %v2678
        %3043 = vmatpush1.msra.mxu0 %v2677
        %3044 = vmatprep.subr.mxu0 %v2684
        %3045 = vmatpush1.msra.mxu0 %v2683
        %3046 = vmatprep.subr.mxu0 %v2690
        %3047 = vmatpush1.msra.mxu0 %v2689
        %3048 = vmatprep.subr.mxu0 %v2696
        %3049 = vmatpush1.msra.mxu0 %v2695
        %3050 = vmatprep.subr.mxu0 %v2702
        %3051 = vmatpush1.msra.mxu0 %v2701
        %3052 = vmatprep.subr.mxu0 %v2708
        %3053 = vmatpush1.msra.mxu0 %v2707
        %3054 = vmatprep.subr.mxu0 %v2714
        %3055 = vmatpush1.msra.mxu0 %v2713
        %3056 = vmatprep.subr.mxu0 %v2720
        %3057 = vmatpush1.msra.mxu0 %v2719
        %3058 = vmatprep.subr.mxu0 %v2726
        %3059 = vmatpush1.msra.mxu0 %v2725
        %3060 = vmatprep.subr.mxu0 %v2732
        %3061 = vmatpush1.msra.mxu0 %v2731
        %3062 = vmatprep.subr.mxu0 %v2738
        %3063 = vmatpush1.msra.mxu0 %v2737
        %3064 = vmatprep.subr.mxu0 %v2744
        %3065 = vmatpush1.msra.mxu0 %v2743
        %3066 = vmatprep.subr.mxu0 %v2750
        %3067 = vmatpush1.msra.mxu0 %v2749
        %3068 = vmatprep.subr.mxu0 %v2756
        %3069 = vmatpush1.msra.mxu0 %v2755
        %3070 = vmatprep.subr.mxu0 %v2762
        %3071 = vmatpush1.msra.mxu0 %v2761
        %3072 = vmatprep.subr.mxu0 %v2768
        %3073 = vmatpush1.msra.mxu0 %v2767
        %3074 = vmatprep.subr.mxu0 %v2774
        %3075 = vmatpush1.msra.mxu0 %v2773
        %3076 = vmatprep.subr.mxu0 %v2780
        %3077 = vmatpush1.msra.mxu0 %v2779
        %3078 = vmatprep.subr.mxu0 %v2786
        %3079 = vmatpush1.msra.mxu0 %v2785
        %3080 = vmatprep.subr.mxu0 %v2792
        %3081 = vmatpush1.msra.mxu0 %v2791
        %3082 = vmatprep.subr.mxu0 %v2798
        %3083 = vmatpush1.msra.mxu0 %v2797
        %3084 = vmatprep.subr.mxu0 %v2804
        %3085 = vmatpush1.msra.mxu0 %v2803
        %3086 = vmatprep.subr.mxu0 %v2810
        %3087 = vmatpush1.msra.mxu0 %v2809
        %3088 = vmatprep.subr.mxu0 %v2816
        %3089 = vmatpush1.msra.mxu0 %v2815
        %3090 = vmatprep.subr.mxu0 %v2822
        %3091 = vmatpush1.msra.mxu0 %v2821
        %3092 = vmatprep.subr.mxu0 %v2828
        %3093 = vmatpush1.msra.mxu0 %v2827
        %3094 = vmatprep.subr.mxu0 %v2834
        %3095 = vmatpush1.msra.mxu0 %v2833
        %3096 = vmatprep.mubr.f32.mxu0 %v2394
        %3097 = vmatmul.mubr.f32.gmra.mrb[0].mxu0 %v2393
        %v3098 = vpop.f32.mrb[0].mxu0
        %v3099 = vadd.f32 %v2938, %v3098
        %v3100 = vpop.f32.mrb[0].mxu0
        %v3101 = vadd.f32 %v2940, %v3100
        %3102 = vmatprep.mubr.f32.mxu0 %v2398
        %3103 = vmatmul.mubr.f32.gmra.mrb[0].mxu0 %v2397
        %v3104 = vpop.f32.mrb[0].mxu0
        %v3105 = vadd.f32 %v2944, %v3104
        %v3106 = vpop.f32.mrb[0].mxu0
        %v3107 = vadd.f32 %v2946, %v3106
        %3108 = vmatprep.mubr.f32.mxu0 %v2402
        %3109 = vmatmul.mubr.f32.gmra.mrb[0].mxu0 %v2401
        %v3110 = vpop.f32.mrb[0].mxu0
        %v3111 = vadd.f32 %v2950, %v3110
        %v3112 = vpop.f32.mrb[0].mxu0
        %v3113 = vadd.f32 %v2952, %v3112
        %3114 = vmatprep.mubr.f32.mxu0 %v2406
        %3115 = vmatmul.mubr.f32.gmra.mrb[0].mxu0 %v2405
        %v3116 = vpop.f32.mrb[0].mxu0
        %v3117 = vadd.f32 %v2956, %v3116
        %v3118 = vpop.f32.mrb[0].mxu0
        %v3119 = vadd.f32 %v2958, %v3118
        %3120 = vmatprep.mubr.f32.mxu0 %v2410
        %3121 = vmatmul.mubr.f32.gmra.mrb[0].mxu0 %v2409
        %v3122 = vpop.f32.mrb[0].mxu0
        %v3123 = vadd.f32 %v2962, %v3122
        %v3124 = vpop.f32.mrb[0].mxu0
        %v3125 = vadd.f32 %v2964, %v3124
        %3126 = vmatprep.mubr.f32.mxu0 %v2414
        %3127 = vmatmul.mubr.f32.gmra.mrb[0].mxu0 %v2413
        %v3128 = vpop.f32.mrb[0].mxu0
        %v3129 = vadd.f32 %v2968, %v3128
        %v3130 = vpop.f32.mrb[0].mxu0
        %v3131 = vadd.f32 %v2970, %v3130
        %3132 = vmatprep.mubr.f32.mxu0 %v2418
        %3133 = vmatmul.mubr.f32.gmra.mrb[0].mxu0 %v2417
        %v3134 = vpop.f32.mrb[0].mxu0
        %v3135 = vadd.f32 %v2974, %v3134
        %v3136 = vpop.f32.mrb[0].mxu0
        %v3137 = vadd.f32 %v2976, %v3136
        %3138 = vmatprep.mubr.f32.mxu0 %v2422
        %3139 = vmatmul.mubr.f32.gmra.mrb[0].mxu0 %v2421
        %v3140 = vpop.f32.mrb[0].mxu0
        %v3141 = vadd.f32 %v2980, %v3140
        %v3142 = vpop.f32.mrb[0].mxu0
        %v3143 = vadd.f32 %v2982, %v3142
        %3144 = vmatprep.mubr.f32.mxu0 %v2426
        %3145 = vmatmul.mubr.f32.gmra.mrb[0].mxu0 %v2425
        %v3146 = vpop.f32.mrb[0].mxu0
        %v3147 = vadd.f32 %v2986, %v3146
        %v3148 = vpop.f32.mrb[0].mxu0
        %v3149 = vadd.f32 %v2988, %v3148
        %3150 = vmatprep.mubr.f32.mxu0 %v2430
        %3151 = vmatmul.mubr.f32.gmra.mrb[0].mxu0 %v2429
        %v3152 = vpop.f32.mrb[0].mxu0
        %v3153 = vadd.f32 %v2992, %v3152
        %v3154 = vpop.f32.mrb[0].mxu0
        %v3155 = vadd.f32 %v2994, %v3154
        %3156 = vmatprep.mubr.f32.mxu0 %v2434
        %3157 = vmatmul.mubr.f32.gmra.mrb[0].mxu0 %v2433
        %v3158 = vpop.f32.mrb[0].mxu0
        %v3159 = vadd.f32 %v2998, %v3158
        %v3160 = vpop.f32.mrb[0].mxu0
        %v3161 = vadd.f32 %v3000, %v3160
        %3162 = vmatprep.mubr.f32.mxu0 %v2438
        %3163 = vmatmul.mubr.f32.gmra.mrb[0].mxu0 %v2437
        %v3164 = vpop.f32.mrb[0].mxu0
        %v3165 = vadd.f32 %v3004, %v3164
        %v3166 = vpop.f32.mrb[0].mxu0
        %v3167 = vadd.f32 %v3006, %v3166
        %3168 = vmatprep.mubr.f32.mxu0 %v2442
        %3169 = vmatmul.mubr.f32.gmra.mrb[0].mxu0 %v2441
        %v3170 = vpop.f32.mrb[0].mxu0
        %v3171 = vadd.f32 %v3010, %v3170
        %v3172 = vpop.f32.mrb[0].mxu0
        %v3173 = vadd.f32 %v3012, %v3172
        %3174 = vmatprep.mubr.f32.mxu0 %v2446
        %3175 = vmatmul.mubr.f32.gmra.mrb[0].mxu0 %v2445
        %v3176 = vpop.f32.mrb[0].mxu0
        %v3177 = vadd.f32 %v3016, %v3176
        %v3178 = vpop.f32.mrb[0].mxu0
        %v3179 = vadd.f32 %v3018, %v3178
        %3180 = vmatprep.mubr.f32.mxu0 %v2450
        %3181 = vmatmul.mubr.f32.gmra.mrb[0].mxu0 %v2449
        %v3182 = vpop.f32.mrb[0].mxu0
        %v3183 = vadd.f32 %v3022, %v3182
        %v3184 = vpop.f32.mrb[0].mxu0
        %v3185 = vadd.f32 %v3024, %v3184
        %3186 = vmatprep.mubr.f32.mxu0 %v2454
        %3187 = vmatmul.mubr.f32.gmra.mrb[0].mxu0 %v2453
        %v3188 = vpop.f32.mrb[0].mxu0
        %v3189 = vadd.f32 %v3028, %v3188
        %v3190 = vpop.f32.mrb[0].mxu0
        %v3191 = vadd.f32 %v3030, %v3190
        %3192 = vdwg.mxu0
        %3193 = vmatprep.subr.mxu0 %v2458
        %3194 = vmatpush1.msra.mxu0 %v2457
        %3195 = vmatprep.subr.mxu0 %v2464
        %3196 = vmatpush1.msra.mxu0 %v2463
        %3197 = vmatprep.subr.mxu0 %v2470
        %3198 = vmatpush1.msra.mxu0 %v2469
        %3199 = vmatprep.subr.mxu0 %v2476
        %3200 = vmatpush1.msra.mxu0 %v2475
        %3201 = vmatprep.subr.mxu0 %v2482
        %3202 = vmatpush1.msra.mxu0 %v2481
        %3203 = vmatprep.subr.mxu0 %v2488
        %3204 = vmatpush1.msra.mxu0 %v2487
        %3205 = vmatprep.subr.mxu0 %v2494
        %3206 = vmatpush1.msra.mxu0 %v2493
        %3207 = vmatprep.subr.mxu0 %v2500
        %3208 = vmatpush1.msra.mxu0 %v2499
        %3209 = vmatprep.subr.mxu0 %v2506
        %3210 = vmatpush1.msra.mxu0 %v2505
        %3211 = vmatprep.subr.mxu0 %v2512
        %3212 = vmatpush1.msra.mxu0 %v2511
        %3213 = vmatprep.subr.mxu0 %v2518
        %3214 = vmatpush1.msra.mxu0 %v2517
        %3215 = vmatprep.subr.mxu0 %v2524
        %3216 = vmatpush1.msra.mxu0 %v2523
        %3217 = vmatprep.subr.mxu0 %v2530
        %3218 = vmatpush1.msra.mxu0 %v2529
        %3219 = vmatprep.subr.mxu0 %v2536
        %3220 = vmatpush1.msra.mxu0 %v2535
        %3221 = vmatprep.subr.mxu0 %v2542
        %3222 = vmatpush1.msra.mxu0 %v2541
        %3223 = vmatprep.subr.mxu0 %v2548
        %3224 = vmatpush1.msra.mxu0 %v2547
        %3225 = vmatprep.subr.mxu0 %v2554
        %3226 = vmatpush1.msra.mxu0 %v2553
        %3227 = vmatprep.subr.mxu0 %v2560
        %3228 = vmatpush1.msra.mxu0 %v2559
        %3229 = vmatprep.subr.mxu0 %v2566
        %3230 = vmatpush1.msra.mxu0 %v2565
        %3231 = vmatprep.subr.mxu0 %v2572
        %3232 = vmatpush1.msra.mxu0 %v2571
        %3233 = vmatprep.subr.mxu0 %v2578
        %3234 = vmatpush1.msra.mxu0 %v2577
        %3235 = vmatprep.subr.mxu0 %v2584
        %3236 = vmatpush1.msra.mxu0 %v2583
        %3237 = vmatprep.subr.mxu0 %v2590
        %3238 = vmatpush1.msra.mxu0 %v2589
        %3239 = vmatprep.subr.mxu0 %v2596
        %3240 = vmatpush1.msra.mxu0 %v2595
        %3241 = vmatprep.subr.mxu0 %v2602
        %3242 = vmatpush1.msra.mxu0 %v2601
        %3243 = vmatprep.subr.mxu0 %v2608
        %3244 = vmatpush1.msra.mxu0 %v2607
        %3245 = vmatprep.subr.mxu0 %v2614
        %3246 = vmatpush1.msra.mxu0 %v2613
        %3247 = vmatprep.subr.mxu0 %v2620
        %3248 = vmatpush1.msra.mxu0 %v2619
        %3249 = vmatprep.subr.mxu0 %v2626
        %3250 = vmatpush1.msra.mxu0 %v2625
        %3251 = vmatprep.subr.mxu0 %v2632
        %3252 = vmatpush1.msra.mxu0 %v2631
        %3253 = vmatprep.subr.mxu0 %v2638
        %3254 = vmatpush1.msra.mxu0 %v2637
        %3255 = vmatprep.subr.mxu0 %v2644
        %3256 = vmatpush1.msra.mxu0 %v2643
        %3257 = vmatprep.mubr.f32.mxu0 %v2392
        %3258 = vmatmul.mubr.f32.gmra.mrb[0].mxu0 %v2391
        %v3259 = vpop.f32.mrb[0].mxu0
        %v3260 = vadd.f32 %v2852, %v3259
        %v3261 = vpop.f32.mrb[0].mxu0
        %v3262 = vadd.f32 %v2856, %v3261
        %3263 = vmatprep.mubr.f32.mxu0 %v2396
        %3264 = vmatmul.mubr.f32.gmra.mrb[0].mxu0 %v2395
        %v3265 = vpop.f32.mrb[0].mxu0
        %v3266 = vadd.f32 %v2852, %v3265
        %v3267 = vpop.f32.mrb[0].mxu0
        %v3268 = vadd.f32 %v2856, %v3267
        %3269 = vmatprep.mubr.f32.mxu0 %v2400
        %3270 = vmatmul.mubr.f32.gmra.mrb[0].mxu0 %v2399
        %v3271 = vpop.f32.mrb[0].mxu0
        %v3272 = vadd.f32 %v2852, %v3271
        %v3273 = vpop.f32.mrb[0].mxu0
        %v3274 = vadd.f32 %v2856, %v3273
        %3275 = vmatprep.mubr.f32.mxu0 %v2404
        %3276 = vmatmul.mubr.f32.gmra.mrb[0].mxu0 %v2403
        %v3277 = vpop.f32.mrb[0].mxu0
        %v3278 = vadd.f32 %v2852, %v3277
        %v3279 = vpop.f32.mrb[0].mxu0
        %v3280 = vadd.f32 %v2856, %v3279
        %3281 = vmatprep.mubr.f32.mxu0 %v2408
        %3282 = vmatmul.mubr.f32.gmra.mrb[0].mxu0 %v2407
        %v3283 = vpop.f32.mrb[0].mxu0
        %v3284 = vadd.f32 %v2852, %v3283
        %v3285 = vpop.f32.mrb[0].mxu0
        %v3286 = vadd.f32 %v2856, %v3285
        %3287 = vmatprep.mubr.f32.mxu0 %v2412
        %3288 = vmatmul.mubr.f32.gmra.mrb[0].mxu0 %v2411
        %v3289 = vpop.f32.mrb[0].mxu0
        %v3290 = vadd.f32 %v2852, %v3289
        %v3291 = vpop.f32.mrb[0].mxu0
        %v3292 = vadd.f32 %v2856, %v3291
        %3293 = vmatprep.mubr.f32.mxu0 %v2416
        %3294 = vmatmul.mubr.f32.gmra.mrb[0].mxu0 %v2415
        %v3295 = vpop.f32.mrb[0].mxu0
        %v3296 = vadd.f32 %v2852, %v3295
        %v3297 = vpop.f32.mrb[0].mxu0
        %v3298 = vadd.f32 %v2856, %v3297
        %3299 = vmatprep.mubr.f32.mxu0 %v2420
        %3300 = vmatmul.mubr.f32.gmra.mrb[0].mxu0 %v2419
        %v3301 = vpop.f32.mrb[0].mxu0
        %v3302 = vadd.f32 %v2852, %v3301
        %v3303 = vpop.f32.mrb[0].mxu0
        %v3304 = vadd.f32 %v2856, %v3303
        %3305 = vmatprep.mubr.f32.mxu0 %v2424
        %3306 = vmatmul.mubr.f32.gmra.mrb[0].mxu0 %v2423
        %v3307 = vpop.f32.mrb[0].mxu0
        %v3308 = vadd.f32 %v2852, %v3307
        %v3309 = vpop.f32.mrb[0].mxu0
        %v3310 = vadd.f32 %v2856, %v3309
        %3311 = vmatprep.mubr.f32.mxu0 %v2428
        %3312 = vmatmul.mubr.f32.gmra.mrb[0].mxu0 %v2427
        %v3313 = vpop.f32.mrb[0].mxu0
        %v3314 = vadd.f32 %v2852, %v3313
        %v3315 = vpop.f32.mrb[0].mxu0
        %v3316 = vadd.f32 %v2856, %v3315
        %3317 = vmatprep.mubr.f32.mxu0 %v2432
        %3318 = vmatmul.mubr.f32.gmra.mrb[0].mxu0 %v2431
        %v3319 = vpop.f32.mrb[0].mxu0
        %v3320 = vadd.f32 %v2852, %v3319
        %v3321 = vpop.f32.mrb[0].mxu0
        %v3322 = vadd.f32 %v2856, %v3321
        %3323 = vmatprep.mubr.f32.mxu0 %v2436
        %3324 = vmatmul.mubr.f32.gmra.mrb[0].mxu0 %v2435
        %v3325 = vpop.f32.mrb[0].mxu0
        %v3326 = vadd.f32 %v2852, %v3325
        %v3327 = vpop.f32.mrb[0].mxu0
        %v3328 = vadd.f32 %v2856, %v3327
        %3329 = vmatprep.mubr.f32.mxu0 %v2440
        %3330 = vmatmul.mubr.f32.gmra.mrb[0].mxu0 %v2439
        %v3331 = vpop.f32.mrb[0].mxu0
        %v3332 = vadd.f32 %v2852, %v3331
        %v3333 = vpop.f32.mrb[0].mxu0
        %v3334 = vadd.f32 %v2856, %v3333
        %3335 = vmatprep.mubr.f32.mxu0 %v2444
        %3336 = vmatmul.mubr.f32.gmra.mrb[0].mxu0 %v2443
        %v3337 = vpop.f32.mrb[0].mxu0
        %v3338 = vadd.f32 %v2852, %v3337
        %v3339 = vpop.f32.mrb[0].mxu0
        %v3340 = vadd.f32 %v2856, %v3339
        %3341 = vmatprep.mubr.f32.mxu0 %v2448
        %3342 = vmatmul.mubr.f32.gmra.mrb[0].mxu0 %v2447
        %v3343 = vpop.f32.mrb[0].mxu0
        %v3344 = vadd.f32 %v2852, %v3343
        %v3345 = vpop.f32.mrb[0].mxu0
        %v3346 = vadd.f32 %v2856, %v3345
        %3347 = vmatprep.mubr.f32.mxu0 %v2452
        %3348 = vmatmul.mubr.f32.gmra.mrb[0].mxu0 %v2451
        %v3349 = vpop.f32.mrb[0].mxu0
        %v3350 = vadd.f32 %v2852, %v3349
        %v3351 = vpop.f32.mrb[0].mxu0
        %v3352 = vadd.f32 %v2856, %v3351
        %3353 = vdwg.mxu0
        %3354 = vmatprep.subr.mxu0 %v2650
        %3355 = vmatpush1.msra.mxu0 %v2649
        %3356 = vmatprep.subr.mxu0 %v2656
        %3357 = vmatpush1.msra.mxu0 %v2655
        %3358 = vmatprep.subr.mxu0 %v2662
        %3359 = vmatpush1.msra.mxu0 %v2661
        %3360 = vmatprep.subr.mxu0 %v2668
        %3361 = vmatpush1.msra.mxu0 %v2667
        %3362 = vmatprep.subr.mxu0 %v2674
        %3363 = vmatpush1.msra.mxu0 %v2673
        %3364 = vmatprep.subr.mxu0 %v2680
        %3365 = vmatpush1.msra.mxu0 %v2679
        %3366 = vmatprep.subr.mxu0 %v2686
        %3367 = vmatpush1.msra.mxu0 %v2685
        %3368 = vmatprep.subr.mxu0 %v2692
        %3369 = vmatpush1.msra.mxu0 %v2691
        %3370 = vmatprep.subr.mxu0 %v2698
        %3371 = vmatpush1.msra.mxu0 %v2697
        %3372 = vmatprep.subr.mxu0 %v2704
        %3373 = vmatpush1.msra.mxu0 %v2703
        %3374 = vmatprep.subr.mxu0 %v2710
        %3375 = vmatpush1.msra.mxu0 %v2709
        %3376 = vmatprep.subr.mxu0 %v2716
        %3377 = vmatpush1.msra.mxu0 %v2715
        %3378 = vmatprep.subr.mxu0 %v2722
        %3379 = vmatpush1.msra.mxu0 %v2721
        %3380 = vmatprep.subr.mxu0 %v2728
        %3381 = vmatpush1.msra.mxu0 %v2727
        %3382 = vmatprep.subr.mxu0 %v2734
        %3383 = vmatpush1.msra.mxu0 %v2733
        %3384 = vmatprep.subr.mxu0 %v2740
        %3385 = vmatpush1.msra.mxu0 %v2739
        %3386 = vmatprep.subr.mxu0 %v2746
        %3387 = vmatpush1.msra.mxu0 %v2745
        %3388 = vmatprep.subr.mxu0 %v2752
        %3389 = vmatpush1.msra.mxu0 %v2751
        %3390 = vmatprep.subr.mxu0 %v2758
        %3391 = vmatpush1.msra.mxu0 %v2757
        %3392 = vmatprep.subr.mxu0 %v2764
        %3393 = vmatpush1.msra.mxu0 %v2763
        %3394 = vmatprep.subr.mxu0 %v2770
        %3395 = vmatpush1.msra.mxu0 %v2769
        %3396 = vmatprep.subr.mxu0 %v2776
        %3397 = vmatpush1.msra.mxu0 %v2775
        %3398 = vmatprep.subr.mxu0 %v2782
        %3399 = vmatpush1.msra.mxu0 %v2781
        %3400 = vmatprep.subr.mxu0 %v2788
        %3401 = vmatpush1.msra.mxu0 %v2787
        %3402 = vmatprep.subr.mxu0 %v2794
        %3403 = vmatpush1.msra.mxu0 %v2793
        %3404 = vmatprep.subr.mxu0 %v2800
        %3405 = vmatpush1.msra.mxu0 %v2799
        %3406 = vmatprep.subr.mxu0 %v2806
        %3407 = vmatpush1.msra.mxu0 %v2805
        %3408 = vmatprep.subr.mxu0 %v2812
        %3409 = vmatpush1.msra.mxu0 %v2811
        %3410 = vmatprep.subr.mxu0 %v2818
        %3411 = vmatpush1.msra.mxu0 %v2817
        %3412 = vmatprep.subr.mxu0 %v2824
        %3413 = vmatpush1.msra.mxu0 %v2823
        %3414 = vmatprep.subr.mxu0 %v2830
        %3415 = vmatpush1.msra.mxu0 %v2829
        %3416 = vmatprep.subr.mxu0 %v2836
        %3417 = vmatpush1.msra.mxu0 %v2835
        %3418 = vmatprep.mubr.f32.mxu0 %v2394
        %3419 = vmatmul.mubr.f32.gmra.mrb[0].mxu0 %v2393
        %v3420 = vpop.f32.mrb[0].mxu0
        %v3421 = vadd.f32 %v3260, %v3420
        %v3422 = vpop.f32.mrb[0].mxu0
        %v3423 = vadd.f32 %v3262, %v3422
        %3424 = vmatprep.mubr.f32.mxu0 %v2398
        %3425 = vmatmul.mubr.f32.gmra.mrb[0].mxu0 %v2397
        %v3426 = vpop.f32.mrb[0].mxu0
        %v3427 = vadd.f32 %v3266, %v3426
        %v3428 = vpop.f32.mrb[0].mxu0
        %v3429 = vadd.f32 %v3268, %v3428
        %3430 = vmatprep.mubr.f32.mxu0 %v2402
        %3431 = vmatmul.mubr.f32.gmra.mrb[0].mxu0 %v2401
        %v3432 = vpop.f32.mrb[0].mxu0
        %v3433 = vadd.f32 %v3272, %v3432
        %v3434 = vpop.f32.mrb[0].mxu0
        %v3435 = vadd.f32 %v3274, %v3434
        %3436 = vmatprep.mubr.f32.mxu0 %v2406
        %3437 = vmatmul.mubr.f32.gmra.mrb[0].mxu0 %v2405
        %v3438 = vpop.f32.mrb[0].mxu0
        %v3439 = vadd.f32 %v3278, %v3438
        %v3440 = vpop.f32.mrb[0].mxu0
        %v3441 = vadd.f32 %v3280, %v3440
        %3442 = vmatprep.mubr.f32.mxu0 %v2410
        %3443 = vmatmul.mubr.f32.gmra.mrb[0].mxu0 %v2409
        %v3444 = vpop.f32.mrb[0].mxu0
        %v3445 = vadd.f32 %v3284, %v3444
        %v3446 = vpop.f32.mrb[0].mxu0
        %v3447 = vadd.f32 %v3286, %v3446
        %3448 = vmatprep.mubr.f32.mxu0 %v2414
        %3449 = vmatmul.mubr.f32.gmra.mrb[0].mxu0 %v2413
        %v3450 = vpop.f32.mrb[0].mxu0
        %v3451 = vadd.f32 %v3290, %v3450
        %v3452 = vpop.f32.mrb[0].mxu0
        %v3453 = vadd.f32 %v3292, %v3452
        %3454 = vmatprep.mubr.f32.mxu0 %v2418
        %3455 = vmatmul.mubr.f32.gmra.mrb[0].mxu0 %v2417
        %v3456 = vpop.f32.mrb[0].mxu0
        %v3457 = vadd.f32 %v3296, %v3456
        %v3458 = vpop.f32.mrb[0].mxu0
        %v3459 = vadd.f32 %v3298, %v3458
        %3460 = vmatprep.mubr.f32.mxu0 %v2422
        %3461 = vmatmul.mubr.f32.gmra.mrb[0].mxu0 %v2421
        %v3462 = vpop.f32.mrb[0].mxu0
        %v3463 = vadd.f32 %v3302, %v3462
        %v3464 = vpop.f32.mrb[0].mxu0
        %v3465 = vadd.f32 %v3304, %v3464
        %3466 = vmatprep.mubr.f32.mxu0 %v2426
        %3467 = vmatmul.mubr.f32.gmra.mrb[0].mxu0 %v2425
        %v3468 = vpop.f32.mrb[0].mxu0
        %v3469 = vadd.f32 %v3308, %v3468
        %v3470 = vpop.f32.mrb[0].mxu0
        %v3471 = vadd.f32 %v3310, %v3470
        %3472 = vmatprep.mubr.f32.mxu0 %v2430
        %3473 = vmatmul.mubr.f32.gmra.mrb[0].mxu0 %v2429
        %v3474 = vpop.f32.mrb[0].mxu0
        %v3475 = vadd.f32 %v3314, %v3474
        %v3476 = vpop.f32.mrb[0].mxu0
        %v3477 = vadd.f32 %v3316, %v3476
        %3478 = vmatprep.mubr.f32.mxu0 %v2434
        %3479 = vmatmul.mubr.f32.gmra.mrb[0].mxu0 %v2433
        %v3480 = vpop.f32.mrb[0].mxu0
        %v3481 = vadd.f32 %v3320, %v3480
        %v3482 = vpop.f32.mrb[0].mxu0
        %v3483 = vadd.f32 %v3322, %v3482
        %3484 = vmatprep.mubr.f32.mxu0 %v2438
        %3485 = vmatmul.mubr.f32.gmra.mrb[0].mxu0 %v2437
        %v3486 = vpop.f32.mrb[0].mxu0
        %v3487 = vadd.f32 %v3326, %v3486
        %v3488 = vpop.f32.mrb[0].mxu0
        %v3489 = vadd.f32 %v3328, %v3488
        %3490 = vmatprep.mubr.f32.mxu0 %v2442
        %3491 = vmatmul.mubr.f32.gmra.mrb[0].mxu0 %v2441
        %v3492 = vpop.f32.mrb[0].mxu0
        %v3493 = vadd.f32 %v3332, %v3492
        %v3494 = vpop.f32.mrb[0].mxu0
        %v3495 = vadd.f32 %v3334, %v3494
        %3496 = vmatprep.mubr.f32.mxu0 %v2446
        %3497 = vmatmul.mubr.f32.gmra.mrb[0].mxu0 %v2445
        %v3498 = vpop.f32.mrb[0].mxu0
        %v3499 = vadd.f32 %v3338, %v3498
        %v3500 = vpop.f32.mrb[0].mxu0
        %v3501 = vadd.f32 %v3340, %v3500
        %3502 = vmatprep.mubr.f32.mxu0 %v2450
        %3503 = vmatmul.mubr.f32.gmra.mrb[0].mxu0 %v2449
        %v3504 = vpop.f32.mrb[0].mxu0
        %v3505 = vadd.f32 %v3344, %v3504
        %v3506 = vpop.f32.mrb[0].mxu0
        %v3507 = vadd.f32 %v3346, %v3506
        %3508 = vmatprep.mubr.f32.mxu0 %v2454
        %3509 = vmatmul.mubr.f32.gmra.mrb[0].mxu0 %v2453
        %v3510 = vpop.f32.mrb[0].mxu0
        %v3511 = vadd.f32 %v3350, %v3510
        %v3512 = vpop.f32.mrb[0].mxu0
        %v3513 = vadd.f32 %v3352, %v3512
        %3514 = vdwg.mxu0
        %3515 = vmatprep.subr.mxu0 %v2460
        %3516 = vmatpush1.msra.mxu0 %v2459
        %3517 = vmatprep.subr.mxu0 %v2466
        %3518 = vmatpush1.msra.mxu0 %v2465
        %3519 = vmatprep.subr.mxu0 %v2472
        %3520 = vmatpush1.msra.mxu0 %v2471
        %3521 = vmatprep.subr.mxu0 %v2478
        %3522 = vmatpush1.msra.mxu0 %v2477
        %3523 = vmatprep.subr.mxu0 %v2484
        %3524 = vmatpush1.msra.mxu0 %v2483
        %3525 = vmatprep.subr.mxu0 %v2490
        %3526 = vmatpush1.msra.mxu0 %v2489
        %3527 = vmatprep.subr.mxu0 %v2496
        %3528 = vmatpush1.msra.mxu0 %v2495
        %3529 = vmatprep.subr.mxu0 %v2502
        %3530 = vmatpush1.msra.mxu0 %v2501
        %3531 = vmatprep.subr.mxu0 %v2508
        %3532 = vmatpush1.msra.mxu0 %v2507
        %3533 = vmatprep.subr.mxu0 %v2514
        %3534 = vmatpush1.msra.mxu0 %v2513
        %3535 = vmatprep.subr.mxu0 %v2520
        %3536 = vmatpush1.msra.mxu0 %v2519
        %3537 = vmatprep.subr.mxu0 %v2526
        %3538 = vmatpush1.msra.mxu0 %v2525
        %3539 = vmatprep.subr.mxu0 %v2532
        %3540 = vmatpush1.msra.mxu0 %v2531
        %3541 = vmatprep.subr.mxu0 %v2538
        %3542 = vmatpush1.msra.mxu0 %v2537
        %3543 = vmatprep.subr.mxu0 %v2544
        %3544 = vmatpush1.msra.mxu0 %v2543
        %3545 = vmatprep.subr.mxu0 %v2550
        %3546 = vmatpush1.msra.mxu0 %v2549
        %3547 = vmatprep.subr.mxu0 %v2556
        %3548 = vmatpush1.msra.mxu0 %v2555
        %3549 = vmatprep.subr.mxu0 %v2562
        %3550 = vmatpush1.msra.mxu0 %v2561
        %3551 = vmatprep.subr.mxu0 %v2568
        %3552 = vmatpush1.msra.mxu0 %v2567
        %3553 = vmatprep.subr.mxu0 %v2574
        %3554 = vmatpush1.msra.mxu0 %v2573
        %3555 = vmatprep.subr.mxu0 %v2580
        %3556 = vmatpush1.msra.mxu0 %v2579
        %3557 = vmatprep.subr.mxu0 %v2586
        %3558 = vmatpush1.msra.mxu0 %v2585
        %3559 = vmatprep.subr.mxu0 %v2592
        %3560 = vmatpush1.msra.mxu0 %v2591
        %3561 = vmatprep.subr.mxu0 %v2598
        %3562 = vmatpush1.msra.mxu0 %v2597
        %3563 = vmatprep.subr.mxu0 %v2604
        %3564 = vmatpush1.msra.mxu0 %v2603
        %3565 = vmatprep.subr.mxu0 %v2610
        %3566 = vmatpush1.msra.mxu0 %v2609
        %3567 = vmatprep.subr.mxu0 %v2616
        %3568 = vmatpush1.msra.mxu0 %v2615
        %3569 = vmatprep.subr.mxu0 %v2622
        %3570 = vmatpush1.msra.mxu0 %v2621
        %3571 = vmatprep.subr.mxu0 %v2628
        %3572 = vmatpush1.msra.mxu0 %v2627
        %3573 = vmatprep.subr.mxu0 %v2634
        %3574 = vmatpush1.msra.mxu0 %v2633
        %3575 = vmatprep.subr.mxu0 %v2640
        %3576 = vmatpush1.msra.mxu0 %v2639
        %3577 = vmatprep.subr.mxu0 %v2646
        %3578 = vmatpush1.msra.mxu0 %v2645
        %3579 = vmatprep.mubr.f32.mxu0 %v2392
        %3580 = vmatmul.mubr.f32.gmra.mrb[0].mxu0 %v2391
        %v3581 = vpop.f32.mrb[0].mxu0
        %v3582 = vadd.f32 %v2860, %v3581
        %v3583 = vpop.f32.mrb[0].mxu0
        %v3584 = vadd.f32 %v2864, %v3583
        %3585 = vmatprep.mubr.f32.mxu0 %v2396
        %3586 = vmatmul.mubr.f32.gmra.mrb[0].mxu0 %v2395
        %v3587 = vpop.f32.mrb[0].mxu0
        %v3588 = vadd.f32 %v2860, %v3587
        %v3589 = vpop.f32.mrb[0].mxu0
        %v3590 = vadd.f32 %v2864, %v3589
        %3591 = vmatprep.mubr.f32.mxu0 %v2400
        %3592 = vmatmul.mubr.f32.gmra.mrb[0].mxu0 %v2399
        %v3593 = vpop.f32.mrb[0].mxu0
        %v3594 = vadd.f32 %v2860, %v3593
        %v3595 = vpop.f32.mrb[0].mxu0
        %v3596 = vadd.f32 %v2864, %v3595
        %3597 = vmatprep.mubr.f32.mxu0 %v2404
        %3598 = vmatmul.mubr.f32.gmra.mrb[0].mxu0 %v2403
        %v3599 = vpop.f32.mrb[0].mxu0
        %v3600 = vadd.f32 %v2860, %v3599
        %v3601 = vpop.f32.mrb[0].mxu0
        %v3602 = vadd.f32 %v2864, %v3601
        %3603 = vmatprep.mubr.f32.mxu0 %v2408
        %3604 = vmatmul.mubr.f32.gmra.mrb[0].mxu0 %v2407
        %v3605 = vpop.f32.mrb[0].mxu0
        %v3606 = vadd.f32 %v2860, %v3605
        %v3607 = vpop.f32.mrb[0].mxu0
        %v3608 = vadd.f32 %v2864, %v3607
        %3609 = vmatprep.mubr.f32.mxu0 %v2412
        %3610 = vmatmul.mubr.f32.gmra.mrb[0].mxu0 %v2411
        %v3611 = vpop.f32.mrb[0].mxu0
        %v3612 = vadd.f32 %v2860, %v3611
        %v3613 = vpop.f32.mrb[0].mxu0
        %v3614 = vadd.f32 %v2864, %v3613
        %3615 = vmatprep.mubr.f32.mxu0 %v2416
        %3616 = vmatmul.mubr.f32.gmra.mrb[0].mxu0 %v2415
        %v3617 = vpop.f32.mrb[0].mxu0
        %v3618 = vadd.f32 %v2860, %v3617
        %v3619 = vpop.f32.mrb[0].mxu0
        %v3620 = vadd.f32 %v2864, %v3619
        %3621 = vmatprep.mubr.f32.mxu0 %v2420
        %3622 = vmatmul.mubr.f32.gmra.mrb[0].mxu0 %v2419
        %v3623 = vpop.f32.mrb[0].mxu0
        %v3624 = vadd.f32 %v2860, %v3623
        %v3625 = vpop.f32.mrb[0].mxu0
        %v3626 = vadd.f32 %v2864, %v3625
        %3627 = vmatprep.mubr.f32.mxu0 %v2424
        %3628 = vmatmul.mubr.f32.gmra.mrb[0].mxu0 %v2423
        %v3629 = vpop.f32.mrb[0].mxu0
        %v3630 = vadd.f32 %v2860, %v3629
        %v3631 = vpop.f32.mrb[0].mxu0
        %v3632 = vadd.f32 %v2864, %v3631
        %3633 = vmatprep.mubr.f32.mxu0 %v2428
        %3634 = vmatmul.mubr.f32.gmra.mrb[0].mxu0 %v2427
        %v3635 = vpop.f32.mrb[0].mxu0
        %v3636 = vadd.f32 %v2860, %v3635
        %v3637 = vpop.f32.mrb[0].mxu0
        %v3638 = vadd.f32 %v2864, %v3637
        %3639 = vmatprep.mubr.f32.mxu0 %v2432
        %3640 = vmatmul.mubr.f32.gmra.mrb[0].mxu0 %v2431
        %v3641 = vpop.f32.mrb[0].mxu0
        %v3642 = vadd.f32 %v2860, %v3641
        %v3643 = vpop.f32.mrb[0].mxu0
        %v3644 = vadd.f32 %v2864, %v3643
        %3645 = vmatprep.mubr.f32.mxu0 %v2436
        %3646 = vmatmul.mubr.f32.gmra.mrb[0].mxu0 %v2435
        %v3647 = vpop.f32.mrb[0].mxu0
        %v3648 = vadd.f32 %v2860, %v3647
        %v3649 = vpop.f32.mrb[0].mxu0
        %v3650 = vadd.f32 %v2864, %v3649
        %3651 = vmatprep.mubr.f32.mxu0 %v2440
        %3652 = vmatmul.mubr.f32.gmra.mrb[0].mxu0 %v2439
        %v3653 = vpop.f32.mrb[0].mxu0
        %v3654 = vadd.f32 %v2860, %v3653
        %v3655 = vpop.f32.mrb[0].mxu0
        %v3656 = vadd.f32 %v2864, %v3655
        %3657 = vmatprep.mubr.f32.mxu0 %v2444
        %3658 = vmatmul.mubr.f32.gmra.mrb[0].mxu0 %v2443
        %v3659 = vpop.f32.mrb[0].mxu0
        %v3660 = vadd.f32 %v2860, %v3659
        %v3661 = vpop.f32.mrb[0].mxu0
        %v3662 = vadd.f32 %v2864, %v3661
        %3663 = vmatprep.mubr.f32.mxu0 %v2448
        %3664 = vmatmul.mubr.f32.gmra.mrb[0].mxu0 %v2447
        %v3665 = vpop.f32.mrb[0].mxu0
        %v3666 = vadd.f32 %v2860, %v3665
        %v3667 = vpop.f32.mrb[0].mxu0
        %v3668 = vadd.f32 %v2864, %v3667
        %3669 = vmatprep.mubr.f32.mxu0 %v2452
        %3670 = vmatmul.mubr.f32.gmra.mrb[0].mxu0 %v2451
        %v3671 = vpop.f32.mrb[0].mxu0
        %v3672 = vadd.f32 %v2860, %v3671
        %v3673 = vpop.f32.mrb[0].mxu0
        %v3674 = vadd.f32 %v2864, %v3673
        %3675 = vdwg.mxu0
        %3676 = vmatprep.subr.mxu0 %v2652
        %3677 = vmatpush1.msra.mxu0 %v2651
        %3678 = vmatprep.subr.mxu0 %v2658
        %3679 = vmatpush1.msra.mxu0 %v2657
        %3680 = vmatprep.subr.mxu0 %v2664
        %3681 = vmatpush1.msra.mxu0 %v2663
        %3682 = vmatprep.subr.mxu0 %v2670
        %3683 = vmatpush1.msra.mxu0 %v2669
        %3684 = vmatprep.subr.mxu0 %v2676
        %3685 = vmatpush1.msra.mxu0 %v2675
        %3686 = vmatprep.subr.mxu0 %v2682
        %3687 = vmatpush1.msra.mxu0 %v2681
        %3688 = vmatprep.subr.mxu0 %v2688
        %3689 = vmatpush1.msra.mxu0 %v2687
        %3690 = vmatprep.subr.mxu0 %v2694
        %3691 = vmatpush1.msra.mxu0 %v2693
        %3692 = vmatprep.subr.mxu0 %v2700
        %3693 = vmatpush1.msra.mxu0 %v2699
        %3694 = vmatprep.subr.mxu0 %v2706
        %3695 = vmatpush1.msra.mxu0 %v2705
        %3696 = vmatprep.subr.mxu0 %v2712
        %3697 = vmatpush1.msra.mxu0 %v2711
        %3698 = vmatprep.subr.mxu0 %v2718
        %3699 = vmatpush1.msra.mxu0 %v2717
        %3700 = vmatprep.subr.mxu0 %v2724
        %3701 = vmatpush1.msra.mxu0 %v2723
        %3702 = vmatprep.subr.mxu0 %v2730
        %3703 = vmatpush1.msra.mxu0 %v2729
        %3704 = vmatprep.subr.mxu0 %v2736
        %3705 = vmatpush1.msra.mxu0 %v2735
        %3706 = vmatprep.subr.mxu0 %v2742
        %3707 = vmatpush1.msra.mxu0 %v2741
        %3708 = vmatprep.subr.mxu0 %v2748
        %3709 = vmatpush1.msra.mxu0 %v2747
        %3710 = vmatprep.subr.mxu0 %v2754
        %3711 = vmatpush1.msra.mxu0 %v2753
        %3712 = vmatprep.subr.mxu0 %v2760
        %3713 = vmatpush1.msra.mxu0 %v2759
        %3714 = vmatprep.subr.mxu0 %v2766
        %3715 = vmatpush1.msra.mxu0 %v2765
        %3716 = vmatprep.subr.mxu0 %v2772
        %3717 = vmatpush1.msra.mxu0 %v2771
        %3718 = vmatprep.subr.mxu0 %v2778
        %3719 = vmatpush1.msra.mxu0 %v2777
        %3720 = vmatprep.subr.mxu0 %v2784
        %3721 = vmatpush1.msra.mxu0 %v2783
        %3722 = vmatprep.subr.mxu0 %v2790
        %3723 = vmatpush1.msra.mxu0 %v2789
        %3724 = vmatprep.subr.mxu0 %v2796
        %3725 = vmatpush1.msra.mxu0 %v2795
        %3726 = vmatprep.subr.mxu0 %v2802
        %3727 = vmatpush1.msra.mxu0 %v2801
        %3728 = vmatprep.subr.mxu0 %v2808
        %3729 = vmatpush1.msra.mxu0 %v2807
        %3730 = vmatprep.subr.mxu0 %v2814
        %3731 = vmatpush1.msra.mxu0 %v2813
        %3732 = vmatprep.subr.mxu0 %v2820
        %3733 = vmatpush1.msra.mxu0 %v2819
        %3734 = vmatprep.subr.mxu0 %v2826
        %3735 = vmatpush1.msra.mxu0 %v2825
        %3736 = vmatprep.subr.mxu0 %v2832
        %3737 = vmatpush1.msra.mxu0 %v2831
        %3738 = vmatprep.subr.mxu0 %v2838
        %3739 = vmatpush1.msra.mxu0 %v2837
        %3740 = vmatprep.mubr.f32.mxu0 %v2394
        %3741 = vmatmul.mubr.f32.gmra.mrb[0].mxu0 %v2393
        %v3742 = vpop.f32.mrb[0].mxu0
        %v3743 = vadd.f32 %v3582, %v3742
        %v3744 = vpop.f32.mrb[0].mxu0
        %v3745 = vadd.f32 %v3584, %v3744
        %3746 = vmatprep.mubr.f32.mxu0 %v2398
        %3747 = vmatmul.mubr.f32.gmra.mrb[0].mxu0 %v2397
        %v3748 = vpop.f32.mrb[0].mxu0
        %v3749 = vadd.f32 %v3588, %v3748
        %v3750 = vpop.f32.mrb[0].mxu0
        %v3751 = vadd.f32 %v3590, %v3750
        %3752 = vmatprep.mubr.f32.mxu0 %v2402
        %3753 = vmatmul.mubr.f32.gmra.mrb[0].mxu0 %v2401
        %v3754 = vpop.f32.mrb[0].mxu0
        %v3755 = vadd.f32 %v3594, %v3754
        %v3756 = vpop.f32.mrb[0].mxu0
        %v3757 = vadd.f32 %v3596, %v3756
        %3758 = vmatprep.mubr.f32.mxu0 %v2406
        %3759 = vmatmul.mubr.f32.gmra.mrb[0].mxu0 %v2405
        %v3760 = vpop.f32.mrb[0].mxu0
        %v3761 = vadd.f32 %v3600, %v3760
        %v3762 = vpop.f32.mrb[0].mxu0
        %v3763 = vadd.f32 %v3602, %v3762
        %3764 = vmatprep.mubr.f32.mxu0 %v2410
        %3765 = vmatmul.mubr.f32.gmra.mrb[0].mxu0 %v2409
        %v3766 = vpop.f32.mrb[0].mxu0
        %v3767 = vadd.f32 %v3606, %v3766
        %v3768 = vpop.f32.mrb[0].mxu0
        %v3769 = vadd.f32 %v3608, %v3768
        %3770 = vmatprep.mubr.f32.mxu0 %v2414
        %3771 = vmatmul.mubr.f32.gmra.mrb[0].mxu0 %v2413
        %v3772 = vpop.f32.mrb[0].mxu0
        %v3773 = vadd.f32 %v3612, %v3772
        %v3774 = vpop.f32.mrb[0].mxu0
        %v3775 = vadd.f32 %v3614, %v3774
        %3776 = vmatprep.mubr.f32.mxu0 %v2418
        %3777 = vmatmul.mubr.f32.gmra.mrb[0].mxu0 %v2417
        %v3778 = vpop.f32.mrb[0].mxu0
        %v3779 = vadd.f32 %v3618, %v3778
        %v3780 = vpop.f32.mrb[0].mxu0
        %v3781 = vadd.f32 %v3620, %v3780
        %3782 = vmatprep.mubr.f32.mxu0 %v2422
        %3783 = vmatmul.mubr.f32.gmra.mrb[0].mxu0 %v2421
        %v3784 = vpop.f32.mrb[0].mxu0
        %v3785 = vadd.f32 %v3624, %v3784
        %v3786 = vpop.f32.mrb[0].mxu0
        %v3787 = vadd.f32 %v3626, %v3786
        %3788 = vmatprep.mubr.f32.mxu0 %v2426
        %3789 = vmatmul.mubr.f32.gmra.mrb[0].mxu0 %v2425
        %v3790 = vpop.f32.mrb[0].mxu0
        %v3791 = vadd.f32 %v3630, %v3790
        %v3792 = vpop.f32.mrb[0].mxu0
        %v3793 = vadd.f32 %v3632, %v3792
        %3794 = vmatprep.mubr.f32.mxu0 %v2430
        %3795 = vmatmul.mubr.f32.gmra.mrb[0].mxu0 %v2429
        %v3796 = vpop.f32.mrb[0].mxu0
        %v3797 = vadd.f32 %v3636, %v3796
        %v3798 = vpop.f32.mrb[0].mxu0
        %v3799 = vadd.f32 %v3638, %v3798
        %3800 = vmatprep.mubr.f32.mxu0 %v2434
        %3801 = vmatmul.mubr.f32.gmra.mrb[0].mxu0 %v2433
        %v3802 = vpop.f32.mrb[0].mxu0
        %v3803 = vadd.f32 %v3642, %v3802
        %v3804 = vpop.f32.mrb[0].mxu0
        %v3805 = vadd.f32 %v3644, %v3804
        %3806 = vmatprep.mubr.f32.mxu0 %v2438
        %3807 = vmatmul.mubr.f32.gmra.mrb[0].mxu0 %v2437
        %v3808 = vpop.f32.mrb[0].mxu0
        %v3809 = vadd.f32 %v3648, %v3808
        %v3810 = vpop.f32.mrb[0].mxu0
        %v3811 = vadd.f32 %v3650, %v3810
        %3812 = vmatprep.mubr.f32.mxu0 %v2442
        %3813 = vmatmul.mubr.f32.gmra.mrb[0].mxu0 %v2441
        %v3814 = vpop.f32.mrb[0].mxu0
        %v3815 = vadd.f32 %v3654, %v3814
        %v3816 = vpop.f32.mrb[0].mxu0
        %v3817 = vadd.f32 %v3656, %v3816
        %3818 = vmatprep.mubr.f32.mxu0 %v2446
        %3819 = vmatmul.mubr.f32.gmra.mrb[0].mxu0 %v2445
        %v3820 = vpop.f32.mrb[0].mxu0
        %v3821 = vadd.f32 %v3660, %v3820
        %v3822 = vpop.f32.mrb[0].mxu0
        %v3823 = vadd.f32 %v3662, %v3822
        %3824 = vmatprep.mubr.f32.mxu0 %v2450
        %3825 = vmatmul.mubr.f32.gmra.mrb[0].mxu0 %v2449
        %v3826 = vpop.f32.mrb[0].mxu0
        %v3827 = vadd.f32 %v3666, %v3826
        %v3828 = vpop.f32.mrb[0].mxu0
        %v3829 = vadd.f32 %v3668, %v3828
        %3830 = vmatprep.mubr.f32.mxu0 %v2454
        %3831 = vmatmul.mubr.f32.gmra.mrb[0].mxu0 %v2453
        %v3832 = vpop.f32.mrb[0].mxu0
        %v3833 = vadd.f32 %v3672, %v3832
        %v3834 = vpop.f32.mrb[0].mxu0
        %v3835 = vadd.f32 %v3674, %v3834
        %3836 = vdwg.mxu0
        %v3837 = vtanh.pop %v3099
        %v3838 = vtanh.pop %v3101
        %v3839 = vtanh.pop %v3421
        %v3840 = vtanh.pop %v3105
        %v3841 = vtanh.pop %v3107
        %v3842 = vtanh.pop %v3427
        %v3843 = vtanh.pop %v3111
        %v3844 = vtanh.pop %v3113
        %v3845 = vtanh.pop %v3433
        %v3846 = vtanh.pop %v3117
        %v3847 = vtanh.pop %v3119
        %v3848 = vtanh.pop %v3439
        %v3849 = vtanh.pop %v3123
        %v3850 = vtanh.pop %v3125
        %v3851 = vtanh.pop %v3445
        %v3852 = vtanh.pop %v3129
        %v3853 = vtanh.pop %v3131
        %v3854 = vtanh.pop %v3451
        %v3855 = vtanh.pop %v3135
        %v3856 = vtanh.pop %v3137
        %v3857 = vtanh.pop %v3457
        %v3858 = vtanh.pop %v3141
        %v3859 = vtanh.pop %v3143
        %v3860 = vtanh.pop %v3463
        %v3861 = vtanh.pop %v3147
        %v3862 = vtanh.pop %v3149
        %v3863 = vtanh.pop %v3469
        %v3864 = vtanh.pop %v3153
        %v3865 = vtanh.pop %v3155
        %v3866 = vtanh.pop %v3475
        %v3867 = vtanh.pop %v3159
        %v3868 = vtanh.pop %v3161
        %v3869 = vtanh.pop %v3481
        %v3870 = vtanh.pop %v3165
        %v3871 = vtanh.pop %v3167
        %v3872 = vtanh.pop %v3487
        %v3873 = vtanh.pop %v3171
        %v3874 = vtanh.pop %v3173
        %v3875 = vtanh.pop %v3493
        %v3876 = vtanh.pop %v3177
        %v3877 = vtanh.pop %v3179
        %v3878 = vtanh.pop %v3499
        %v3879 = vtanh.pop %v3183
        %v3880 = vtanh.pop %v3185
        %v3881 = vtanh.pop %v3505
        %v3882 = vtanh.pop %v3189
        %v3883 = vtanh.pop %v3191
        %v3884 = vtanh.pop %v3511
        %v3885 = vxor.u32 %v3423, 2147483648
        %v3886 = vxor.u32 %v3743, 2147483648
        %v3887 = vxor.u32 %v3745, 2147483648
        %v3888 = vxor.u32 %v3429, 2147483648
        %v3889 = vxor.u32 %v3749, 2147483648
        %v3890 = vxor.u32 %v3751, 2147483648
        %v3891 = vxor.u32 %v3435, 2147483648
        %v3892 = vxor.u32 %v3755, 2147483648
        %v3893 = vxor.u32 %v3757, 2147483648
        %v3894 = vxor.u32 %v3441, 2147483648
        %v3895 = vxor.u32 %v3761, 2147483648
        %v3896 = vxor.u32 %v3763, 2147483648
        %v3897 = vxor.u32 %v3447, 2147483648
        %v3898 = vxor.u32 %v3767, 2147483648
        %v3899 = vxor.u32 %v3769, 2147483648
        %v3900 = vxor.u32 %v3453, 2147483648
        %v3901 = vxor.u32 %v3773, 2147483648
        %v3902 = vxor.u32 %v3775, 2147483648
        %v3903 = vxor.u32 %v3459, 2147483648
        %v3904 = vxor.u32 %v3779, 2147483648
        %v3905 = vxor.u32 %v3781, 2147483648
        %v3906 = vxor.u32 %v3465, 2147483648
        %v3907 = vxor.u32 %v3785, 2147483648
        %v3908 = vxor.u32 %v3787, 2147483648
        %v3909 = vxor.u32 %v3471, 2147483648
        %v3910 = vxor.u32 %v3791, 2147483648
        %v3911 = vxor.u32 %v3793, 2147483648
        %v3912 = vxor.u32 %v3477, 2147483648
        %v3913 = vxor.u32 %v3797, 2147483648
        %v3914 = vxor.u32 %v3799, 2147483648
        %v3915 = vxor.u32 %v3483, 2147483648
        %v3916 = vxor.u32 %v3803, 2147483648
        %v3917 = vxor.u32 %v3805, 2147483648
        %v3918 = vxor.u32 %v3489, 2147483648
        %v3919 = vxor.u32 %v3809, 2147483648
        %v3920 = vxor.u32 %v3811, 2147483648
        %v3921 = vxor.u32 %v3495, 2147483648
        %v3922 = vxor.u32 %v3815, 2147483648
        %v3923 = vxor.u32 %v3817, 2147483648
        %v3924 = vxor.u32 %v3501, 2147483648
        %v3925 = vxor.u32 %v3821, 2147483648
        %v3926 = vxor.u32 %v3823, 2147483648
        %v3927 = vxor.u32 %v3507, 2147483648
        %v3928 = vxor.u32 %v3827, 2147483648
        %v3929 = vxor.u32 %v3829, 2147483648
        %v3930 = vxor.u32 %v3513, 2147483648
        %v3931 = vxor.u32 %v3833, 2147483648
        %v3932 = vxor.u32 %v3835, 2147483648
        %v3933 = vmul.f32 %v3885, 1.442695
        %v3934 = vpow.pop %v3933
        %v3935 = vmul.f32 %v3886, 1.442695
        %v3936 = vpow.pop %v3935
        %v3937 = vmul.f32 %v3887, 1.442695
        %v3938 = vpow.pop %v3937
        %v3939 = vmul.f32 %v3888, 1.442695
        %v3940 = vpow.pop %v3939
        %v3941 = vmul.f32 %v3889, 1.442695
        %v3942 = vpow.pop %v3941
        %v3943 = vmul.f32 %v3890, 1.442695
        %v3944 = vpow.pop %v3943
        %v3945 = vmul.f32 %v3891, 1.442695
        %v3946 = vpow.pop %v3945
        %v3947 = vmul.f32 %v3892, 1.442695
        %v3948 = vpow.pop %v3947
        %v3949 = vmul.f32 %v3893, 1.442695
        %v3950 = vpow.pop %v3949
        %v3951 = vmul.f32 %v3894, 1.442695
        %v3952 = vpow.pop %v3951
        %v3953 = vmul.f32 %v3895, 1.442695
        %v3954 = vpow.pop %v3953
        %v3955 = vmul.f32 %v3896, 1.442695
        %v3956 = vpow.pop %v3955
        %v3957 = vmul.f32 %v3897, 1.442695
        %v3958 = vpow.pop %v3957
        %v3959 = vmul.f32 %v3898, 1.442695
        %v3960 = vpow.pop %v3959
        %v3961 = vmul.f32 %v3899, 1.442695
        %v3962 = vpow.pop %v3961
        %v3963 = vmul.f32 %v3900, 1.442695
        %v3964 = vpow.pop %v3963
        %v3965 = vmul.f32 %v3901, 1.442695
        %v3966 = vpow.pop %v3965
        %v3967 = vmul.f32 %v3902, 1.442695
        %v3968 = vpow.pop %v3967
        %v3969 = vmul.f32 %v3903, 1.442695
        %v3970 = vpow.pop %v3969
        %v3971 = vmul.f32 %v3904, 1.442695
        %v3972 = vpow.pop %v3971
        %v3973 = vmul.f32 %v3905, 1.442695
        %v3974 = vpow.pop %v3973
        %v3975 = vmul.f32 %v3906, 1.442695
        %v3976 = vpow.pop %v3975
        %v3977 = vmul.f32 %v3907, 1.442695
        %v3978 = vpow.pop %v3977
        %v3979 = vmul.f32 %v3908, 1.442695
        %v3980 = vpow.pop %v3979
        %v3981 = vmul.f32 %v3909, 1.442695
        %v3982 = vpow.pop %v3981
        %v3983 = vmul.f32 %v3910, 1.442695
        %v3984 = vpow.pop %v3983
        %v3985 = vmul.f32 %v3911, 1.442695
        %v3986 = vpow.pop %v3985
        %v3987 = vmul.f32 %v3912, 1.442695
        %v3988 = vpow.pop %v3987
        %v3989 = vmul.f32 %v3913, 1.442695
        %v3990 = vpow.pop %v3989
        %v3991 = vmul.f32 %v3914, 1.442695
        %v3992 = vpow.pop %v3991
        %v3993 = vmul.f32 %v3915, 1.442695
        %v3994 = vpow.pop %v3993
        %v3995 = vmul.f32 %v3916, 1.442695
        %v3996 = vpow.pop %v3995
        %v3997 = vmul.f32 %v3917, 1.442695
        %v3998 = vpow.pop %v3997
        %v3999 = vmul.f32 %v3918, 1.442695
        %v4000 = vpow.pop %v3999
        %v4001 = vmul.f32 %v3919, 1.442695
        %v4002 = vpow.pop %v4001
        %v4003 = vmul.f32 %v3920, 1.442695
        %v4004 = vpow.pop %v4003
        %v4005 = vmul.f32 %v3921, 1.442695
        %v4006 = vpow.pop %v4005
        %v4007 = vmul.f32 %v3922, 1.442695
        %v4008 = vpow.pop %v4007
        %v4009 = vmul.f32 %v3923, 1.442695
        %v4010 = vpow.pop %v4009
        %v4011 = vmul.f32 %v3924, 1.442695
        %v4012 = vpow.pop %v4011
        %v4013 = vmul.f32 %v3925, 1.442695
        %v4014 = vpow.pop %v4013
        %v4015 = vmul.f32 %v3926, 1.442695
        %v4016 = vpow.pop %v4015
        %v4017 = vmul.f32 %v3927, 1.442695
        %v4018 = vpow.pop %v4017
        %v4019 = vmul.f32 %v3928, 1.442695
        %v4020 = vpow.pop %v4019
        %v4021 = vmul.f32 %v3929, 1.442695
        %v4022 = vpow.pop %v4021
        %v4023 = vmul.f32 %v3930, 1.442695
        %v4024 = vpow.pop %v4023
        %v4025 = vmul.f32 %v3931, 1.442695
        %v4026 = vpow.pop %v4025
        %v4027 = vmul.f32 %v3932, 1.442695
        %v4028 = vpow.pop %v4027
        %v4029 = vadd.f32 %v3934, 1.0
        %v4030 = vadd.f32 %v3936, 1.0
        %v4031 = vadd.f32 %v3938, 1.0
        %v4032 = vadd.f32 %v3940, 1.0
        %v4033 = vadd.f32 %v3942, 1.0
        %v4034 = vadd.f32 %v3944, 1.0
        %v4035 = vadd.f32 %v3946, 1.0
        %v4036 = vadd.f32 %v3948, 1.0
        %v4037 = vadd.f32 %v3950, 1.0
        %v4038 = vadd.f32 %v3952, 1.0
        %v4039 = vadd.f32 %v3954, 1.0
        %v4040 = vadd.f32 %v3956, 1.0
        %v4041 = vadd.f32 %v3958, 1.0
        %v4042 = vadd.f32 %v3960, 1.0
        %v4043 = vadd.f32 %v3962, 1.0
        %v4044 = vadd.f32 %v3964, 1.0
        %v4045 = vadd.f32 %v3966, 1.0
        %v4046 = vadd.f32 %v3968, 1.0
        %v4047 = vadd.f32 %v3970, 1.0
        %v4048 = vadd.f32 %v3972, 1.0
        %v4049 = vadd.f32 %v3974, 1.0
        %v4050 = vadd.f32 %v3976, 1.0
        %v4051 = vadd.f32 %v3978, 1.0
        %v4052 = vadd.f32 %v3980, 1.0
        %v4053 = vadd.f32 %v3982, 1.0
        %v4054 = vadd.f32 %v3984, 1.0
        %v4055 = vadd.f32 %v3986, 1.0
        %v4056 = vadd.f32 %v3988, 1.0
        %v4057 = vadd.f32 %v3990, 1.0
        %v4058 = vadd.f32 %v3992, 1.0
        %v4059 = vadd.f32 %v3994, 1.0
        %v4060 = vadd.f32 %v3996, 1.0
        %v4061 = vadd.f32 %v3998, 1.0
        %v4062 = vadd.f32 %v4000, 1.0
        %v4063 = vadd.f32 %v4002, 1.0
        %v4064 = vadd.f32 %v4004, 1.0
        %v4065 = vadd.f32 %v4006, 1.0
        %v4066 = vadd.f32 %v4008, 1.0
        %v4067 = vadd.f32 %v4010, 1.0
        %v4068 = vadd.f32 %v4012, 1.0
        %v4069 = vadd.f32 %v4014, 1.0
        %v4070 = vadd.f32 %v4016, 1.0
        %v4071 = vadd.f32 %v4018, 1.0
        %v4072 = vadd.f32 %v4020, 1.0
        %v4073 = vadd.f32 %v4022, 1.0
        %v4074 = vadd.f32 %v4024, 1.0
        %v4075 = vadd.f32 %v4026, 1.0
        %v4076 = vadd.f32 %v4028, 1.0
        %v4077 = vrcp.pop %v4029
        %v4078 = vmul.f32 1.0, %v4077
        %v4079 = vrcp.pop %v4030
        %v4080 = vmul.f32 1.0, %v4079
        %v4081 = vrcp.pop %v4031
        %v4082 = vmul.f32 1.0, %v4081
        %v4083 = vrcp.pop %v4032
        %v4084 = vmul.f32 1.0, %v4083
        %v4085 = vrcp.pop %v4033
        %v4086 = vmul.f32 1.0, %v4085
        %v4087 = vrcp.pop %v4034
        %v4088 = vmul.f32 1.0, %v4087
        %v4089 = vrcp.pop %v4035
        %v4090 = vmul.f32 1.0, %v4089
        %v4091 = vrcp.pop %v4036
        %v4092 = vmul.f32 1.0, %v4091
        %v4093 = vrcp.pop %v4037
        %v4094 = vmul.f32 1.0, %v4093
        %v4095 = vrcp.pop %v4038
        %v4096 = vmul.f32 1.0, %v4095
        %v4097 = vrcp.pop %v4039
        %v4098 = vmul.f32 1.0, %v4097
        %v4099 = vrcp.pop %v4040
        %v4100 = vmul.f32 1.0, %v4099
        %v4101 = vrcp.pop %v4041
        %v4102 = vmul.f32 1.0, %v4101
        %v4103 = vrcp.pop %v4042
        %v4104 = vmul.f32 1.0, %v4103
        %v4105 = vrcp.pop %v4043
        %v4106 = vmul.f32 1.0, %v4105
        %v4107 = vrcp.pop %v4044
        %v4108 = vmul.f32 1.0, %v4107
        %v4109 = vrcp.pop %v4045
        %v4110 = vmul.f32 1.0, %v4109
        %v4111 = vrcp.pop %v4046
        %v4112 = vmul.f32 1.0, %v4111
        %v4113 = vrcp.pop %v4047
        %v4114 = vmul.f32 1.0, %v4113
        %v4115 = vrcp.pop %v4048
        %v4116 = vmul.f32 1.0, %v4115
        %v4117 = vrcp.pop %v4049
        %v4118 = vmul.f32 1.0, %v4117
        %v4119 = vrcp.pop %v4050
        %v4120 = vmul.f32 1.0, %v4119
        %v4121 = vrcp.pop %v4051
        %v4122 = vmul.f32 1.0, %v4121
        %v4123 = vrcp.pop %v4052
        %v4124 = vmul.f32 1.0, %v4123
        %v4125 = vrcp.pop %v4053
        %v4126 = vmul.f32 1.0, %v4125
        %v4127 = vrcp.pop %v4054
        %v4128 = vmul.f32 1.0, %v4127
        %v4129 = vrcp.pop %v4055
        %v4130 = vmul.f32 1.0, %v4129
        %v4131 = vrcp.pop %v4056
        %v4132 = vmul.f32 1.0, %v4131
        %v4133 = vrcp.pop %v4057
        %v4134 = vmul.f32 1.0, %v4133
        %v4135 = vrcp.pop %v4058
        %v4136 = vmul.f32 1.0, %v4135
        %v4137 = vrcp.pop %v4059
        %v4138 = vmul.f32 1.0, %v4137
        %v4139 = vrcp.pop %v4060
        %v4140 = vmul.f32 1.0, %v4139
        %v4141 = vrcp.pop %v4061
        %v4142 = vmul.f32 1.0, %v4141
        %v4143 = vrcp.pop %v4062
        %v4144 = vmul.f32 1.0, %v4143
        %v4145 = vrcp.pop %v4063
        %v4146 = vmul.f32 1.0, %v4145
        %v4147 = vrcp.pop %v4064
        %v4148 = vmul.f32 1.0, %v4147
        %v4149 = vrcp.pop %v4065
        %v4150 = vmul.f32 1.0, %v4149
        %v4151 = vrcp.pop %v4066
        %v4152 = vmul.f32 1.0, %v4151
        %v4153 = vrcp.pop %v4067
        %v4154 = vmul.f32 1.0, %v4153
        %v4155 = vrcp.pop %v4068
        %v4156 = vmul.f32 1.0, %v4155
        %v4157 = vrcp.pop %v4069
        %v4158 = vmul.f32 1.0, %v4157
        %v4159 = vrcp.pop %v4070
        %v4160 = vmul.f32 1.0, %v4159
        %v4161 = vrcp.pop %v4071
        %v4162 = vmul.f32 1.0, %v4161
        %v4163 = vrcp.pop %v4072
        %v4164 = vmul.f32 1.0, %v4163
        %v4165 = vrcp.pop %v4073
        %v4166 = vmul.f32 1.0, %v4165
        %v4167 = vrcp.pop %v4074
        %v4168 = vmul.f32 1.0, %v4167
        %v4169 = vrcp.pop %v4075
        %v4170 = vmul.f32 1.0, %v4169
        %v4171 = vrcp.pop %v4076
        %v4172 = vmul.f32 1.0, %v4171
        %v4173 = vmul.f32 %v3837, %v4078
        %v4174 = vmul.f32 %v3838, %v4080
        %v4175 = vmul.f32 %v3839, %v4082
        %v4176 = vmul.f32 %v3840, %v4084
        %v4177 = vmul.f32 %v3841, %v4086
        %v4178 = vmul.f32 %v3842, %v4088
        %v4179 = vmul.f32 %v3843, %v4090
        %v4180 = vmul.f32 %v3844, %v4092
        %v4181 = vmul.f32 %v3845, %v4094
        %v4182 = vmul.f32 %v3846, %v4096
        %v4183 = vmul.f32 %v3847, %v4098
        %v4184 = vmul.f32 %v3848, %v4100
        %v4185 = vmul.f32 %v3849, %v4102
        %v4186 = vmul.f32 %v3850, %v4104
        %v4187 = vmul.f32 %v3851, %v4106
        %v4188 = vmul.f32 %v3852, %v4108
        %v4189 = vmul.f32 %v3853, %v4110
        %v4190 = vmul.f32 %v3854, %v4112
        %v4191 = vmul.f32 %v3855, %v4114
        %v4192 = vmul.f32 %v3856, %v4116
        %v4193 = vmul.f32 %v3857, %v4118
        %v4194 = vmul.f32 %v3858, %v4120
        %v4195 = vmul.f32 %v3859, %v4122
        %v4196 = vmul.f32 %v3860, %v4124
        %v4197 = vmul.f32 %v3861, %v4126
        %v4198 = vmul.f32 %v3862, %v4128
        %v4199 = vmul.f32 %v3863, %v4130
        %v4200 = vmul.f32 %v3864, %v4132
        %v4201 = vmul.f32 %v3865, %v4134
        %v4202 = vmul.f32 %v3866, %v4136
        %v4203 = vmul.f32 %v3867, %v4138
        %v4204 = vmul.f32 %v3868, %v4140
        %v4205 = vmul.f32 %v3869, %v4142
        %v4206 = vmul.f32 %v3870, %v4144
        %v4207 = vmul.f32 %v3871, %v4146
        %v4208 = vmul.f32 %v3872, %v4148
        %v4209 = vmul.f32 %v3873, %v4150
        %v4210 = vmul.f32 %v3874, %v4152
        %v4211 = vmul.f32 %v3875, %v4154
        %v4212 = vmul.f32 %v3876, %v4156
        %v4213 = vmul.f32 %v3877, %v4158
        %v4214 = vmul.f32 %v3878, %v4160
        %v4215 = vmul.f32 %v3879, %v4162
        %v4216 = vmul.f32 %v3880, %v4164
        %v4217 = vmul.f32 %v3881, %v4166
        %v4218 = vmul.f32 %v3882, %v4168
        %v4219 = vmul.f32 %v3883, %v4170
        %v4220 = vmul.f32 %v3884, %v4172
        %v4221 = vld [vmem:[#allocation13] sm:$0x7]
        %v4223 = vlaneseq
        %v4224 = vshrl.u32 %v4223, 7
        %v4225 = vsub.s32 0, %v4224
        %v4226 = vrot.slane %v4221, %v4225
        %v4227 = vlaneseq
        %v4228 = vshrl.u32 %v4227, 7
        %v4229 = vsub.s32 1, %v4228
        %v4230 = vrot.slane %v4221, %v4229
        %v4231 = vlaneseq
        %v4232 = vshrl.u32 %v4231, 7
        %v4233 = vsub.s32 2, %v4232
        %v4234 = vrot.slane %v4221, %v4233
        %v4238 = vmul.f32 %v4173, %v4226
        %v4239 = vmul.f32 %v4174, %v4230
        %v4240 = vmul.f32 %v4175, %v4234
        %v4241 = vmul.f32 %v4176, %v4226
        %v4242 = vmul.f32 %v4177, %v4230
        %v4243 = vmul.f32 %v4178, %v4234
        %v4244 = vmul.f32 %v4179, %v4226
        %v4245 = vmul.f32 %v4180, %v4230
        %v4246 = vmul.f32 %v4181, %v4234
        %v4247 = vmul.f32 %v4182, %v4226
        %v4248 = vmul.f32 %v4183, %v4230
        %v4249 = vmul.f32 %v4184, %v4234
        %v4250 = vmul.f32 %v4185, %v4226
        %v4251 = vmul.f32 %v4186, %v4230
        %v4252 = vmul.f32 %v4187, %v4234
        %v4253 = vmul.f32 %v4188, %v4226
        %v4254 = vmul.f32 %v4189, %v4230
        %v4255 = vmul.f32 %v4190, %v4234
        %v4256 = vmul.f32 %v4191, %v4226
        %v4257 = vmul.f32 %v4192, %v4230
        %v4258 = vmul.f32 %v4193, %v4234
        %v4259 = vmul.f32 %v4194, %v4226
        %v4260 = vmul.f32 %v4195, %v4230
        %v4261 = vmul.f32 %v4196, %v4234
        %v4262 = vmul.f32 %v4197, %v4226
        %v4263 = vmul.f32 %v4198, %v4230
        %v4264 = vmul.f32 %v4199, %v4234
        %v4265 = vmul.f32 %v4200, %v4226
        %v4266 = vmul.f32 %v4201, %v4230
        %v4267 = vmul.f32 %v4202, %v4234
        %v4268 = vmul.f32 %v4203, %v4226
        %v4269 = vmul.f32 %v4204, %v4230
        %v4270 = vmul.f32 %v4205, %v4234
        %v4271 = vmul.f32 %v4206, %v4226
        %v4272 = vmul.f32 %v4207, %v4230
        %v4273 = vmul.f32 %v4208, %v4234
        %v4274 = vmul.f32 %v4209, %v4226
        %v4275 = vmul.f32 %v4210, %v4230
        %v4276 = vmul.f32 %v4211, %v4234
        %v4277 = vmul.f32 %v4212, %v4226
        %v4278 = vmul.f32 %v4213, %v4230
        %v4279 = vmul.f32 %v4214, %v4234
        %v4280 = vmul.f32 %v4215, %v4226
        %v4281 = vmul.f32 %v4216, %v4230
        %v4282 = vmul.f32 %v4217, %v4234
        %v4283 = vmul.f32 %v4218, %v4226
        %v4284 = vmul.f32 %v4219, %v4230
        %v4285 = vmul.f32 %v4220, %v4234
        %v4286 = vadd.f32 %v4238, %v4239
        %v4287 = vadd.f32 %v4286, %v4240
        %4288 = vadd.xlane.f32.xlu0 %v4287
        %v4289 = vpop.xlane.xlu0 %4288
        %v4290 = vadd.f32 %v4241, %v4242
        %v4291 = vadd.f32 %v4290, %v4243
        %4292 = vadd.xlane.f32.xlu0 %v4291
        %v4293 = vpop.xlane.xlu0 %4292
        %v4294 = vadd.f32 %v4244, %v4245
        %v4295 = vadd.f32 %v4294, %v4246
        %4296 = vadd.xlane.f32.xlu0 %v4295
        %v4297 = vpop.xlane.xlu0 %4296
        %v4298 = vadd.f32 %v4247, %v4248
        %v4299 = vadd.f32 %v4298, %v4249
        %4300 = vadd.xlane.f32.xlu0 %v4299
        %v4301 = vpop.xlane.xlu0 %4300
        %v4302 = vadd.f32 %v4250, %v4251
        %v4303 = vadd.f32 %v4302, %v4252
        %4304 = vadd.xlane.f32.xlu0 %v4303
        %v4305 = vpop.xlane.xlu0 %4304
        %v4306 = vadd.f32 %v4253, %v4254
        %v4307 = vadd.f32 %v4306, %v4255
        %4308 = vadd.xlane.f32.xlu0 %v4307
        %v4309 = vpop.xlane.xlu0 %4308
        %v4310 = vadd.f32 %v4256, %v4257
        %v4311 = vadd.f32 %v4310, %v4258
        %4312 = vadd.xlane.f32.xlu0 %v4311
        %v4313 = vpop.xlane.xlu0 %4312
        %v4314 = vadd.f32 %v4259, %v4260
        %v4315 = vadd.f32 %v4314, %v4261
        %4316 = vadd.xlane.f32.xlu0 %v4315
        %v4317 = vpop.xlane.xlu0 %4316
        %v4318 = vadd.f32 %v4262, %v4263
        %v4319 = vadd.f32 %v4318, %v4264
        %4320 = vadd.xlane.f32.xlu0 %v4319
        %v4321 = vpop.xlane.xlu0 %4320
        %v4322 = vadd.f32 %v4265, %v4266
        %v4323 = vadd.f32 %v4322, %v4267
        %4324 = vadd.xlane.f32.xlu0 %v4323
        %v4325 = vpop.xlane.xlu0 %4324
        %v4326 = vadd.f32 %v4268, %v4269
        %v4327 = vadd.f32 %v4326, %v4270
        %4328 = vadd.xlane.f32.xlu0 %v4327
        %v4329 = vpop.xlane.xlu0 %4328
        %v4330 = vadd.f32 %v4271, %v4272
        %v4331 = vadd.f32 %v4330, %v4273
        %4332 = vadd.xlane.f32.xlu0 %v4331
        %v4333 = vpop.xlane.xlu0 %4332
        %v4334 = vadd.f32 %v4274, %v4275
        %v4335 = vadd.f32 %v4334, %v4276
        %4336 = vadd.xlane.f32.xlu0 %v4335
        %v4337 = vpop.xlane.xlu0 %4336
        %v4338 = vadd.f32 %v4277, %v4278
        %v4339 = vadd.f32 %v4338, %v4279
        %4340 = vadd.xlane.f32.xlu0 %v4339
        %v4341 = vpop.xlane.xlu0 %4340
        %v4342 = vadd.f32 %v4280, %v4281
        %v4343 = vadd.f32 %v4342, %v4282
        %4344 = vadd.xlane.f32.xlu0 %v4343
        %v4345 = vpop.xlane.xlu0 %4344
        %v4346 = vadd.f32 %v4283, %v4284
        %v4347 = vadd.f32 %v4346, %v4285
        %4348 = vadd.xlane.f32.xlu0 %v4347
        %v4349 = vpop.xlane.xlu0 %4348
        %v4350 = vld [vmem:[#allocation4] sm:$0x1]
        %v4352 = vlaneseq
        %v4353 = vshrl.u32 %v4352, 7
        %v4354 = vsub.s32 0, %v4353
        %v4355 = vrot.slane %v4350, %v4354
        %v4357 = vadd.f32 %v4289, %v4355
        %v4358 = vadd.f32 %v4293, %v4355
        %v4359 = vadd.f32 %v4297, %v4355
        %v4360 = vadd.f32 %v4301, %v4355
        %v4361 = vadd.f32 %v4305, %v4355
        %v4362 = vadd.f32 %v4309, %v4355
        %v4363 = vadd.f32 %v4313, %v4355
        %v4364 = vadd.f32 %v4317, %v4355
        %v4365 = vadd.f32 %v4321, %v4355
        %v4366 = vadd.f32 %v4325, %v4355
        %v4367 = vadd.f32 %v4329, %v4355
        %v4368 = vadd.f32 %v4333, %v4355
        %v4369 = vadd.f32 %v4337, %v4355
        %v4370 = vadd.f32 %v4341, %v4355
        %v4371 = vadd.f32 %v4345, %v4355
        %v4372 = vadd.f32 %v4349, %v4355
        %s4373 = smul.u32 %s31, 128
        %v4374 = vlaneseq
        %v4375 = vshrl.u32 %v4374, 7
        %v4376 = vadd.s32 %v4375, 8
        %v4377 = vadd.s32 %v4375, 16
        %v4378 = vadd.s32 %v4375, 24
        %v4379 = vadd.s32 %v4375, 32
        %v4380 = vadd.s32 %v4375, 40
        %v4381 = vadd.s32 %v4375, 48
        %v4382 = vadd.s32 %v4375, 56
        %v4383 = vadd.s32 %v4375, 64
        %v4384 = vadd.s32 %v4375, 72
        %v4385 = vadd.s32 %v4375, 80
        %v4386 = vadd.s32 %v4375, 88
        %v4387 = vadd.s32 %v4375, 96
        %v4388 = vadd.s32 %v4375, 104
        %v4389 = vadd.s32 %v4375, 112
        %v4390 = vadd.s32 %v4375, 120
        %v4391 = vstv %s4373
        %v4392 = vadd.s32 %v4391, %v4375
        %v4393 = vadd.s32 %v4391, %v4376
        %v4394 = vadd.s32 %v4391, %v4377
        %v4395 = vadd.s32 %v4391, %v4378
        %v4396 = vadd.s32 %v4391, %v4379
        %v4397 = vadd.s32 %v4391, %v4380
        %v4398 = vadd.s32 %v4391, %v4381
        %v4399 = vadd.s32 %v4391, %v4382
        %v4400 = vadd.s32 %v4391, %v4383
        %v4401 = vadd.s32 %v4391, %v4384
        %v4402 = vadd.s32 %v4391, %v4385
        %v4403 = vadd.s32 %v4391, %v4386
        %v4404 = vadd.s32 %v4391, %v4387
        %v4405 = vadd.s32 %v4391, %v4388
        %v4406 = vadd.s32 %v4391, %v4389
        %v4407 = vadd.s32 %v4391, %v4390
        %s4408 = sld [smem:[#allocation3]]
        %v4409 = vstv %s4408
        %vm4410 = vcmp.lt.s32.totalorder %v4392, %v4409
        %vm4411 = vcmp.lt.s32.totalorder %v4393, %v4409
        %vm4412 = vcmp.lt.s32.totalorder %v4394, %v4409
        %vm4413 = vcmp.lt.s32.totalorder %v4395, %v4409
        %vm4414 = vcmp.lt.s32.totalorder %v4396, %v4409
        %vm4415 = vcmp.lt.s32.totalorder %v4397, %v4409
        %vm4416 = vcmp.lt.s32.totalorder %v4398, %v4409
        %vm4417 = vcmp.lt.s32.totalorder %v4399, %v4409
        %vm4418 = vcmp.lt.s32.totalorder %v4400, %v4409
        %vm4419 = vcmp.lt.s32.totalorder %v4401, %v4409
        %vm4420 = vcmp.lt.s32.totalorder %v4402, %v4409
        %vm4421 = vcmp.lt.s32.totalorder %v4403, %v4409
        %vm4422 = vcmp.lt.s32.totalorder %v4404, %v4409
        %vm4423 = vcmp.lt.s32.totalorder %v4405, %v4409
        %vm4424 = vcmp.lt.s32.totalorder %v4406, %v4409
        %vm4425 = vcmp.lt.s32.totalorder %v4407, %v4409
        %v4426 = vsel %vm4410, %v4357, -1e+30
        %v4427 = vsel %vm4411, %v4358, -1e+30
        %v4428 = vsel %vm4412, %v4359, -1e+30
        %v4429 = vsel %vm4413, %v4360, -1e+30
        %v4430 = vsel %vm4414, %v4361, -1e+30
        %v4431 = vsel %vm4415, %v4362, -1e+30
        %v4432 = vsel %vm4416, %v4363, -1e+30
        %v4433 = vsel %vm4417, %v4364, -1e+30
        %v4434 = vsel %vm4418, %v4365, -1e+30
        %v4435 = vsel %vm4419, %v4366, -1e+30
        %v4436 = vsel %vm4420, %v4367, -1e+30
        %v4437 = vsel %vm4421, %v4368, -1e+30
        %v4438 = vsel %vm4422, %v4369, -1e+30
        %v4439 = vsel %vm4423, %v4370, -1e+30
        %v4440 = vsel %vm4424, %v4371, -1e+30
        %v4441 = vsel %vm4425, %v4372, -1e+30
        %vm4442 = vcmask 7168
        %v4443 = vsel %vm4442, %v4426, -inf
        %v4444 = vsel %vm4442, %v4427, -inf
        %v4445 = vsel %vm4442, %v4428, -inf
        %v4446 = vsel %vm4442, %v4429, -inf
        %v4447 = vsel %vm4442, %v4430, -inf
        %v4448 = vmax.f32 %v4443, %v4447
        %v4449 = vsel %vm4442, %v4431, -inf
        %v4450 = vmax.f32 %v4444, %v4449
        %v4451 = vsel %vm4442, %v4432, -inf
        %v4452 = vmax.f32 %v4445, %v4451
        %v4453 = vsel %vm4442, %v4433, -inf
        %v4454 = vmax.f32 %v4446, %v4453
        %v4455 = vsel %vm4442, %v4434, -inf
        %v4456 = vmax.f32 %v4448, %v4455
        %v4457 = vsel %vm4442, %v4435, -inf
        %v4458 = vmax.f32 %v4450, %v4457
        %v4459 = vsel %vm4442, %v4436, -inf
        %v4460 = vmax.f32 %v4452, %v4459
        %v4461 = vsel %vm4442, %v4437, -inf
        %v4462 = vmax.f32 %v4454, %v4461
        %v4463 = vsel %vm4442, %v4438, -inf
        %v4464 = vmax.f32 %v4456, %v4463
        %v4465 = vsel %vm4442, %v4439, -inf
        %v4466 = vmax.f32 %v4458, %v4465
        %v4467 = vsel %vm4442, %v4440, -inf
        %v4468 = vmax.f32 %v4460, %v4467
        %v4469 = vsel %vm4442, %v4441, -inf
        %v4470 = vmax.f32 %v4462, %v4469
        %v4471 = vmax.f32 %v4464, %v4466
        %v4472 = vmax.f32 %v4468, %v4470
        %v4473 = vmax.f32 %v4471, %v4472
        %v4474 = vrot.slane %v4473, 4
        %v4475 = vmax.f32 %v4473, %v4474
        %v4476 = vrot.slane %v4475, 2
        %v4477 = vmax.f32 %v4475, %v4476
        %v4478 = vrot.slane %v4477, 1
        %v4479 = vmax.f32 %v4477, %v4478
        %v4480 = vsub.f32 %v4426, %v4479
        %v4481 = vsub.f32 %v4427, %v4479
        %v4482 = vsub.f32 %v4428, %v4479
        %v4483 = vsub.f32 %v4429, %v4479
        %v4484 = vsub.f32 %v4430, %v4479
        %v4485 = vsub.f32 %v4431, %v4479
        %v4486 = vsub.f32 %v4432, %v4479
        %v4487 = vsub.f32 %v4433, %v4479
        %v4488 = vsub.f32 %v4434, %v4479
        %v4489 = vsub.f32 %v4435, %v4479
        %v4490 = vsub.f32 %v4436, %v4479
        %v4491 = vsub.f32 %v4437, %v4479
        %v4492 = vsub.f32 %v4438, %v4479
        %v4493 = vsub.f32 %v4439, %v4479
        %v4494 = vsub.f32 %v4440, %v4479
        %v4495 = vsub.f32 %v4441, %v4479
        %v4496 = vmul.f32 %v4480, 1.442695
        %v4497 = vpow.pop %v4496
        %v4498 = vmul.f32 %v4481, 1.442695
        %v4499 = vpow.pop %v4498
        %v4500 = vmul.f32 %v4482, 1.442695
        %v4501 = vpow.pop %v4500
        %v4502 = vmul.f32 %v4483, 1.442695
        %v4503 = vpow.pop %v4502
        %v4504 = vmul.f32 %v4484, 1.442695
        %v4505 = vpow.pop %v4504
        %v4506 = vmul.f32 %v4485, 1.442695
        %v4507 = vpow.pop %v4506
        %v4508 = vmul.f32 %v4486, 1.442695
        %v4509 = vpow.pop %v4508
        %v4510 = vmul.f32 %v4487, 1.442695
        %v4511 = vpow.pop %v4510
        %v4512 = vmul.f32 %v4488, 1.442695
        %v4513 = vpow.pop %v4512
        %v4514 = vmul.f32 %v4489, 1.442695
        %v4515 = vpow.pop %v4514
        %v4516 = vmul.f32 %v4490, 1.442695
        %v4517 = vpow.pop %v4516
        %v4518 = vmul.f32 %v4491, 1.442695
        %v4519 = vpow.pop %v4518
        %v4520 = vmul.f32 %v4492, 1.442695
        %v4521 = vpow.pop %v4520
        %v4522 = vmul.f32 %v4493, 1.442695
        %v4523 = vpow.pop %v4522
        %v4524 = vmul.f32 %v4494, 1.442695
        %v4525 = vpow.pop %v4524
        %v4526 = vmul.f32 %v4495, 1.442695
        %v4527 = vpow.pop %v4526
        %v4528 = vsel %vm4442, %v4497, 0.0
        %v4529 = vsel %vm4442, %v4499, 0.0
        %v4530 = vadd.f32 %v4528, %v4529
        %v4531 = vsel %vm4442, %v4501, 0.0
        %v4532 = vadd.f32 %v4530, %v4531
        %v4533 = vsel %vm4442, %v4503, 0.0
        %v4534 = vadd.f32 %v4532, %v4533
        %v4535 = vsel %vm4442, %v4505, 0.0
        %v4536 = vadd.f32 %v4534, %v4535
        %v4537 = vsel %vm4442, %v4507, 0.0
        %v4538 = vadd.f32 %v4536, %v4537
        %v4539 = vsel %vm4442, %v4509, 0.0
        %v4540 = vadd.f32 %v4538, %v4539
        %v4541 = vsel %vm4442, %v4511, 0.0
        %v4542 = vadd.f32 %v4540, %v4541
        %v4543 = vsel %vm4442, %v4513, 0.0
        %v4544 = vadd.f32 %v4542, %v4543
        %v4545 = vsel %vm4442, %v4515, 0.0
        %v4546 = vadd.f32 %v4544, %v4545
        %v4547 = vsel %vm4442, %v4517, 0.0
        %v4548 = vadd.f32 %v4546, %v4547
        %v4549 = vsel %vm4442, %v4519, 0.0
        %v4550 = vadd.f32 %v4548, %v4549
        %v4551 = vsel %vm4442, %v4521, 0.0
        %v4552 = vadd.f32 %v4550, %v4551
        %v4553 = vsel %vm4442, %v4523, 0.0
        %v4554 = vadd.f32 %v4552, %v4553
        %v4555 = vsel %vm4442, %v4525, 0.0
        %v4556 = vadd.f32 %v4554, %v4555
        %v4557 = vsel %vm4442, %v4527, 0.0
        %v4558 = vadd.f32 %v4556, %v4557
        %v4559 = vrot.slane %v4558, 4
        %v4560 = vadd.f32 %v4558, %v4559
        %v4561 = vrot.slane %v4560, 2
        %v4562 = vadd.f32 %v4560, %v4561
        %v4563 = vrot.slane %v4562, 1
        %v4564 = vadd.f32 %v4562, %v4563
        %4566 = vset.pattern.permute.xlu0 0
        %4567 = vperm.xlu0 %4566, %v4497
        %v4568 = vpop.permute.xlu0 %4567
        %4571 = vset.pattern.permute.xlu0 0
        %4572 = vperm.xlu0 %4571, %v4499
        %v4573 = vpop.permute.xlu0 %4572
        %4576 = vset.pattern.permute.xlu0 0
        %4577 = vperm.xlu0 %4576, %v4501
        %v4578 = vpop.permute.xlu0 %4577
        %4581 = vset.pattern.permute.xlu0 0
        %4582 = vperm.xlu0 %4581, %v4503
        %v4583 = vpop.permute.xlu0 %4582
        %4586 = vset.pattern.permute.xlu0 0
        %4587 = vperm.xlu0 %4586, %v4505
        %v4588 = vpop.permute.xlu0 %4587
        %4591 = vset.pattern.permute.xlu0 0
        %4592 = vperm.xlu0 %4591, %v4507
        %v4593 = vpop.permute.xlu0 %4592
        %4596 = vset.pattern.permute.xlu0 0
        %4597 = vperm.xlu0 %4596, %v4509
        %v4598 = vpop.permute.xlu0 %4597
        %4601 = vset.pattern.permute.xlu0 0
        %4602 = vperm.xlu0 %4601, %v4511
        %v4603 = vpop.permute.xlu0 %4602
        %4606 = vset.pattern.permute.xlu0 0
        %4607 = vperm.xlu0 %4606, %v4513
        %v4608 = vpop.permute.xlu0 %4607
        %4611 = vset.pattern.permute.xlu0 0
        %4612 = vperm.xlu0 %4611, %v4515
        %v4613 = vpop.permute.xlu0 %4612
        %4616 = vset.pattern.permute.xlu0 0
        %4617 = vperm.xlu0 %4616, %v4517
        %v4618 = vpop.permute.xlu0 %4617
        %4621 = vset.pattern.permute.xlu0 0
        %4622 = vperm.xlu0 %4621, %v4519
        %v4623 = vpop.permute.xlu0 %4622
        %4626 = vset.pattern.permute.xlu0 0
        %4627 = vperm.xlu0 %4626, %v4521
        %v4628 = vpop.permute.xlu0 %4627
        %4631 = vset.pattern.permute.xlu0 0
        %4632 = vperm.xlu0 %4631, %v4523
        %v4633 = vpop.permute.xlu0 %4632
        %4636 = vset.pattern.permute.xlu0 0
        %4637 = vperm.xlu0 %4636, %v4525
        %v4638 = vpop.permute.xlu0 %4637
        %4641 = vset.pattern.permute.xlu0 0
        %4642 = vperm.xlu0 %4641, %v4527
        %v4643 = vpop.permute.xlu0 %4642
        %v4645 = vmul.f32 %v4568, %v2391
        %v4646 = vmul.f32 %v4568, %v2392
        %v4647 = vmul.f32 %v4568, %v2393
        %v4648 = vmul.f32 %v4568, %v2394
        %v4649 = vmul.f32 %v4573, %v2395
        %v4650 = vmul.f32 %v4573, %v2396
        %v4651 = vmul.f32 %v4573, %v2397
        %v4652 = vmul.f32 %v4573, %v2398
        %v4653 = vmul.f32 %v4578, %v2399
        %v4654 = vmul.f32 %v4578, %v2400
        %v4655 = vmul.f32 %v4578, %v2401
        %v4656 = vmul.f32 %v4578, %v2402
        %v4657 = vmul.f32 %v4583, %v2403
        %v4658 = vmul.f32 %v4583, %v2404
        %v4659 = vmul.f32 %v4583, %v2405
        %v4660 = vmul.f32 %v4583, %v2406
        %v4661 = vmul.f32 %v4588, %v2407
        %v4662 = vmul.f32 %v4588, %v2408
        %v4663 = vmul.f32 %v4588, %v2409
        %v4664 = vmul.f32 %v4588, %v2410
        %v4665 = vmul.f32 %v4593, %v2411
        %v4666 = vmul.f32 %v4593, %v2412
        %v4667 = vmul.f32 %v4593, %v2413
        %v4668 = vmul.f32 %v4593, %v2414
        %v4669 = vmul.f32 %v4598, %v2415
        %v4670 = vmul.f32 %v4598, %v2416
        %v4671 = vmul.f32 %v4598, %v2417
        %v4672 = vmul.f32 %v4598, %v2418
        %v4673 = vmul.f32 %v4603, %v2419
        %v4674 = vmul.f32 %v4603, %v2420
        %v4675 = vmul.f32 %v4603, %v2421
        %v4676 = vmul.f32 %v4603, %v2422
        %v4677 = vmul.f32 %v4608, %v2423
        %v4678 = vmul.f32 %v4608, %v2424
        %v4679 = vmul.f32 %v4608, %v2425
        %v4680 = vmul.f32 %v4608, %v2426
        %v4681 = vmul.f32 %v4613, %v2427
        %v4682 = vmul.f32 %v4613, %v2428
        %v4683 = vmul.f32 %v4613, %v2429
        %v4684 = vmul.f32 %v4613, %v2430
        %v4685 = vmul.f32 %v4618, %v2431
        %v4686 = vmul.f32 %v4618, %v2432
        %v4687 = vmul.f32 %v4618, %v2433
        %v4688 = vmul.f32 %v4618, %v2434
        %v4689 = vmul.f32 %v4623, %v2435
        %v4690 = vmul.f32 %v4623, %v2436
        %v4691 = vmul.f32 %v4623, %v2437
        %v4692 = vmul.f32 %v4623, %v2438
        %v4693 = vmul.f32 %v4628, %v2439
        %v4694 = vmul.f32 %v4628, %v2440
        %v4695 = vmul.f32 %v4628, %v2441
        %v4696 = vmul.f32 %v4628, %v2442
        %v4697 = vmul.f32 %v4633, %v2443
        %v4698 = vmul.f32 %v4633, %v2444
        %v4699 = vmul.f32 %v4633, %v2445
        %v4700 = vmul.f32 %v4633, %v2446
        %v4701 = vmul.f32 %v4638, %v2447
        %v4702 = vmul.f32 %v4638, %v2448
        %v4703 = vmul.f32 %v4638, %v2449
        %v4704 = vmul.f32 %v4638, %v2450
        %v4705 = vmul.f32 %v4643, %v2451
        %v4706 = vmul.f32 %v4643, %v2452
        %v4707 = vmul.f32 %v4643, %v2453
        %v4708 = vmul.f32 %v4643, %v2454
        %v4709 = vadd.f32 %v4645, %v4649
        %v4710 = vadd.f32 %v4709, %v4653
        %v4711 = vadd.f32 %v4710, %v4657
        %v4712 = vadd.f32 %v4711, %v4661
        %v4713 = vadd.f32 %v4712, %v4665
        %v4714 = vadd.f32 %v4713, %v4669
        %v4715 = vadd.f32 %v4714, %v4673
        %v4716 = vadd.f32 %v4715, %v4677
        %v4717 = vadd.f32 %v4716, %v4681
        %v4718 = vadd.f32 %v4717, %v4685
        %v4719 = vadd.f32 %v4718, %v4689
        %v4720 = vadd.f32 %v4719, %v4693
        %v4721 = vadd.f32 %v4720, %v4697
        %v4722 = vadd.f32 %v4721, %v4701
        %v4723 = vadd.f32 %v4722, %v4705
        %v4724 = vrot.slane %v4723, 4
        %v4725 = vadd.f32 %v4723, %v4724
        %v4726 = vrot.slane %v4725, 2
        %v4727 = vadd.f32 %v4725, %v4726
        %v4728 = vrot.slane %v4727, 1
        %v4729 = vadd.f32 %v4727, %v4728
        %v4730 = vadd.f32 %v4646, %v4650
        %v4731 = vadd.f32 %v4730, %v4654
        %v4732 = vadd.f32 %v4731, %v4658
        %v4733 = vadd.f32 %v4732, %v4662
        %v4734 = vadd.f32 %v4733, %v4666
        %v4735 = vadd.f32 %v4734, %v4670
        %v4736 = vadd.f32 %v4735, %v4674
        %v4737 = vadd.f32 %v4736, %v4678
        %v4738 = vadd.f32 %v4737, %v4682
        %v4739 = vadd.f32 %v4738, %v4686
        %v4740 = vadd.f32 %v4739, %v4690
        %v4741 = vadd.f32 %v4740, %v4694
        %v4742 = vadd.f32 %v4741, %v4698
        %v4743 = vadd.f32 %v4742, %v4702
        %v4744 = vadd.f32 %v4743, %v4706
        %v4745 = vrot.slane %v4744, 4
        %v4746 = vadd.f32 %v4744, %v4745
        %v4747 = vrot.slane %v4746, 2
        %v4748 = vadd.f32 %v4746, %v4747
        %v4749 = vrot.slane %v4748, 1
        %v4750 = vadd.f32 %v4748, %v4749
        %v4751 = vadd.f32 %v4647, %v4651
        %v4752 = vadd.f32 %v4751, %v4655
        %v4753 = vadd.f32 %v4752, %v4659
        %v4754 = vadd.f32 %v4753, %v4663
        %v4755 = vadd.f32 %v4754, %v4667
        %v4756 = vadd.f32 %v4755, %v4671
        %v4757 = vadd.f32 %v4756, %v4675
        %v4758 = vadd.f32 %v4757, %v4679
        %v4759 = vadd.f32 %v4758, %v4683
        %v4760 = vadd.f32 %v4759, %v4687
        %v4761 = vadd.f32 %v4760, %v4691
        %v4762 = vadd.f32 %v4761, %v4695
        %v4763 = vadd.f32 %v4762, %v4699
        %v4764 = vadd.f32 %v4763, %v4703
        %v4765 = vadd.f32 %v4764, %v4707
        %v4766 = vrot.slane %v4765, 4
        %v4767 = vadd.f32 %v4765, %v4766
        %v4768 = vrot.slane %v4767, 2
        %v4769 = vadd.f32 %v4767, %v4768
        %v4770 = vrot.slane %v4769, 1
        %v4771 = vadd.f32 %v4769, %v4770
        %v4772 = vadd.f32 %v4648, %v4652
        %v4773 = vadd.f32 %v4772, %v4656
        %v4774 = vadd.f32 %v4773, %v4660
        %v4775 = vadd.f32 %v4774, %v4664
        %v4776 = vadd.f32 %v4775, %v4668
        %v4777 = vadd.f32 %v4776, %v4672
        %v4778 = vadd.f32 %v4777, %v4676
        %v4779 = vadd.f32 %v4778, %v4680
        %v4780 = vadd.f32 %v4779, %v4684
        %v4781 = vadd.f32 %v4780, %v4688
        %v4782 = vadd.f32 %v4781, %v4692
        %v4783 = vadd.f32 %v4782, %v4696
        %v4784 = vadd.f32 %v4783, %v4700
        %v4785 = vadd.f32 %v4784, %v4704
        %v4786 = vadd.f32 %v4785, %v4708
        %v4787 = vrot.slane %v4786, 4
        %v4788 = vadd.f32 %v4786, %v4787
        %v4789 = vrot.slane %v4788, 2
        %v4790 = vadd.f32 %v4788, %v4789
        %v4791 = vrot.slane %v4790, 1
        %v4792 = vadd.f32 %v4790, %v4791
        %vm4793 = vcmask 0
        %4794 = vst.msk [vmem:[%s433] sm:$0x1] %vm4793, %v4479
        %4795 = vst.msk [vmem:[%s436] sm:$0x1] %vm4793, %v4564
        %v4800 = vcombine.low %v4729, %v4750
        %v4801 = vcombine.low %v4771, %v4792
        %v4803 = vunpack.c.l.s4 1966171168
        %v4804 = vunpack.c.0.s8 %v4803
        %v4805 = vlaneseq
        %v4806 = vshrl.u32 %v4805, 7
        %v4807 = vsub.s32 %v4804, %v4806
        %v4808 = vrot.slane %v4800, %v4807
        %v4810 = vunpack.c.l.s4 1966171168
        %v4811 = vunpack.c.0.s8 %v4810
        %v4812 = vlaneseq
        %v4813 = vshrl.u32 %v4812, 7
        %v4814 = vsub.s32 %v4811, %v4813
        %v4815 = vrot.slane %v4801, %v4814
        %v4816 = vcombine.low %v4808, %v4815
        %v4818 = vunpack.c.l.s4 1966171168
        %v4819 = vunpack.c.0.s8 %v4818
        %v4820 = vlaneseq
        %v4821 = vshrl.u32 %v4820, 7
        %v4822 = vsub.s32 %v4819, %v4821
        %v4823 = vrot.slane %v4816, %v4822
        %v4825 = vlaneseq
        %vm4826 = vcmp.ge.s32.totalorder %v4825, 0
        %vm4827 = vcmp.lt.s32.totalorder %v4825, 512
        %vm4828 = vmand %vm4826, %vm4827
        %4829 = vst.msk [vmem:[%s440] sm:$0xf] %vm4828, %v4823
        %p4830 = scmp.lt.s32.totalorder %s31, 3
        %s4831 = scalar_select %p4830, %s31, 3
        %s4832 = scalar_lea.vmem %s8, %s4831
        %p4833 = scmp.lt.s32.totalorder %s31, 3
        %s4834 = scalar_select %p4833, %s31, 3
        %s4835 = scalar_lea.vmem %s9, %s4834
        %p4836 = scmp.lt.s32.totalorder %s31, 3
        %s4837 = scalar_select %p4836, %s31, 3
        %s4838 = smul.addr %s4837, 4
        %s4839 = scalar_lea.vmem %s10, %s4838
        // Predicated region
        $region73: #{_toad_forward_padded.2} parent=47 // pred_check
          %p4840 = pneg %p201
        $region74: #{_toad_forward_padded.2} parent=47 // pred_check_branch
          %4842 = sbr.rel (%p4840) target = $region76
        $region75: #{_toad_forward_padded.2} parent=47 // pred_region
          _
        $region76: #{_toad_forward_padded.2} parent=47 // pred_fallthru
          _
        // Predicated region
        $region77: #{_toad_forward_padded.2} parent=47 // pred_check
          %p4843 = pneg %p227
        $region78: #{_toad_forward_padded.2} parent=47 // pred_check_branch
          %4845 = sbr.rel (%p4843) target = $region80
        $region79: #{_toad_forward_padded.2} parent=47 // pred_region
          _
        $region80: #{_toad_forward_padded.2} parent=47 // pred_fallthru
          _
        // Predicated region
        $region81: #{_toad_forward_padded.2} parent=47 // pred_check
          %p4846 = pneg %p253
        $region82: #{_toad_forward_padded.2} parent=47 // pred_check_branch
          %4848 = sbr.rel (%p4846) target = $region84
        $region83: #{_toad_forward_padded.2} parent=47 // pred_region
          _
        $region84: #{_toad_forward_padded.2} parent=47 // pred_fallthru
          _
      $region48: #{_toad_forward_padded.2} parent=5 // pred_fallthru
        _
      %p4849 = scmp.le.s32.totalorder 2, %s26
      // Predicated region
      $region85: #{_toad_forward_padded.2} parent=5 // pred_check
        %p4850 = pneg %p4849
      $region86: #{_toad_forward_padded.2} parent=5 // pred_check_branch
        %4852 = sbr.rel (%p4850) target = $region88
      $region87: #{_toad_forward_padded.2} parent=5 // pred_region
        %s4853 = ssub.s32 %s26, 2
        // Predicated region
        $region89: #{_toad_forward_padded.2} parent=87 // pred_check
          %p4854 = pneg %p207
        $region90: #{_toad_forward_padded.2} parent=87 // pred_check_branch
          %4856 = sbr.rel (%p4854) target = $region92
        $region91: #{_toad_forward_padded.2} parent=87 // pred_region
          %p4857 = scmp.lt.s32.totalorder %s32, 3
          %s4858 = scalar_select %p4857, %s32, 3
          %s4859 = scalar_lea.vmem %s8, %s4858
        $region92: #{_toad_forward_padded.2} parent=87 // pred_fallthru
          _
        // Predicated region
        $region93: #{_toad_forward_padded.2} parent=87 // pred_check
          %p4860 = pneg %p233
        $region94: #{_toad_forward_padded.2} parent=87 // pred_check_branch
          %4862 = sbr.rel (%p4860) target = $region96
        $region95: #{_toad_forward_padded.2} parent=87 // pred_region
          %p4863 = scmp.lt.s32.totalorder %s32, 3
          %s4864 = scalar_select %p4863, %s32, 3
          %s4865 = scalar_lea.vmem %s9, %s4864
        $region96: #{_toad_forward_padded.2} parent=87 // pred_fallthru
          _
        // Predicated region
        $region97: #{_toad_forward_padded.2} parent=87 // pred_check
          %p4866 = pneg %p259
        $region98: #{_toad_forward_padded.2} parent=87 // pred_check_branch
          %4868 = sbr.rel (%p4866) target = $region100
        $region99: #{_toad_forward_padded.2} parent=87 // pred_region
          %p4869 = scmp.lt.s32.totalorder %s32, 3
          %s4870 = scalar_select %p4869, %s32, 3
          %s4871 = smul.addr %s4870, 4
          %s4872 = scalar_lea.vmem %s10, %s4871
        $region100: #{_toad_forward_padded.2} parent=87 // pred_fallthru
          _
      $region88: #{_toad_forward_padded.2} parent=5 // pred_fallthru
        _
    $region6: #{_toad_forward_padded.2} parent=1 // loop_footer
      %s30 = sadd.s32 1, %s26
    $region7: #{_toad_forward_padded.2} parent=1 // loop_footer_branch
      %25 = sbr.rel target = $region3
    $region8: #{_toad_forward_padded.2} parent=1 // loop_exit
      _
    %4873 = vsyncpa [#allocation6], 1
    %s4874 = scalar_lea.sflag [#allocation6], 1
    %4875 = vsyncpa %s4874, 1
    %4876 = vsyncpa [#allocation8], 1
    %4877 = vsyncpa [#allocation11], 1
    %4878 = vsyncpa [#allocation14], 1

</llo_original>
